<compile_context>
chip_gen: v6e
topology: v6e:2x2x1
jax: 0.10.0
libtpu: 0.0.40
codegen_flags: <defaults>
</compile_context>

<pallas_src>
import jax
import jax.numpy as jnp
from jax import lax
from jax.experimental import pallas as pl
from jax.experimental.pallas import tpu as pltpu


# ----------------------------------------------------------------------------
# Pallas kernel: one (batch, D-tile) block per grid step.
# ----------------------------------------------------------------------------
def bottleneck3d_kernel(
    x_ref,                      # (1, TD, H, W, Cin)  center block
    xlo_ref,                    # (1, 1,  H, W, Cin)  D-halo plane (global d0-1)
    xhi_ref,                    # (1, 1,  H, W, Cin)  D-halo plane (global d0+TD)
    w1_ref, b1_ref,             # (Cin, P), (1, P)      conv1 (1x1x1) + folded bn1
    w2_ref, b2_ref,             # (3, P, P), (1, P)     conv2 (1,1,3)  + folded bn2
    w3_ref, b3_ref,             # (3, P, P), (1, P)     conv3 (1,3,1)  + folded bn3
    w4_ref, b4_ref,             # (3, P, P), (1, P)     conv4 (3,1,1)  + folded bn4
    w5_ref, b5_ref,             # (P, Cout), (1, Cout)  conv5 (1x1x1)  + folded bn5
    o_ref,                      # (1, TD, H, W, Cout)
    padw_ref,                   # scratch (TD+2, H, W+2, P) for the W-direction conv
):
    _, TD, H, W, Cin = x_ref.shape
    P = w1_ref.shape[1]
    Cout = w5_ref.shape[1]
    T = TD + 2
    f32 = jnp.float32

    dt = pl.program_id(1)
    ndt = pl.num_programs(1)

    def dot32(a, w):
        return jnp.dot(a, w, preferred_element_type=f32)

    # ---- assemble x slab with a 1-plane D halo (halo planes from neighbors) --
    xb = jnp.concatenate([xlo_ref[0], x_ref[0], xhi_ref[0]], axis=0)  # (T,H,W,Cin)

    # ---- conv1 (1x1x1) + bn1 + relu ------------------------------------------
    out1 = jnp.maximum(
        dot32(xb.reshape(-1, Cin), w1_ref[...]) + b1_ref[...], 0.0
    ).reshape(T, H, W, P)

    # ---- conv2 (1,1,3) along W + bn2 -----------------------------------------
    # W is the sublane axis: shifted taps are read from a (W+2)-padded scratch;
    # only the two halo columns are zeroed (no full-buffer zero fill).
    zcol = jnp.zeros((T, H, 1, P), f32)
    padw_ref[:, :, 0:1, :] = zcol
    padw_ref[:, :, W + 1:W + 2, :] = zcol
    padw_ref[:, :, 1:W + 1, :] = out1
    acc = dot32(padw_ref[:, :, 0:W, :].reshape(-1, P), w2_ref[0])          # x[w-1]
    acc = acc + dot32(padw_ref[:, :, 1:W + 1, :].reshape(-1, P), w2_ref[1])  # x[w]
    acc = acc + dot32(padw_ref[:, :, 2:W + 2, :].reshape(-1, P), w2_ref[2])  # x[w+1]
    out2 = (acc + b2_ref[...]).reshape(T, H, W, P)
    o2r = jnp.maximum(out2, 0.0)

    # ---- conv3 (1,3,1) along H + bn3, + out2 residual ------------------------
    zrow = jnp.zeros((T, 1, W, P), f32)
    hm = jnp.concatenate([zrow, o2r[:, :H - 1]], axis=1)      # value at h-1
    hp = jnp.concatenate([o2r[:, 1:], zrow], axis=1)          # value at h+1
    acc = dot32(hm.reshape(-1, P), w3_ref[0])
    acc = acc + dot32(o2r.reshape(-1, P), w3_ref[1])
    acc = acc + dot32(hp.reshape(-1, P), w3_ref[2])
    out3 = (acc + b3_ref[...]).reshape(T, H, W, P) + out2
    o3r = jnp.maximum(out3, 0.0)

    # ---- conv4 (3,1,1) along D + bn4, + out2 + out3 residuals (interior) -----
    # Zero padding at the global volume boundary == mask the halo planes on the
    # first/last tile (halo content is finite, so a multiplicative mask is safe).
    lo = o3r[0:1] * (dt > 0).astype(f32)
    hi = o3r[T - 1:T] * (dt < ndt - 1).astype(f32)
    if TD > 1:
        dm = jnp.concatenate([lo, o3r[1:TD]], axis=0)         # value at d-1
        dp = jnp.concatenate([o3r[2:TD + 1], hi], axis=0)     # value at d+1
    else:
        dm, dp = lo, hi
    dc = o3r[1:TD + 1]                                        # value at d
    acc = dot32(dm.reshape(-1, P), w4_ref[0])
    acc = acc + dot32(dc.reshape(-1, P), w4_ref[1])
    acc = acc + dot32(dp.reshape(-1, P), w4_ref[2])
    out4 = (acc + b4_ref[...]).reshape(TD, H, W, P) + out2[1:TD + 1] + out3[1:TD + 1]
    o4r = jnp.maximum(out4, 0.0)

    # ---- conv5 (1x1x1) + bn5, residual add with input, final relu ------------
    out5 = dot32(o4r.reshape(-1, P), w5_ref[...]) + b5_ref[...]
    res = x_ref[0].astype(f32).reshape(-1, Cin)               # Cin == Cout here
    o_ref[0] = jnp.maximum(out5 + res, 0.0).reshape(TD, H, W, Cout).astype(o_ref.dtype)


# ----------------------------------------------------------------------------
# Wrapper
# ----------------------------------------------------------------------------
PARAM_ORDER = ("w1", "b1", "w2", "b2", "w3", "b3", "w4", "b4", "w5", "b5")


def _pick_d_tile(D, H, W, Cin, Cout, P, itemsize=4, budget_bytes=48 * 1024 * 1024):
    """Largest divisor of D whose rough per-step VMEM footprint fits the budget."""
    best = 1
    for t in range(1, D + 1):
        if D % t:
            continue
        est = itemsize * H * W * (
            (t + 2) * (Cin + 6 * P) + 2 * 2 * t * max(Cin, Cout))
        if est <= budget_bytes:
            best = t
    return best


def bottleneck3d_pallas(x, params, d_tile=None):
    N, D, H, W, Cin = x.shape
    P = params["w1"].shape[1]
    Cout = params["w5"].shape[1]
    assert Cin == Cout, (
        "stride=1 / downsample=None path requires inplanes == planes * expansion")

    if d_tile is None:
        d_tile = _pick_d_tile(D, H, W, Cin, Cout, P)
    if D % d_tile != 0:
        raise ValueError(f"d_tile={d_tile} must divide D={D}")
    TD = d_tile
    ndt = D // TD

    # Per-tile D-halo planes (zeros at the global volume boundary).
    zplane = jnp.zeros((N, 1, H, W, Cin), x.dtype)
    if ndt > 1:
        x_lo = jnp.concatenate([zplane, x[:, TD - 1:D - 1:TD]], axis=1)
        x_hi = jnp.concatenate([x[:, TD:D:TD], zplane], axis=1)
    else:
        x_lo = zplane
        x_hi = zplane

    in_specs = [
        pl.BlockSpec((1, TD, H, W, Cin), lambda n, d: (n, d, 0, 0, 0)),
        pl.BlockSpec((1, 1, H, W, Cin), lambda n, d: (n, d, 0, 0, 0)),
        pl.BlockSpec((1, 1, H, W, Cin), lambda n, d: (n, d, 0, 0, 0)),
    ]
    for k in PARAM_ORDER:
        a = params[k]
        in_specs.append(
            pl.BlockSpec(a.shape, lambda n, d, _nd=a.ndim: (0,) * _nd))
    out_specs = pl.BlockSpec((1, TD, H, W, Cout), lambda n, d: (n, d, 0, 0, 0))

    flops = int(2 * N * D * H * W * (Cin * P + 9 * P * P + P * Cout))
    bytes_accessed = int(
        (x.size + N * D * H * W * Cout) * x.dtype.itemsize
        + sum(int(params[k].size) * params[k].dtype.itemsize for k in PARAM_ORDER))

    fn = pl.pallas_call(
        bottleneck3d_kernel,
        out_shape=jax.ShapeDtypeStruct((N, D, H, W, Cout), x.dtype),
        grid_spec=pltpu.PrefetchScalarGridSpec(
            num_scalar_prefetch=0,
            grid=(N, ndt),
            in_specs=in_specs,
            out_specs=out_specs,
            scratch_shapes=[pltpu.VMEM((TD + 2, H, W + 2, P), jnp.float32)],
        ),
        compiler_params=pltpu.CompilerParams(
            dimension_semantics=("parallel", "parallel"),
            vmem_limit_bytes=64 * 1024 * 1024,
        ),
        cost_estimate=pl.CostEstimate(
            flops=flops, transcendentals=0, bytes_accessed=bytes_accessed),
    )
    return fn(x, x_lo, x_hi, *[params[k] for k in PARAM_ORDER])


# ----------------------------------------------------------------------------
# Pure-JAX reference (same math, same NDHWC layout) for validation.
# ----------------------------------------------------------------------------
def bottleneck3d_ref(x, params):
    def pw(inp, w, b):
        return jnp.einsum("...c,co->...o", inp, w) + b.reshape(-1)

    def conv1d(inp, w3, b, axis):
        pad_cfg = [(0, 0)] * inp.ndim
        pad_cfg[axis] = (1, 1)
        xp = jnp.pad(inp, pad_cfg)
        L = inp.shape[axis]
        out = 0.0
        for t in range(3):
            sl = lax.slice_in_dim(xp, t, t + L, axis=axis)
            out = out + jnp.einsum("...c,co->...o", sl, w3[t])
        return out + b.reshape(-1)

    relu = jax.nn.relu
    out1 = relu(pw(x, params["w1"], params["b1"]))
    out2 = conv1d(out1, params["w2"], params["b2"], axis=3)       # along W
    out2_relu = relu(out2)
    out3 = conv1d(out2_relu, params["w3"], params["b3"], axis=2)  # along H
    out3 = out3 + out2
    out3_relu = relu(out3)
    out4 = conv1d(out3_relu, params["w4"], params["b4"], axis=1)  # along D
    out4 = out4 + out2 + out3
    out4_relu = relu(out4)
    out5 = pw(out4_relu, params["w5"], params["b5"])
    return relu(out5 + x)


# ----------------------------------------------------------------------------
# Deterministic parameter construction (folded BatchNorm, inference mode).
# ----------------------------------------------------------------------------
def make_params(key, inplanes, planes, expansion):
    P, E = planes, expansion
    keys = jax.random.split(key, 16)

    def nrm(k, shape):
        return 0.2 * jax.random.normal(k, shape, dtype=jnp.float32)

    # torch-layout weights: (out, in, ...)
    W1 = nrm(keys[0], (P, inplanes))        # conv1 (1x1x1)
    W2 = nrm(keys[1], (P, P, 3))            # conv2, taps along W
    W3 = nrm(keys[2], (P, P, 3))            # conv3, taps along H
    W4 = nrm(keys[3], (P, P, 3))            # conv4, taps along D
    W5 = nrm(keys[4], (E * P, P))           # conv5 (1x1x1)

    def bn_fold(k, C):
        kg, kb, km, kv = jax.random.split(k, 4)
        gamma = 1.0 + 0.1 * jax.random.normal(kg, (C,), dtype=jnp.float32)
        beta = 0.1 * jax.random.normal(kb, (C,), dtype=jnp.float32)
        mean = 0.1 * jax.random.normal(km, (C,), dtype=jnp.float32)
        var = jax.random.uniform(kv, (C,), minval=0.5, maxval=1.5,
                                 dtype=jnp.float32)
        scale = gamma / jnp.sqrt(var + 1e-5)
        bias = beta - mean * scale
        return scale, bias

    s1, bias1 = bn_fold(keys[5], P)
    s2, bias2 = bn_fold(keys[6], P)
    s3, bias3 = bn_fold(keys[7], P)
    s4, bias4 = bn_fold(keys[8], P)
    s5, bias5 = bn_fold(keys[9], E * P)

    params = {
        "w1": (W1 * s1[:, None]).T,                              # (Cin, P)
        "b1": bias1.reshape(1, P),
        "w2": jnp.transpose(W2 * s2[:, None, None], (2, 1, 0)),  # (3, Pin, Pout)
        "b2": bias2.reshape(1, P),
        "w3": jnp.transpose(W3 * s3[:, None, None], (2, 1, 0)),
        "b3": bias3.reshape(1, P),
        "w4": jnp.transpose(W4 * s4[:, None, None], (2, 1, 0)),
        "b4": bias4.reshape(1, P),
        "w5": (W5 * s5[:, None]).T,                              # (P, E*P)
        "b5": bias5.reshape(1, E * P),
    }
    return params


# ----------------------------------------------------------------------------
if __name__ == "__main__":
    # Small shapes: inplanes=16, planes=4, expansion=4 so the residual add is
    # valid (inplanes == planes * expansion), stride=1, downsample=None.
    N, D, H, W = 2, 8, 8, 8
    inplanes, planes, expansion = 16, 4, 4

    key = jax.random.PRNGKey(0)
    kx, kp = jax.random.split(key)

    # x in kernel layout NDHWC (== PyTorch NCDHW [N, 16, 8, 8, 8] permuted).
    x = jax.random.normal(kx, (N, D, H, W, inplanes), dtype=jnp.float32)
    params = make_params(kp, inplanes, planes, expansion)

    ref = jax.block_until_ready(bottleneck3d_ref(x, params))

    # Tiled path (grid = (N, 2)): exercises D-halos and boundary masking.
    out_tiled = jax.block_until_ready(bottleneck3d_pallas(x, params, d_tile=4))
    # Single-tile path (grid = (N, 1)).
    out_full = jax.block_until_ready(bottleneck3d_pallas(x, params, d_tile=D))

    assert out_tiled.shape == (N, D, H, W, planes * expansion)
    for out in (out_tiled, out_full):
        assert jnp.allclose(out, ref, rtol=1e-3, atol=1e-3), (
            f"max abs err {jnp.max(jnp.abs(out - ref))}")

    print("KERNEL_OK")
</pallas_src>

<mosaic_0001>
module attributes {stable_mosaic.version = 11 : i64} {
  func.func @bottleneck3d_kernel(%arg0: i32, %arg1: i32, %arg2: memref<1x4x8x8x16xf32, #tpu.memory_space<vmem>>, %arg3: memref<1x1x8x8x16xf32, #tpu.memory_space<vmem>>, %arg4: memref<1x1x8x8x16xf32, #tpu.memory_space<vmem>>, %arg5: memref<16x4xf32, #tpu.memory_space<vmem>>, %arg6: memref<1x4xf32, #tpu.memory_space<vmem>>, %arg7: memref<3x4x4xf32, #tpu.memory_space<vmem>>, %arg8: memref<1x4xf32, #tpu.memory_space<vmem>>, %arg9: memref<3x4x4xf32, #tpu.memory_space<vmem>>, %arg10: memref<1x4xf32, #tpu.memory_space<vmem>>, %arg11: memref<3x4x4xf32, #tpu.memory_space<vmem>>, %arg12: memref<1x4xf32, #tpu.memory_space<vmem>>, %arg13: memref<4x16xf32, #tpu.memory_space<vmem>>, %arg14: memref<1x16xf32, #tpu.memory_space<vmem>>, %arg15: memref<1x4x8x8x16xf32, #tpu.memory_space<vmem>>, %arg16: memref<6x8x10x4xf32, #tpu.memory_space<vmem>>) attributes {dimension_semantics = [#tpu.dimension_semantics<parallel>, #tpu.dimension_semantics<parallel>], iteration_bounds = array<i64: 2, 2>, scalar_prefetch = 0 : i64, scratch_operands = 1 : i64, tpu.core_type = #tpu.core_type<tc>, window_params = [{transform_indices = @transform_0, window_bounds = array<i64: 1, 4, 8, 8, 16>}, {transform_indices = @transform_1, window_bounds = array<i64: 1, 1, 8, 8, 16>}, {transform_indices = @transform_2, window_bounds = array<i64: 1, 1, 8, 8, 16>}, {pipeline_mode = #tpu.pipeline_mode<synchronous>, transform_indices = @transform_3, window_bounds = array<i64: 16, 4>}, {pipeline_mode = #tpu.pipeline_mode<synchronous>, transform_indices = @transform_4, window_bounds = array<i64: 1, 4>}, {pipeline_mode = #tpu.pipeline_mode<synchronous>, transform_indices = @transform_5, window_bounds = array<i64: 3, 4, 4>}, {pipeline_mode = #tpu.pipeline_mode<synchronous>, transform_indices = @transform_6, window_bounds = array<i64: 1, 4>}, {pipeline_mode = #tpu.pipeline_mode<synchronous>, transform_indices = @transform_7, window_bounds = array<i64: 3, 4, 4>}, {pipeline_mode = #tpu.pipeline_mode<synchronous>, transform_indices = @transform_8, window_bounds = array<i64: 1, 4>}, {pipeline_mode = #tpu.pipeline_mode<synchronous>, transform_indices = @transform_9, window_bounds = array<i64: 3, 4, 4>}, {pipeline_mode = #tpu.pipeline_mode<synchronous>, transform_indices = @transform_10, window_bounds = array<i64: 1, 4>}, {pipeline_mode = #tpu.pipeline_mode<synchronous>, transform_indices = @transform_11, window_bounds = array<i64: 4, 16>}, {pipeline_mode = #tpu.pipeline_mode<synchronous>, transform_indices = @transform_12, window_bounds = array<i64: 1, 16>}, {transform_indices = @transform_13, window_bounds = array<i64: 1, 4, 8, 8, 16>}]} {
    %c0 = arith.constant 0 : index
    %c0_0 = arith.constant 0 : index
    %c0_1 = arith.constant 0 : index
    %c0_2 = arith.constant 0 : index
    %c0_3 = arith.constant 0 : index
    %0 = vector.load %arg3[%c0, %c0_0, %c0_1, %c0_2, %c0_3] : memref<1x1x8x8x16xf32, #tpu.memory_space<vmem>>, vector<1x1x8x8x16xf32>
    %1 = vector.shape_cast %0 : vector<1x1x8x8x16xf32> to vector<1x8x8x16xf32>
    %c0_4 = arith.constant 0 : index
    %c0_5 = arith.constant 0 : index
    %c0_6 = arith.constant 0 : index
    %c0_7 = arith.constant 0 : index
    %c0_8 = arith.constant 0 : index
    %2 = vector.load %arg2[%c0_4, %c0_5, %c0_6, %c0_7, %c0_8] : memref<1x4x8x8x16xf32, #tpu.memory_space<vmem>>, vector<1x4x8x8x16xf32>
    %3 = vector.shape_cast %2 : vector<1x4x8x8x16xf32> to vector<4x8x8x16xf32>
    %c0_9 = arith.constant 0 : index
    %c0_10 = arith.constant 0 : index
    %c0_11 = arith.constant 0 : index
    %c0_12 = arith.constant 0 : index
    %c0_13 = arith.constant 0 : index
    %4 = vector.load %arg4[%c0_9, %c0_10, %c0_11, %c0_12, %c0_13] : memref<1x1x8x8x16xf32, #tpu.memory_space<vmem>>, vector<1x1x8x8x16xf32>
    %5 = vector.shape_cast %4 : vector<1x1x8x8x16xf32> to vector<1x8x8x16xf32>
    %6 = tpu.concatenate %1, %3, %5 in 0 : vector<1x8x8x16xf32>, vector<4x8x8x16xf32>, vector<1x8x8x16xf32> -> vector<6x8x8x16xf32>
    %7 = vector.shape_cast %6 : vector<6x8x8x16xf32> to vector<384x16xf32>
    %c0_14 = arith.constant 0 : index
    %c0_15 = arith.constant 0 : index
    %8 = vector.load %arg5[%c0_14, %c0_15] : memref<16x4xf32, #tpu.memory_space<vmem>>, vector<16x4xf32>
    %cst = arith.constant dense<0.000000e+00> : vector<384x4xf32>
    %9 = tpu.matmul %7, %8, %cst {dimension_numbers = #tpu.dot_dimension_numbers<[1], [0], [0], [1], [0, 0, 1, 1], [], []>} : vector<384x16xf32>, vector<16x4xf32>, vector<384x4xf32> -> vector<384x4xf32>
    %c0_16 = arith.constant 0 : index
    %c0_17 = arith.constant 0 : index
    %10 = vector.load %arg6[%c0_16, %c0_17] : memref<1x4xf32, #tpu.memory_space<vmem>>, vector<1x4xf32>
    %11 = vector.broadcast %10 : vector<1x4xf32> to vector<384x4xf32>
    %12 = arith.addf %9, %11 : vector<384x4xf32>
    %cst_18 = arith.constant 0.000000e+00 : f32
    %13 = vector.broadcast %cst_18 : f32 to vector<384x4xf32>
    %14 = arith.maximumf %12, %13 : vector<384x4xf32>
    %15 = vector.shape_cast %14 : vector<384x4xf32> to vector<6x8x8x4xf32>
    %cst_19 = arith.constant 0.000000e+00 : f32
    %16 = vector.broadcast %cst_19 : f32 to vector<6x8x1x4xf32>
    %c0_20 = arith.constant 0 : index
    %c0_21 = arith.constant 0 : index
    %c0_22 = arith.constant 0 : index
    %c0_23 = arith.constant 0 : index
    %17 = vector.load %arg16[%c0_20, %c0_21, %c0_22, %c0_23] : memref<6x8x10x4xf32, #tpu.memory_space<vmem>>, vector<6x8x1x4xf32>
    tpu.vector_store %arg16[%c0_20, %c0_21, %c0_22, %c0_23], %16 {strides = array<i32>} : memref<6x8x10x4xf32, #tpu.memory_space<vmem>>, vector<6x8x1x4xf32>,
    %c0_24 = arith.constant 0 : index
    %c0_25 = arith.constant 0 : index
    %c9 = arith.constant 9 : index
    %c0_26 = arith.constant 0 : index
    %18 = vector.load %arg16[%c0_24, %c0_25, %c9, %c0_26] : memref<6x8x10x4xf32, #tpu.memory_space<vmem>>, vector<6x8x1x4xf32>
    tpu.vector_store %arg16[%c0_24, %c0_25, %c9, %c0_26], %16 {strides = array<i32>} : memref<6x8x10x4xf32, #tpu.memory_space<vmem>>, vector<6x8x1x4xf32>,
    %c0_27 = arith.constant 0 : index
    %c0_28 = arith.constant 0 : index
    %c1 = arith.constant 1 : index
    %c0_29 = arith.constant 0 : index
    %19 = vector.load %arg16[%c0_27, %c0_28, %c1, %c0_29] : memref<6x8x10x4xf32, #tpu.memory_space<vmem>>, vector<6x8x8x4xf32>
    tpu.vector_store %arg16[%c0_27, %c0_28, %c1, %c0_29], %15 {strides = array<i32>} : memref<6x8x10x4xf32, #tpu.memory_space<vmem>>, vector<6x8x8x4xf32>,
    %c0_30 = arith.constant 0 : index
    %c0_31 = arith.constant 0 : index
    %c0_32 = arith.constant 0 : index
    %c0_33 = arith.constant 0 : index
    %20 = vector.load %arg16[%c0_30, %c0_31, %c0_32, %c0_33] : memref<6x8x10x4xf32, #tpu.memory_space<vmem>>, vector<6x8x8x4xf32>
    %21 = vector.shape_cast %20 : vector<6x8x8x4xf32> to vector<384x4xf32>
    %c0_34 = arith.constant 0 : index
    %c0_35 = arith.constant 0 : index
    %c0_36 = arith.constant 0 : index
    %22 = vector.load %arg7[%c0_34, %c0_35, %c0_36] : memref<3x4x4xf32, #tpu.memory_space<vmem>>, vector<1x4x4xf32>
    %23 = vector.shape_cast %22 : vector<1x4x4xf32> to vector<4x4xf32>
    %cst_37 = arith.constant dense<0.000000e+00> : vector<384x4xf32>
    %24 = tpu.matmul %21, %23, %cst_37 {dimension_numbers = #tpu.dot_dimension_numbers<[1], [0], [0], [1], [0, 0, 1, 1], [], []>} : vector<384x4xf32>, vector<4x4xf32>, vector<384x4xf32> -> vector<384x4xf32>
    %c0_38 = arith.constant 0 : index
    %c0_39 = arith.constant 0 : index
    %c1_40 = arith.constant 1 : index
    %c0_41 = arith.constant 0 : index
    %25 = vector.load %arg16[%c0_38, %c0_39, %c1_40, %c0_41] : memref<6x8x10x4xf32, #tpu.memory_space<vmem>>, vector<6x8x8x4xf32>
    %26 = vector.shape_cast %25 : vector<6x8x8x4xf32> to vector<384x4xf32>
    %c1_42 = arith.constant 1 : index
    %c0_43 = arith.constant 0 : index
    %c0_44 = arith.constant 0 : index
    %27 = vector.load %arg7[%c1_42, %c0_43, %c0_44] : memref<3x4x4xf32, #tpu.memory_space<vmem>>, vector<1x4x4xf32>
    %28 = vector.shape_cast %27 : vector<1x4x4xf32> to vector<4x4xf32>
    %cst_45 = arith.constant dense<0.000000e+00> : vector<384x4xf32>
    %29 = tpu.matmul %26, %28, %cst_45 {dimension_numbers = #tpu.dot_dimension_numbers<[1], [0], [0], [1], [0, 0, 1, 1], [], []>} : vector<384x4xf32>, vector<4x4xf32>, vector<384x4xf32> -> vector<384x4xf32>
    %30 = arith.addf %24, %29 : vector<384x4xf32>
    %c0_46 = arith.constant 0 : index
    %c0_47 = arith.constant 0 : index
    %c2 = arith.constant 2 : index
    %c0_48 = arith.constant 0 : index
    %31 = vector.load %arg16[%c0_46, %c0_47, %c2, %c0_48] : memref<6x8x10x4xf32, #tpu.memory_space<vmem>>, vector<6x8x8x4xf32>
    %32 = vector.shape_cast %31 : vector<6x8x8x4xf32> to vector<384x4xf32>
    %c2_49 = arith.constant 2 : index
    %c0_50 = arith.constant 0 : index
    %c0_51 = arith.constant 0 : index
    %33 = vector.load %arg7[%c2_49, %c0_50, %c0_51] : memref<3x4x4xf32, #tpu.memory_space<vmem>>, vector<1x4x4xf32>
    %34 = vector.shape_cast %33 : vector<1x4x4xf32> to vector<4x4xf32>
    %cst_52 = arith.constant dense<0.000000e+00> : vector<384x4xf32>
    %35 = tpu.matmul %32, %34, %cst_52 {dimension_numbers = #tpu.dot_dimension_numbers<[1], [0], [0], [1], [0, 0, 1, 1], [], []>} : vector<384x4xf32>, vector<4x4xf32>, vector<384x4xf32> -> vector<384x4xf32>
    %36 = arith.addf %30, %35 : vector<384x4xf32>
    %c0_53 = arith.constant 0 : index
    %c0_54 = arith.constant 0 : index
    %37 = vector.load %arg8[%c0_53, %c0_54] : memref<1x4xf32, #tpu.memory_space<vmem>>, vector<1x4xf32>
    %38 = vector.broadcast %37 : vector<1x4xf32> to vector<384x4xf32>
    %39 = arith.addf %36, %38 : vector<384x4xf32>
    %40 = vector.shape_cast %39 : vector<384x4xf32> to vector<6x8x8x4xf32>
    %cst_55 = arith.constant 0.000000e+00 : f32
    %41 = vector.broadcast %cst_55 : f32 to vector<6x8x8x4xf32>
    %42 = arith.maximumf %40, %41 : vector<6x8x8x4xf32>
    %cst_56 = arith.constant 0.000000e+00 : f32
    %43 = vector.broadcast %cst_56 : f32 to vector<6x1x8x4xf32>
    %44 = vector.extract_strided_slice %42 {offsets = [0, 0, 0, 0], sizes = [6, 7, 8, 4], strides = [1, 1, 1, 1]} : vector<6x8x8x4xf32> to vector<6x7x8x4xf32>
    %45 = tpu.concatenate %43, %44 in 1 : vector<6x1x8x4xf32>, vector<6x7x8x4xf32> -> vector<6x8x8x4xf32>
    %46 = vector.extract_strided_slice %42 {offsets = [0, 1, 0, 0], sizes = [6, 7, 8, 4], strides = [1, 1, 1, 1]} : vector<6x8x8x4xf32> to vector<6x7x8x4xf32>
    %47 = tpu.concatenate %46, %43 in 1 : vector<6x7x8x4xf32>, vector<6x1x8x4xf32> -> vector<6x8x8x4xf32>
    %48 = vector.shape_cast %45 : vector<6x8x8x4xf32> to vector<384x4xf32>
    %c0_57 = arith.constant 0 : index
    %c0_58 = arith.constant 0 : index
    %c0_59 = arith.constant 0 : index
    %49 = vector.load %arg9[%c0_57, %c0_58, %c0_59] : memref<3x4x4xf32, #tpu.memory_space<vmem>>, vector<1x4x4xf32>
    %50 = vector.shape_cast %49 : vector<1x4x4xf32> to vector<4x4xf32>
    %cst_60 = arith.constant dense<0.000000e+00> : vector<384x4xf32>
    %51 = tpu.matmul %48, %50, %cst_60 {dimension_numbers = #tpu.dot_dimension_numbers<[1], [0], [0], [1], [0, 0, 1, 1], [], []>} : vector<384x4xf32>, vector<4x4xf32>, vector<384x4xf32> -> vector<384x4xf32>
    %52 = vector.shape_cast %42 : vector<6x8x8x4xf32> to vector<384x4xf32>
    %c1_61 = arith.constant 1 : index
    %c0_62 = arith.constant 0 : index
    %c0_63 = arith.constant 0 : index
    %53 = vector.load %arg9[%c1_61, %c0_62, %c0_63] : memref<3x4x4xf32, #tpu.memory_space<vmem>>, vector<1x4x4xf32>
    %54 = vector.shape_cast %53 : vector<1x4x4xf32> to vector<4x4xf32>
    %cst_64 = arith.constant dense<0.000000e+00> : vector<384x4xf32>
    %55 = tpu.matmul %52, %54, %cst_64 {dimension_numbers = #tpu.dot_dimension_numbers<[1], [0], [0], [1], [0, 0, 1, 1], [], []>} : vector<384x4xf32>, vector<4x4xf32>, vector<384x4xf32> -> vector<384x4xf32>
    %56 = arith.addf %51, %55 : vector<384x4xf32>
    %57 = vector.shape_cast %47 : vector<6x8x8x4xf32> to vector<384x4xf32>
    %c2_65 = arith.constant 2 : index
    %c0_66 = arith.constant 0 : index
    %c0_67 = arith.constant 0 : index
    %58 = vector.load %arg9[%c2_65, %c0_66, %c0_67] : memref<3x4x4xf32, #tpu.memory_space<vmem>>, vector<1x4x4xf32>
    %59 = vector.shape_cast %58 : vector<1x4x4xf32> to vector<4x4xf32>
    %cst_68 = arith.constant dense<0.000000e+00> : vector<384x4xf32>
    %60 = tpu.matmul %57, %59, %cst_68 {dimension_numbers = #tpu.dot_dimension_numbers<[1], [0], [0], [1], [0, 0, 1, 1], [], []>} : vector<384x4xf32>, vector<4x4xf32>, vector<384x4xf32> -> vector<384x4xf32>
    %61 = arith.addf %56, %60 : vector<384x4xf32>
    %c0_69 = arith.constant 0 : index
    %c0_70 = arith.constant 0 : index
    %62 = vector.load %arg10[%c0_69, %c0_70] : memref<1x4xf32, #tpu.memory_space<vmem>>, vector<1x4xf32>
    %63 = vector.broadcast %62 : vector<1x4xf32> to vector<384x4xf32>
    %64 = arith.addf %61, %63 : vector<384x4xf32>
    %65 = vector.shape_cast %64 : vector<384x4xf32> to vector<6x8x8x4xf32>
    %66 = arith.addf %65, %40 : vector<6x8x8x4xf32>
    %cst_71 = arith.constant 0.000000e+00 : f32
    %67 = vector.broadcast %cst_71 : f32 to vector<6x8x8x4xf32>
    %68 = arith.maximumf %66, %67 : vector<6x8x8x4xf32>
    %69 = vector.extract_strided_slice %68 {offsets = [0, 0, 0, 0], sizes = [1, 8, 8, 4], strides = [1, 1, 1, 1]} : vector<6x8x8x4xf32> to vector<1x8x8x4xf32>
    %c0_i32 = arith.constant 0 : i32
    %70 = arith.cmpi sgt, %arg1, %c0_i32 : i32
    %71 = arith.extui %70 : i1 to i32
    %72 = arith.sitofp %71 : i32 to f32
    %73 = vector.broadcast %72 : f32 to vector<1x8x8x4xf32>
    %74 = arith.mulf %69, %73 : vector<1x8x8x4xf32>
    %75 = vector.extract_strided_slice %68 {offsets = [5, 0, 0, 0], sizes = [1, 8, 8, 4], strides = [1, 1, 1, 1]} : vector<6x8x8x4xf32> to vector<1x8x8x4xf32>
    %c1_i32 = arith.constant 1 : i32
    %76 = arith.cmpi slt, %arg1, %c1_i32 : i32
    %77 = arith.extui %76 : i1 to i32
    %78 = arith.sitofp %77 : i32 to f32
    %79 = vector.broadcast %78 : f32 to vector<1x8x8x4xf32>
    %80 = arith.mulf %75, %79 : vector<1x8x8x4xf32>
    %81 = vector.extract_strided_slice %68 {offsets = [1, 0, 0, 0], sizes = [3, 8, 8, 4], strides = [1, 1, 1, 1]} : vector<6x8x8x4xf32> to vector<3x8x8x4xf32>
    %82 = tpu.concatenate %74, %81 in 0 : vector<1x8x8x4xf32>, vector<3x8x8x4xf32> -> vector<4x8x8x4xf32>
    %83 = vector.extract_strided_slice %68 {offsets = [2, 0, 0, 0], sizes = [3, 8, 8, 4], strides = [1, 1, 1, 1]} : vector<6x8x8x4xf32> to vector<3x8x8x4xf32>
    %84 = tpu.concatenate %83, %80 in 0 : vector<3x8x8x4xf32>, vector<1x8x8x4xf32> -> vector<4x8x8x4xf32>
    %85 = vector.extract_strided_slice %68 {offsets = [1, 0, 0, 0], sizes = [4, 8, 8, 4], strides = [1, 1, 1, 1]} : vector<6x8x8x4xf32> to vector<4x8x8x4xf32>
    %86 = vector.shape_cast %82 : vector<4x8x8x4xf32> to vector<256x4xf32>
    %c0_72 = arith.constant 0 : index
    %c0_73 = arith.constant 0 : index
    %c0_74 = arith.constant 0 : index
    %87 = vector.load %arg11[%c0_72, %c0_73, %c0_74] : memref<3x4x4xf32, #tpu.memory_space<vmem>>, vector<1x4x4xf32>
    %88 = vector.shape_cast %87 : vector<1x4x4xf32> to vector<4x4xf32>
    %cst_75 = arith.constant dense<0.000000e+00> : vector<256x4xf32>
    %89 = tpu.matmul %86, %88, %cst_75 {dimension_numbers = #tpu.dot_dimension_numbers<[1], [0], [0], [1], [0, 0, 1, 1], [], []>} : vector<256x4xf32>, vector<4x4xf32>, vector<256x4xf32> -> vector<256x4xf32>
    %90 = vector.shape_cast %85 : vector<4x8x8x4xf32> to vector<256x4xf32>
    %c1_76 = arith.constant 1 : index
    %c0_77 = arith.constant 0 : index
    %c0_78 = arith.constant 0 : index
    %91 = vector.load %arg11[%c1_76, %c0_77, %c0_78] : memref<3x4x4xf32, #tpu.memory_space<vmem>>, vector<1x4x4xf32>
    %92 = vector.shape_cast %91 : vector<1x4x4xf32> to vector<4x4xf32>
    %cst_79 = arith.constant dense<0.000000e+00> : vector<256x4xf32>
    %93 = tpu.matmul %90, %92, %cst_79 {dimension_numbers = #tpu.dot_dimension_numbers<[1], [0], [0], [1], [0, 0, 1, 1], [], []>} : vector<256x4xf32>, vector<4x4xf32>, vector<256x4xf32> -> vector<256x4xf32>
    %94 = arith.addf %89, %93 : vector<256x4xf32>
    %95 = vector.shape_cast %84 : vector<4x8x8x4xf32> to vector<256x4xf32>
    %c2_80 = arith.constant 2 : index
    %c0_81 = arith.constant 0 : index
    %c0_82 = arith.constant 0 : index
    %96 = vector.load %arg11[%c2_80, %c0_81, %c0_82] : memref<3x4x4xf32, #tpu.memory_space<vmem>>, vector<1x4x4xf32>
    %97 = vector.shape_cast %96 : vector<1x4x4xf32> to vector<4x4xf32>
    %cst_83 = arith.constant dense<0.000000e+00> : vector<256x4xf32>
    %98 = tpu.matmul %95, %97, %cst_83 {dimension_numbers = #tpu.dot_dimension_numbers<[1], [0], [0], [1], [0, 0, 1, 1], [], []>} : vector<256x4xf32>, vector<4x4xf32>, vector<256x4xf32> -> vector<256x4xf32>
    %99 = arith.addf %94, %98 : vector<256x4xf32>
    %c0_84 = arith.constant 0 : index
    %c0_85 = arith.constant 0 : index
    %100 = vector.load %arg12[%c0_84, %c0_85] : memref<1x4xf32, #tpu.memory_space<vmem>>, vector<1x4xf32>
    %101 = vector.broadcast %100 : vector<1x4xf32> to vector<256x4xf32>
    %102 = arith.addf %99, %101 : vector<256x4xf32>
    %103 = vector.shape_cast %102 : vector<256x4xf32> to vector<4x8x8x4xf32>
    %104 = vector.extract_strided_slice %40 {offsets = [1, 0, 0, 0], sizes = [4, 8, 8, 4], strides = [1, 1, 1, 1]} : vector<6x8x8x4xf32> to vector<4x8x8x4xf32>
    %105 = arith.addf %103, %104 : vector<4x8x8x4xf32>
    %106 = vector.extract_strided_slice %66 {offsets = [1, 0, 0, 0], sizes = [4, 8, 8, 4], strides = [1, 1, 1, 1]} : vector<6x8x8x4xf32> to vector<4x8x8x4xf32>
    %107 = arith.addf %105, %106 : vector<4x8x8x4xf32>
    %cst_86 = arith.constant 0.000000e+00 : f32
    %108 = vector.broadcast %cst_86 : f32 to vector<4x8x8x4xf32>
    %109 = arith.maximumf %107, %108 : vector<4x8x8x4xf32>
    %110 = vector.shape_cast %109 : vector<4x8x8x4xf32> to vector<256x4xf32>
    %c0_87 = arith.constant 0 : index
    %c0_88 = arith.constant 0 : index
    %111 = vector.load %arg13[%c0_87, %c0_88] : memref<4x16xf32, #tpu.memory_space<vmem>>, vector<4x16xf32>
    %cst_89 = arith.constant dense<0.000000e+00> : vector<256x16xf32>
    %112 = tpu.matmul %110, %111, %cst_89 {dimension_numbers = #tpu.dot_dimension_numbers<[1], [0], [0], [1], [0, 0, 1, 1], [], []>} : vector<256x4xf32>, vector<4x16xf32>, vector<256x16xf32> -> vector<256x16xf32>
    %c0_90 = arith.constant 0 : index
    %c0_91 = arith.constant 0 : index
    %113 = vector.load %arg14[%c0_90, %c0_91] : memref<1x16xf32, #tpu.memory_space<vmem>>, vector<1x16xf32>
    %114 = vector.broadcast %113 : vector<1x16xf32> to vector<256x16xf32>
    %115 = arith.addf %112, %114 : vector<256x16xf32>
    %c0_92 = arith.constant 0 : index
    %c0_93 = arith.constant 0 : index
    %c0_94 = arith.constant 0 : index
    %c0_95 = arith.constant 0 : index
    %c0_96 = arith.constant 0 : index
    %116 = vector.load %arg2[%c0_92, %c0_93, %c0_94, %c0_95, %c0_96] : memref<1x4x8x8x16xf32, #tpu.memory_space<vmem>>, vector<1x4x8x8x16xf32>
    %117 = vector.shape_cast %116 : vector<1x4x8x8x16xf32> to vector<4x8x8x16xf32>
    %118 = vector.shape_cast %117 : vector<4x8x8x16xf32> to vector<256x16xf32>
    %119 = arith.addf %115, %118 : vector<256x16xf32>
    %cst_97 = arith.constant 0.000000e+00 : f32
    %120 = vector.broadcast %cst_97 : f32 to vector<256x16xf32>
    %121 = arith.maximumf %119, %120 : vector<256x16xf32>
    %122 = vector.shape_cast %121 : vector<256x16xf32> to vector<4x8x8x16xf32>
    %c0_98 = arith.constant 0 : index
    %c0_99 = arith.constant 0 : index
    %c0_100 = arith.constant 0 : index
    %c0_101 = arith.constant 0 : index
    %c0_102 = arith.constant 0 : index
    %123 = vector.load %arg15[%c0_98, %c0_99, %c0_100, %c0_101, %c0_102] : memref<1x4x8x8x16xf32, #tpu.memory_space<vmem>>, vector<1x4x8x8x16xf32>
    %124 = vector.shape_cast %123 : vector<1x4x8x8x16xf32> to vector<4x8x8x16xf32>
    %125 = vector.shape_cast %122 : vector<4x8x8x16xf32> to vector<1x4x8x8x16xf32>
    tpu.vector_store %arg15[%c0_98, %c0_99, %c0_100, %c0_101, %c0_102], %125 {strides = array<i32>} : memref<1x4x8x8x16xf32, #tpu.memory_space<vmem>>, vector<1x4x8x8x16xf32>,
    return
  }
  func.func @transform_0(%arg0: i32, %arg1: i32) -> (i32, i32, i32, i32, i32) {
    %c0_i32 = arith.constant 0 : i32
    %c0_i32_0 = arith.constant 0 : i32
    %c0_i32_1 = arith.constant 0 : i32
    %c0_i32_2 = arith.constant 0 : i32
    return %arg0, %arg1, %c0_i32, %c0_i32_0, %c0_i32_1 : i32, i32, i32, i32, i32
  }
  func.func @transform_1(%arg0: i32, %arg1: i32) -> (i32, i32, i32, i32, i32) {
    %c0_i32 = arith.constant 0 : i32
    %c0_i32_0 = arith.constant 0 : i32
    %c0_i32_1 = arith.constant 0 : i32
    %c0_i32_2 = arith.constant 0 : i32
    return %arg0, %arg1, %c0_i32, %c0_i32_0, %c0_i32_1 : i32, i32, i32, i32, i32
  }
  func.func @transform_2(%arg0: i32, %arg1: i32) -> (i32, i32, i32, i32, i32) {
    %c0_i32 = arith.constant 0 : i32
    %c0_i32_0 = arith.constant 0 : i32
    %c0_i32_1 = arith.constant 0 : i32
    %c0_i32_2 = arith.constant 0 : i32
    return %arg0, %arg1, %c0_i32, %c0_i32_0, %c0_i32_1 : i32, i32, i32, i32, i32
  }
  func.func @transform_3(%arg0: i32, %arg1: i32) -> (i32, i32) {
    %c0_i32 = arith.constant 0 : i32
    %c0_i32_0 = arith.constant 0 : i32
    %c0_i32_1 = arith.constant 0 : i32
    return %c0_i32, %c0_i32_0 : i32, i32
  }
  func.func @transform_4(%arg0: i32, %arg1: i32) -> (i32, i32) {
    %c0_i32 = arith.constant 0 : i32
    %c0_i32_0 = arith.constant 0 : i32
    %c0_i32_1 = arith.constant 0 : i32
    return %c0_i32, %c0_i32_0 : i32, i32
  }
  func.func @transform_5(%arg0: i32, %arg1: i32) -> (i32, i32, i32) {
    %c0_i32 = arith.constant 0 : i32
    %c0_i32_0 = arith.constant 0 : i32
    %c0_i32_1 = arith.constant 0 : i32
    %c0_i32_2 = arith.constant 0 : i32
    return %c0_i32, %c0_i32_0, %c0_i32_1 : i32, i32, i32
  }
  func.func @transform_6(%arg0: i32, %arg1: i32) -> (i32, i32) {
    %c0_i32 = arith.constant 0 : i32
    %c0_i32_0 = arith.constant 0 : i32
    %c0_i32_1 = arith.constant 0 : i32
    return %c0_i32, %c0_i32_0 : i32, i32
  }
  func.func @transform_7(%arg0: i32, %arg1: i32) -> (i32, i32, i32) {
    %c0_i32 = arith.constant 0 : i32
    %c0_i32_0 = arith.constant 0 : i32
    %c0_i32_1 = arith.constant 0 : i32
    %c0_i32_2 = arith.constant 0 : i32
    return %c0_i32, %c0_i32_0, %c0_i32_1 : i32, i32, i32
  }
  func.func @transform_8(%arg0: i32, %arg1: i32) -> (i32, i32) {
    %c0_i32 = arith.constant 0 : i32
    %c0_i32_0 = arith.constant 0 : i32
    %c0_i32_1 = arith.constant 0 : i32
    return %c0_i32, %c0_i32_0 : i32, i32
  }
  func.func @transform_9(%arg0: i32, %arg1: i32) -> (i32, i32, i32) {
    %c0_i32 = arith.constant 0 : i32
    %c0_i32_0 = arith.constant 0 : i32
    %c0_i32_1 = arith.constant 0 : i32
    %c0_i32_2 = arith.constant 0 : i32
    return %c0_i32, %c0_i32_0, %c0_i32_1 : i32, i32, i32
  }
  func.func @transform_10(%arg0: i32, %arg1: i32) -> (i32, i32) {
    %c0_i32 = arith.constant 0 : i32
    %c0_i32_0 = arith.constant 0 : i32
    %c0_i32_1 = arith.constant 0 : i32
    return %c0_i32, %c0_i32_0 : i32, i32
  }
  func.func @transform_11(%arg0: i32, %arg1: i32) -> (i32, i32) {
    %c0_i32 = arith.constant 0 : i32
    %c0_i32_0 = arith.constant 0 : i32
    %c0_i32_1 = arith.constant 0 : i32
    return %c0_i32, %c0_i32_0 : i32, i32
  }
  func.func @transform_12(%arg0: i32, %arg1: i32) -> (i32, i32) {
    %c0_i32 = arith.constant 0 : i32
    %c0_i32_0 = arith.constant 0 : i32
    %c0_i32_1 = arith.constant 0 : i32
    return %c0_i32, %c0_i32_0 : i32, i32
  }
  func.func @transform_13(%arg0: i32, %arg1: i32) -> (i32, i32, i32, i32, i32) {
    %c0_i32 = arith.constant 0 : i32
    %c0_i32_0 = arith.constant 0 : i32
    %c0_i32_1 = arith.constant 0 : i32
    %c0_i32_2 = arith.constant 0 : i32
    return %arg0, %arg1, %c0_i32, %c0_i32_0, %c0_i32_1 : i32, i32, i32, i32, i32
  }
}

</mosaic_0001>

<llo_original>
// kernel: tpu_custom_call.1
$region0: #{tpu_custom_call.1}
  #allocation0 [shape = 'u32[]', space=smem, size = 0x4, offset = 0x4, fixed_abs, tag = 'smem constant byte address 0x4 - core index']
  #allocation1 [shape = 'u32[144,128]{1,0:T(1,128)}', space=vmem, size = 0x12000, scoped, tag = 'internal scratch']
  #allocation2 [shape = 'f32[6,8,10,4]{3,2,1,0:T(8,128)}', space=vmem, size = 0x60000, scoped, tag = 'scratch operand']
  %s0 = inlined_call_operand.hbm [shape: f32[2,8,8,8,16], index: 0, kind: input, shape index: {}]
  %s1 = inlined_call_operand.hbm [shape: f32[2,2,8,8,16], index: 1, kind: input, shape index: {}]
  %s2 = inlined_call_operand.hbm [shape: f32[2,2,8,8,16], index: 2, kind: input, shape index: {}]
  %s3 = inlined_call_operand.vmem [shape: f32[16,4], index: 3, kind: input, shape index: {}]
  %s4 = inlined_call_operand.hbm [shape: f32[1,4], index: 4, kind: input, shape index: {}]
  %s5 = inlined_call_operand.vmem [shape: f32[3,4,4], index: 5, kind: input, shape index: {}]
  %s6 = inlined_call_operand.hbm [shape: f32[1,4], index: 6, kind: input, shape index: {}]
  %s7 = inlined_call_operand.vmem [shape: f32[3,4,4], index: 7, kind: input, shape index: {}]
  %s8 = inlined_call_operand.hbm [shape: f32[1,4], index: 8, kind: input, shape index: {}]
  %s9 = inlined_call_operand.vmem [shape: f32[3,4,4], index: 9, kind: input, shape index: {}]
  %s10 = inlined_call_operand.hbm [shape: f32[1,4], index: 10, kind: input, shape index: {}]
  %s11 = inlined_call_operand.vmem [shape: f32[4,16], index: 11, kind: input, shape index: {}]
  %s12 = inlined_call_operand.vmem [shape: f32[1,16], index: 12, kind: input, shape index: {}]
  %s13 = inlined_call_operand.hbm [shape: f32[2,8,8,8,16], index: 13, kind: output, shape index: {}]
  %s14 = sld [smem:[#allocation0]]
  $region113: #{tpu_custom_call.1} parent=0
    _
  %s16 = ssub.s32 1, %s14
  %s17 = scalar_select 0, %s16, %s14
  $region1: #{tpu_custom_call.1} parent=0
    #allocation3 [shape = 'u8[262144]{0}', space=vmem, size = 0x40000, scoped, tag = 'input window, operand 0']
    #allocation4 [shape = 's32[2]{0}', space=sflag, size = 0x8, scoped, tag = 'scoped memory for tpu_custom_call.1']
    #allocation5 [shape = 's32[2]{0}', space=sflag, size = 0x8, scoped, tag = 'scoped memory for tpu_custom_call.1']
    #allocation6 [shape = 'u8[65536]{0}', space=vmem, size = 0x10000, scoped, tag = 'input window, operand 1']
    #allocation7 [shape = 's32[2]{0}', space=sflag, size = 0x8, scoped, tag = 'scoped memory for tpu_custom_call.1']
    #allocation8 [shape = 'u8[65536]{0}', space=vmem, size = 0x10000, scoped, tag = 'input window, operand 2']
    #allocation9 [shape = 'u8[512]{0}', space=vmem, size = 0x400, scoped, tag = 'input window, operand 4, single buffered']
    #allocation10 [shape = 's32[1]{0}', space=sflag, size = 0x4, scoped, tag = 'scoped memory for tpu_custom_call.1']
    #allocation11 [shape = 'u8[512]{0}', space=vmem, size = 0x400, scoped, tag = 'input window, operand 6, single buffered']
    #allocation12 [shape = 'u8[512]{0}', space=vmem, size = 0x400, scoped, tag = 'input window, operand 8, single buffered']
    #allocation13 [shape = 's32[1]{0}', space=sflag, size = 0x4, scoped, tag = 'scoped memory for tpu_custom_call.1']
    #allocation14 [shape = 'u8[512]{0}', space=vmem, size = 0x400, scoped, tag = 'input window, operand 10, single buffered']
    #allocation15 [shape = 'u8[262144]{0}', space=vmem, size = 0x40000, scoped, tag = 'output window, operand 0']
    %18 = vsyncpa [#allocation4], 0
    %s19 = scalar_lea.sflag [#allocation4], 1
    %20 = vsyncpa %s19, 0
    %21 = vsyncpa [#allocation7], 0
    %s22 = scalar_lea.sflag [#allocation7], 1
    %23 = vsyncpa %s22, 0
    %24 = vsyncpa [#allocation10], 0
    %25 = vsyncpa [#allocation13], 0
    %26 = vsyncpa [#allocation5], 0
    %s27 = scalar_lea.sflag [#allocation5], 1
    %28 = vsyncpa %s27, 0
    loop: start=0, step=1, limit=6
    $region2: #{tpu_custom_call.1} parent=1 // loop_pre_header
      _
    $region3: #{tpu_custom_call.1} parent=1 // loop_header
      %s30 = sphi 0, %s34
      %p31 = scmp.ge.s32.totalorder %s30, 6
      %s37 = sphi 0, %s49
      %s38 = sphi 0, %s45
      %s39 = sphi 0, %s37
      %s40 = sphi 0, %s38
      %s41 = sphi 0, %s39
      %s42 = sphi 0, %s40
      %s54 = sphi 0, %s56
      %s57 = sphi 0, %s54
      %s58 = sphi 0, %s57
      %s74 = sphi 0, %s58
      %s82 = sphi 0, %s84
      %s85 = sphi 0, %s82
      %s86 = sphi 0, %s85
      %s102 = sphi 0, %s86
      %s110 = sphi 0, %s112
      %s113 = sphi 0, %s110
      %s114 = sphi 0, %s113
      %s130 = sphi 0, %s114
      %s134 = sphi 0, %s134
      %s136 = sphi 0, %s134
      %s137 = sphi 0, %s136
      %s151 = sphi 0, %s137
      %s155 = sphi 0, %s155
      %s157 = sphi 0, %s155
      %s158 = sphi 0, %s157
      %s172 = sphi 0, %s158
      %s176 = sphi 0, %s176
      %s178 = sphi 0, %s176
      %s179 = sphi 0, %s178
      %s193 = sphi 0, %s179
      %s197 = sphi 0, %s197
      %s199 = sphi 0, %s197
      %s200 = sphi 0, %s199
      %s214 = sphi 0, %s200
      %s218 = sphi 0, %s218
      %s220 = sphi 0, %s218
      %s221 = sphi 0, %s220
      %s235 = sphi 0, %s221
      %s239 = sphi 0, %s239
      %s241 = sphi 0, %s239
      %s242 = sphi 0, %s241
      %s256 = sphi 0, %s242
      %s260 = sphi 0, %s260
      %s262 = sphi 0, %s260
      %s263 = sphi 0, %s262
      %s277 = sphi 0, %s263
      %s281 = sphi 0, %s281
      %s283 = sphi 0, %s281
      %s284 = sphi 0, %s283
      %s298 = sphi 0, %s284
      %s302 = sphi 0, %s302
      %s304 = sphi 0, %s302
      %s305 = sphi 0, %s304
      %s319 = sphi 0, %s305
      %s323 = sphi 0, %s323
      %s325 = sphi 0, %s323
      %s326 = sphi 0, %s325
      %s340 = sphi 0, %s326
      %s348 = sphi 0, %s350
      %s351 = sphi 0, %s348
      %s352 = sphi 0, %s351
      %s368 = sphi 0, %s352
    $region4: #{tpu_custom_call.1} parent=1 // loop_header_branch
      %33 = sbr.rel (%p31) target = $region8
    $region5: #{tpu_custom_call.1} parent=1 // loop_body
      %s35 = ssub.s32 %s30, 1
      %s36 = ssub.s32 %s30, 2
      %s43 = sadd.s32 1, %s38
      %p44 = scmp.ge.s32.totalorder %s43, 2
      %s45 = scalar_select %p44, 0, %s43
      %s46 = sadd.s32 1, %s37
      %s47 = scalar_select %p44, %s46, %s37
      %p48 = scmp.ge.s32.totalorder %s47, 2
      %s49 = scalar_select %p48, 0, %s47
      %s50 = ssub.s32 %s37, %s49
      %s51 = ssub.s32 %s38, %s45
      %s52 = sor.u32 %s50, %s51
      %p53 = scmp.eq.s32.totalorder %s52, 0
      %s55 = sadd.s32 %s54, 1
      %s56 = scalar_select %p53, %s54, %s55
      %p59 = pneg %p53
      %p60 = scmp.eq.s32.totalorder %s30, 3
      %p61 = por %p59, %p60
      %p62 = scmp.ne.s32.totalorder %s54, %s57
      %p63 = scmp.eq.s32.totalorder %s30, 0
      %p64 = por %p62, %p63
      %p65 = scmp.ne.s32.totalorder %s54, %s57
      %p66 = scmp.eq.s32.totalorder %s35, 3
      %p67 = por %p65, %p66
      %p68 = scmp.ne.s32.totalorder %s57, %s58
      %p69 = scmp.eq.s32.totalorder %s35, 0
      %p70 = por %p68, %p69
      %p71 = scmp.ne.s32.totalorder %s57, %s58
      %p72 = scmp.eq.s32.totalorder %s36, 3
      %p73 = por %p71, %p72
      %p75 = scmp.ne.s32.totalorder %s58, %s74
      %p76 = scmp.eq.s32.totalorder %s36, 0
      %p77 = por %p75, %p76
      %s78 = ssub.s32 %s37, %s49
      %s79 = ssub.s32 %s38, %s45
      %s80 = sor.u32 %s78, %s79
      %p81 = scmp.eq.s32.totalorder %s80, 0
      %s83 = sadd.s32 %s82, 1
      %s84 = scalar_select %p81, %s82, %s83
      %p87 = pneg %p81
      %p88 = scmp.eq.s32.totalorder %s30, 3
      %p89 = por %p87, %p88
      %p90 = scmp.ne.s32.totalorder %s82, %s85
      %p91 = scmp.eq.s32.totalorder %s30, 0
      %p92 = por %p90, %p91
      %p93 = scmp.ne.s32.totalorder %s82, %s85
      %p94 = scmp.eq.s32.totalorder %s35, 3
      %p95 = por %p93, %p94
      %p96 = scmp.ne.s32.totalorder %s85, %s86
      %p97 = scmp.eq.s32.totalorder %s35, 0
      %p98 = por %p96, %p97
      %p99 = scmp.ne.s32.totalorder %s85, %s86
      %p100 = scmp.eq.s32.totalorder %s36, 3
      %p101 = por %p99, %p100
      %p103 = scmp.ne.s32.totalorder %s86, %s102
      %p104 = scmp.eq.s32.totalorder %s36, 0
      %p105 = por %p103, %p104
      %s106 = ssub.s32 %s37, %s49
      %s107 = ssub.s32 %s38, %s45
      %s108 = sor.u32 %s106, %s107
      %p109 = scmp.eq.s32.totalorder %s108, 0
      %s111 = sadd.s32 %s110, 1
      %s112 = scalar_select %p109, %s110, %s111
      %p115 = pneg %p109
      %p116 = scmp.eq.s32.totalorder %s30, 3
      %p117 = por %p115, %p116
      %p118 = scmp.ne.s32.totalorder %s110, %s113
      %p119 = scmp.eq.s32.totalorder %s30, 0
      %p120 = por %p118, %p119
      %p121 = scmp.ne.s32.totalorder %s110, %s113
      %p122 = scmp.eq.s32.totalorder %s35, 3
      %p123 = por %p121, %p122
      %p124 = scmp.ne.s32.totalorder %s113, %s114
      %p125 = scmp.eq.s32.totalorder %s35, 0
      %p126 = por %p124, %p125
      %p127 = scmp.ne.s32.totalorder %s113, %s114
      %p128 = scmp.eq.s32.totalorder %s36, 3
      %p129 = por %p127, %p128
      %p131 = scmp.ne.s32.totalorder %s114, %s130
      %p132 = scmp.eq.s32.totalorder %s36, 0
      %p133 = por %p131, %p132
      %s135 = sadd.s32 %s134, 1
      %p138 = scmp.eq.s32.totalorder %s30, 3
      %p139 = scmp.ne.s32.totalorder %s134, %s136
      %p140 = scmp.eq.s32.totalorder %s30, 0
      %p141 = por %p139, %p140
      %p142 = scmp.ne.s32.totalorder %s134, %s136
      %p143 = scmp.eq.s32.totalorder %s35, 3
      %p144 = por %p142, %p143
      %p145 = scmp.ne.s32.totalorder %s136, %s137
      %p146 = scmp.eq.s32.totalorder %s35, 0
      %p147 = por %p145, %p146
      %p148 = scmp.ne.s32.totalorder %s136, %s137
      %p149 = scmp.eq.s32.totalorder %s36, 3
      %p150 = por %p148, %p149
      %p152 = scmp.ne.s32.totalorder %s137, %s151
      %p153 = scmp.eq.s32.totalorder %s36, 0
      %p154 = por %p152, %p153
      %s156 = sadd.s32 %s155, 1
      %p159 = scmp.eq.s32.totalorder %s30, 3
      %p160 = scmp.ne.s32.totalorder %s155, %s157
      %p161 = scmp.eq.s32.totalorder %s30, 0
      %p162 = por %p160, %p161
      %p163 = scmp.ne.s32.totalorder %s155, %s157
      %p164 = scmp.eq.s32.totalorder %s35, 3
      %p165 = por %p163, %p164
      %p166 = scmp.ne.s32.totalorder %s157, %s158
      %p167 = scmp.eq.s32.totalorder %s35, 0
      %p168 = por %p166, %p167
      %p169 = scmp.ne.s32.totalorder %s157, %s158
      %p170 = scmp.eq.s32.totalorder %s36, 3
      %p171 = por %p169, %p170
      %p173 = scmp.ne.s32.totalorder %s158, %s172
      %p174 = scmp.eq.s32.totalorder %s36, 0
      %p175 = por %p173, %p174
      %s177 = sadd.s32 %s176, 1
      %p180 = scmp.eq.s32.totalorder %s30, 3
      %p181 = scmp.ne.s32.totalorder %s176, %s178
      %p182 = scmp.eq.s32.totalorder %s30, 0
      %p183 = por %p181, %p182
      %p184 = scmp.ne.s32.totalorder %s176, %s178
      %p185 = scmp.eq.s32.totalorder %s35, 3
      %p186 = por %p184, %p185
      %p187 = scmp.ne.s32.totalorder %s178, %s179
      %p188 = scmp.eq.s32.totalorder %s35, 0
      %p189 = por %p187, %p188
      %p190 = scmp.ne.s32.totalorder %s178, %s179
      %p191 = scmp.eq.s32.totalorder %s36, 3
      %p192 = por %p190, %p191
      %p194 = scmp.ne.s32.totalorder %s179, %s193
      %p195 = scmp.eq.s32.totalorder %s36, 0
      %p196 = por %p194, %p195
      %s198 = sadd.s32 %s197, 1
      %p201 = scmp.eq.s32.totalorder %s30, 3
      %p202 = scmp.ne.s32.totalorder %s197, %s199
      %p203 = scmp.eq.s32.totalorder %s30, 0
      %p204 = por %p202, %p203
      %p205 = scmp.ne.s32.totalorder %s197, %s199
      %p206 = scmp.eq.s32.totalorder %s35, 3
      %p207 = por %p205, %p206
      %p208 = scmp.ne.s32.totalorder %s199, %s200
      %p209 = scmp.eq.s32.totalorder %s35, 0
      %p210 = por %p208, %p209
      %p211 = scmp.ne.s32.totalorder %s199, %s200
      %p212 = scmp.eq.s32.totalorder %s36, 3
      %p213 = por %p211, %p212
      %p215 = scmp.ne.s32.totalorder %s200, %s214
      %p216 = scmp.eq.s32.totalorder %s36, 0
      %p217 = por %p215, %p216
      %s219 = sadd.s32 %s218, 1
      %p222 = scmp.eq.s32.totalorder %s30, 3
      %p223 = scmp.ne.s32.totalorder %s218, %s220
      %p224 = scmp.eq.s32.totalorder %s30, 0
      %p225 = por %p223, %p224
      %p226 = scmp.ne.s32.totalorder %s218, %s220
      %p227 = scmp.eq.s32.totalorder %s35, 3
      %p228 = por %p226, %p227
      %p229 = scmp.ne.s32.totalorder %s220, %s221
      %p230 = scmp.eq.s32.totalorder %s35, 0
      %p231 = por %p229, %p230
      %p232 = scmp.ne.s32.totalorder %s220, %s221
      %p233 = scmp.eq.s32.totalorder %s36, 3
      %p234 = por %p232, %p233
      %p236 = scmp.ne.s32.totalorder %s221, %s235
      %p237 = scmp.eq.s32.totalorder %s36, 0
      %p238 = por %p236, %p237
      %s240 = sadd.s32 %s239, 1
      %p243 = scmp.eq.s32.totalorder %s30, 3
      %p244 = scmp.ne.s32.totalorder %s239, %s241
      %p245 = scmp.eq.s32.totalorder %s30, 0
      %p246 = por %p244, %p245
      %p247 = scmp.ne.s32.totalorder %s239, %s241
      %p248 = scmp.eq.s32.totalorder %s35, 3
      %p249 = por %p247, %p248
      %p250 = scmp.ne.s32.totalorder %s241, %s242
      %p251 = scmp.eq.s32.totalorder %s35, 0
      %p252 = por %p250, %p251
      %p253 = scmp.ne.s32.totalorder %s241, %s242
      %p254 = scmp.eq.s32.totalorder %s36, 3
      %p255 = por %p253, %p254
      %p257 = scmp.ne.s32.totalorder %s242, %s256
      %p258 = scmp.eq.s32.totalorder %s36, 0
      %p259 = por %p257, %p258
      %s261 = sadd.s32 %s260, 1
      %p264 = scmp.eq.s32.totalorder %s30, 3
      %p265 = scmp.ne.s32.totalorder %s260, %s262
      %p266 = scmp.eq.s32.totalorder %s30, 0
      %p267 = por %p265, %p266
      %p268 = scmp.ne.s32.totalorder %s260, %s262
      %p269 = scmp.eq.s32.totalorder %s35, 3
      %p270 = por %p268, %p269
      %p271 = scmp.ne.s32.totalorder %s262, %s263
      %p272 = scmp.eq.s32.totalorder %s35, 0
      %p273 = por %p271, %p272
      %p274 = scmp.ne.s32.totalorder %s262, %s263
      %p275 = scmp.eq.s32.totalorder %s36, 3
      %p276 = por %p274, %p275
      %p278 = scmp.ne.s32.totalorder %s263, %s277
      %p279 = scmp.eq.s32.totalorder %s36, 0
      %p280 = por %p278, %p279
      %s282 = sadd.s32 %s281, 1
      %p285 = scmp.eq.s32.totalorder %s30, 3
      %p286 = scmp.ne.s32.totalorder %s281, %s283
      %p287 = scmp.eq.s32.totalorder %s30, 0
      %p288 = por %p286, %p287
      %p289 = scmp.ne.s32.totalorder %s281, %s283
      %p290 = scmp.eq.s32.totalorder %s35, 3
      %p291 = por %p289, %p290
      %p292 = scmp.ne.s32.totalorder %s283, %s284
      %p293 = scmp.eq.s32.totalorder %s35, 0
      %p294 = por %p292, %p293
      %p295 = scmp.ne.s32.totalorder %s283, %s284
      %p296 = scmp.eq.s32.totalorder %s36, 3
      %p297 = por %p295, %p296
      %p299 = scmp.ne.s32.totalorder %s284, %s298
      %p300 = scmp.eq.s32.totalorder %s36, 0
      %p301 = por %p299, %p300
      %s303 = sadd.s32 %s302, 1
      %p306 = scmp.eq.s32.totalorder %s30, 3
      %p307 = scmp.ne.s32.totalorder %s302, %s304
      %p308 = scmp.eq.s32.totalorder %s30, 0
      %p309 = por %p307, %p308
      %p310 = scmp.ne.s32.totalorder %s302, %s304
      %p311 = scmp.eq.s32.totalorder %s35, 3
      %p312 = por %p310, %p311
      %p313 = scmp.ne.s32.totalorder %s304, %s305
      %p314 = scmp.eq.s32.totalorder %s35, 0
      %p315 = por %p313, %p314
      %p316 = scmp.ne.s32.totalorder %s304, %s305
      %p317 = scmp.eq.s32.totalorder %s36, 3
      %p318 = por %p316, %p317
      %p320 = scmp.ne.s32.totalorder %s305, %s319
      %p321 = scmp.eq.s32.totalorder %s36, 0
      %p322 = por %p320, %p321
      %s324 = sadd.s32 %s323, 1
      %p327 = scmp.eq.s32.totalorder %s30, 3
      %p328 = scmp.ne.s32.totalorder %s323, %s325
      %p329 = scmp.eq.s32.totalorder %s30, 0
      %p330 = por %p328, %p329
      %p331 = scmp.ne.s32.totalorder %s323, %s325
      %p332 = scmp.eq.s32.totalorder %s35, 3
      %p333 = por %p331, %p332
      %p334 = scmp.ne.s32.totalorder %s325, %s326
      %p335 = scmp.eq.s32.totalorder %s35, 0
      %p336 = por %p334, %p335
      %p337 = scmp.ne.s32.totalorder %s325, %s326
      %p338 = scmp.eq.s32.totalorder %s36, 3
      %p339 = por %p337, %p338
      %p341 = scmp.ne.s32.totalorder %s326, %s340
      %p342 = scmp.eq.s32.totalorder %s36, 0
      %p343 = por %p341, %p342
      %s344 = ssub.s32 %s37, %s49
      %s345 = ssub.s32 %s38, %s45
      %s346 = sor.u32 %s344, %s345
      %p347 = scmp.eq.s32.totalorder %s346, 0
      %s349 = sadd.s32 %s348, 1
      %s350 = scalar_select %p347, %s348, %s349
      %p353 = pneg %p347
      %p354 = scmp.eq.s32.totalorder %s30, 3
      %p355 = por %p353, %p354
      %p356 = scmp.ne.s32.totalorder %s348, %s351
      %p357 = scmp.eq.s32.totalorder %s30, 0
      %p358 = por %p356, %p357
      %p359 = scmp.ne.s32.totalorder %s348, %s351
      %p360 = scmp.eq.s32.totalorder %s35, 3
      %p361 = por %p359, %p360
      %p362 = scmp.ne.s32.totalorder %s351, %s352
      %p363 = scmp.eq.s32.totalorder %s35, 0
      %p364 = por %p362, %p363
      %p365 = scmp.ne.s32.totalorder %s351, %s352
      %p366 = scmp.eq.s32.totalorder %s36, 3
      %p367 = por %p365, %p366
      %p369 = scmp.ne.s32.totalorder %s352, %s368
      %p370 = scmp.eq.s32.totalorder %s36, 0
      %p371 = por %p369, %p370
      %p372 = scmp.le.s32.totalorder 1, %s30
      %p373 = scmp.lt.s32.totalorder %s30, 5
      %p374 = pnand %p372, %p373
      %p375 = pneg %p374
      // Predicated region
      $region9: #{tpu_custom_call.1} parent=5 // pred_check
        _
      $region10: #{tpu_custom_call.1} parent=5 // pred_check_branch
        %377 = sbr.rel (%p374) target = $region12
      $region11: #{tpu_custom_call.1} parent=5 // pred_region
        %s378 = ssub.s32 %s30, 1
        // Predicated region
        $region13: #{tpu_custom_call.1} parent=11 // pred_check
          %p379 = pneg %p147
        $region14: #{tpu_custom_call.1} parent=11 // pred_check_branch
          %381 = sbr.rel (%p379) target = $region16
        $region15: #{tpu_custom_call.1} parent=11 // pred_region
          _
        $region16: #{tpu_custom_call.1} parent=11 // pred_fallthru
          _
        // Predicated region
        $region17: #{tpu_custom_call.1} parent=11 // pred_check
          %p382 = pneg %p168
        $region18: #{tpu_custom_call.1} parent=11 // pred_check_branch
          %384 = sbr.rel (%p382) target = $region20
        $region19: #{tpu_custom_call.1} parent=11 // pred_region
          %s386 = ssub.s32 16, 16
          %387 = vsyncadd [#allocation10], %s386
          %s389 = sshll.u32 [#allocation9], 4
          %s390 = int_to_ptr.vmem [resolvable:$true] %s389
          %392 = dma.hbm_to_vmem [thread:$0]  %s4, 16, %s390, [#allocation10]
        $region20: #{tpu_custom_call.1} parent=11 // pred_fallthru
          _
        // Predicated region
        $region21: #{tpu_custom_call.1} parent=11 // pred_check
          %p393 = pneg %p189
        $region22: #{tpu_custom_call.1} parent=11 // pred_check_branch
          %395 = sbr.rel (%p393) target = $region24
        $region23: #{tpu_custom_call.1} parent=11 // pred_region
          _
        $region24: #{tpu_custom_call.1} parent=11 // pred_fallthru
          _
        // Predicated region
        $region25: #{tpu_custom_call.1} parent=11 // pred_check
          %p396 = pneg %p210
        $region26: #{tpu_custom_call.1} parent=11 // pred_check_branch
          %398 = sbr.rel (%p396) target = $region28
        $region27: #{tpu_custom_call.1} parent=11 // pred_region
          %s400 = ssub.s32 16, 16
          %401 = vsyncadd [#allocation10], %s400
          %s403 = sshll.u32 [#allocation11], 4
          %s404 = int_to_ptr.vmem [resolvable:$true] %s403
          %406 = dma.hbm_to_vmem [thread:$0]  %s6, 16, %s404, [#allocation10]
        $region28: #{tpu_custom_call.1} parent=11 // pred_fallthru
          _
        // Predicated region
        $region29: #{tpu_custom_call.1} parent=11 // pred_check
          %p407 = pneg %p231
        $region30: #{tpu_custom_call.1} parent=11 // pred_check_branch
          %409 = sbr.rel (%p407) target = $region32
        $region31: #{tpu_custom_call.1} parent=11 // pred_region
          _
        $region32: #{tpu_custom_call.1} parent=11 // pred_fallthru
          _
        // Predicated region
        $region33: #{tpu_custom_call.1} parent=11 // pred_check
          %p410 = pneg %p252
        $region34: #{tpu_custom_call.1} parent=11 // pred_check_branch
          %412 = sbr.rel (%p410) target = $region36
        $region35: #{tpu_custom_call.1} parent=11 // pred_region
          %s414 = ssub.s32 16, 16
          %415 = vsyncadd [#allocation13], %s414
          %s417 = sshll.u32 [#allocation12], 4
          %s418 = int_to_ptr.vmem [resolvable:$true] %s417
          %420 = dma.hbm_to_vmem [thread:$0]  %s8, 16, %s418, [#allocation13]
        $region36: #{tpu_custom_call.1} parent=11 // pred_fallthru
          _
        // Predicated region
        $region37: #{tpu_custom_call.1} parent=11 // pred_check
          %p421 = pneg %p273
        $region38: #{tpu_custom_call.1} parent=11 // pred_check_branch
          %423 = sbr.rel (%p421) target = $region40
        $region39: #{tpu_custom_call.1} parent=11 // pred_region
          _
        $region40: #{tpu_custom_call.1} parent=11 // pred_fallthru
          _
        // Predicated region
        $region41: #{tpu_custom_call.1} parent=11 // pred_check
          %p424 = pneg %p294
        $region42: #{tpu_custom_call.1} parent=11 // pred_check_branch
          %426 = sbr.rel (%p424) target = $region44
        $region43: #{tpu_custom_call.1} parent=11 // pred_region
          %s428 = ssub.s32 16, 16
          %429 = vsyncadd [#allocation13], %s428
          %s431 = sshll.u32 [#allocation14], 4
          %s432 = int_to_ptr.vmem [resolvable:$true] %s431
          %434 = dma.hbm_to_vmem [thread:$0]  %s10, 16, %s432, [#allocation13]
        $region44: #{tpu_custom_call.1} parent=11 // pred_fallthru
          _
        // Predicated region
        $region45: #{tpu_custom_call.1} parent=11 // pred_check
          %p435 = pneg %p315
        $region46: #{tpu_custom_call.1} parent=11 // pred_check_branch
          %437 = sbr.rel (%p435) target = $region48
        $region47: #{tpu_custom_call.1} parent=11 // pred_region
          _
        $region48: #{tpu_custom_call.1} parent=11 // pred_fallthru
          _
        // Predicated region
        $region49: #{tpu_custom_call.1} parent=11 // pred_check
          %p438 = pneg %p336
        $region50: #{tpu_custom_call.1} parent=11 // pred_check_branch
          %440 = sbr.rel (%p438) target = $region52
        $region51: #{tpu_custom_call.1} parent=11 // pred_region
          _
        $region52: #{tpu_custom_call.1} parent=11 // pred_fallthru
          _
      $region12: #{tpu_custom_call.1} parent=5 // pred_fallthru
        _
      %p441 = scmp.lt.s32.totalorder %s30, 4
      // Predicated region
      $region53: #{tpu_custom_call.1} parent=5 // pred_check
        %p442 = pneg %p441
      $region54: #{tpu_custom_call.1} parent=5 // pred_check_branch
        %444 = sbr.rel (%p442) target = $region56
      $region55: #{tpu_custom_call.1} parent=5 // pred_region
        // Predicated region
        $region57: #{tpu_custom_call.1} parent=55 // pred_check
          %p445 = pneg %p64
        $region58: #{tpu_custom_call.1} parent=55 // pred_check_branch
          %447 = sbr.rel (%p445) target = $region60
        $region59: #{tpu_custom_call.1} parent=55 // pred_region
          %s448 = sand.u32 %s54, 1
          %s449 = scalar_lea.sflag [#allocation4], %s448
          %s450 = sand.u32 %s54, 1
          %s451 = smul.addr %s450, 256
          %s452 = scalar_lea.vmem [#allocation3], %s451
          %s453 = smul.u32 4, %s38
          %s455 = ssub.s32 4096, 4096
          %456 = vsyncadd %s449, %s455
          %s457 = smul.addr %s453, 8
          %s458 = smul.addr %s37, 64
          %s459 = sadd.s32 %s457, %s458
          %s460 = smul.addr %s459, 128
          %s461 = scalar_lea.hbm %s0, %s460
          %s462 = sshll.u32 %s452, 4
          %s463 = int_to_ptr.vmem [resolvable:$true] %s462
          %468 = dma.hbm_to_vmem [thread:$0]  %s461, 4096, %s463, %s449, 128, 128, 8
        $region60: #{tpu_custom_call.1} parent=55 // pred_fallthru
          _
        // Predicated region
        $region61: #{tpu_custom_call.1} parent=55 // pred_check
          %p469 = pneg %p92
        $region62: #{tpu_custom_call.1} parent=55 // pred_check_branch
          %471 = sbr.rel (%p469) target = $region64
        $region63: #{tpu_custom_call.1} parent=55 // pred_region
          %s472 = sand.u32 %s30, 1
          %s473 = scalar_lea.sflag [#allocation7], %s472
          %s474 = sand.u32 %s82, 1
          %s475 = smul.addr %s474, 64
          %s476 = scalar_lea.vmem [#allocation6], %s475
          %s478 = ssub.s32 1024, 1024
          %479 = vsyncadd %s473, %s478
          %s480 = smul.addr %s38, 8
          %s481 = smul.addr %s37, 16
          %s482 = sadd.s32 %s480, %s481
          %s483 = smul.addr %s482, 128
          %s484 = scalar_lea.hbm %s1, %s483
          %s485 = sshll.u32 %s476, 4
          %s486 = int_to_ptr.vmem [resolvable:$true] %s485
          %491 = dma.hbm_to_vmem [thread:$0]  %s484, 1024, %s486, %s473, 128, 128, 8
        $region64: #{tpu_custom_call.1} parent=55 // pred_fallthru
          _
        // Predicated region
        $region65: #{tpu_custom_call.1} parent=55 // pred_check
          %p492 = pneg %p120
        $region66: #{tpu_custom_call.1} parent=55 // pred_check_branch
          %494 = sbr.rel (%p492) target = $region68
        $region67: #{tpu_custom_call.1} parent=55 // pred_region
          %s495 = sand.u32 %s30, 1
          %s496 = scalar_lea.sflag [#allocation7], %s495
          %s497 = sand.u32 %s110, 1
          %s498 = smul.addr %s497, 64
          %s499 = scalar_lea.vmem [#allocation8], %s498
          %s501 = ssub.s32 1024, 1024
          %502 = vsyncadd %s496, %s501
          %s503 = smul.addr %s38, 8
          %s504 = smul.addr %s37, 16
          %s505 = sadd.s32 %s503, %s504
          %s506 = smul.addr %s505, 128
          %s507 = scalar_lea.hbm %s2, %s506
          %s508 = sshll.u32 %s499, 4
          %s509 = int_to_ptr.vmem [resolvable:$true] %s508
          %514 = dma.hbm_to_vmem [thread:$0]  %s507, 1024, %s509, %s496, 128, 128, 8
        $region68: #{tpu_custom_call.1} parent=55 // pred_fallthru
          _
      $region56: #{tpu_custom_call.1} parent=5 // pred_fallthru
        _
      %p515 = scmp.le.s32.totalorder 1, %s30
      %p516 = scmp.lt.s32.totalorder %s30, 5
      %p517 = pnand %p515, %p516
      %p518 = pneg %p517
      // Predicated region
      $region69: #{tpu_custom_call.1} parent=5 // pred_check
        _
      $region70: #{tpu_custom_call.1} parent=5 // pred_check_branch
        %520 = sbr.rel (%p517) target = $region72
      $region71: #{tpu_custom_call.1} parent=5 // pred_region
        %s521 = ssub.s32 %s30, 1
        %s522 = sand.u32 %s57, 1
        %s523 = scalar_lea.sflag [#allocation4], %s522
        %s524 = sand.u32 %s57, 1
        %s525 = smul.addr %s524, 256
        %s526 = scalar_lea.vmem [#allocation3], %s525
        // Predicated region
        $region73: #{tpu_custom_call.1} parent=71 // pred_check
          %p527 = pneg %p70
        $region74: #{tpu_custom_call.1} parent=71 // pred_check_branch
          %529 = sbr.rel (%p527) target = $region76
        $region75: #{tpu_custom_call.1} parent=71 // pred_region
          %530 = dma.done %s523, 4096
        $region76: #{tpu_custom_call.1} parent=71 // pred_fallthru
          _
        %s531 = sand.u32 %s35, 1
        %s532 = scalar_lea.sflag [#allocation7], %s531
        %s533 = sand.u32 %s85, 1
        %s534 = smul.addr %s533, 64
        %s535 = scalar_lea.vmem [#allocation6], %s534
        // Predicated region
        $region77: #{tpu_custom_call.1} parent=71 // pred_check
          %p536 = pneg %p98
        $region78: #{tpu_custom_call.1} parent=71 // pred_check_branch
          %538 = sbr.rel (%p536) target = $region80
        $region79: #{tpu_custom_call.1} parent=71 // pred_region
          %539 = dma.done %s532, 1024
        $region80: #{tpu_custom_call.1} parent=71 // pred_fallthru
          _
        %s540 = sand.u32 %s35, 1
        %s541 = scalar_lea.sflag [#allocation7], %s540
        %s542 = sand.u32 %s113, 1
        %s543 = smul.addr %s542, 64
        %s544 = scalar_lea.vmem [#allocation8], %s543
        // Predicated region
        $region81: #{tpu_custom_call.1} parent=71 // pred_check
          %p545 = pneg %p126
        $region82: #{tpu_custom_call.1} parent=71 // pred_check_branch
          %547 = sbr.rel (%p545) target = $region84
        $region83: #{tpu_custom_call.1} parent=71 // pred_region
          %548 = dma.done %s541, 1024
        $region84: #{tpu_custom_call.1} parent=71 // pred_fallthru
          _
        // Predicated region
        $region85: #{tpu_custom_call.1} parent=71 // pred_check
          %p549 = pneg %p168
        $region86: #{tpu_custom_call.1} parent=71 // pred_check_branch
          %551 = sbr.rel (%p549) target = $region88
        $region87: #{tpu_custom_call.1} parent=71 // pred_region
          %552 = dma.done [#allocation10], 16
        $region88: #{tpu_custom_call.1} parent=71 // pred_fallthru
          _
        // Predicated region
        $region89: #{tpu_custom_call.1} parent=71 // pred_check
          %p553 = pneg %p210
        $region90: #{tpu_custom_call.1} parent=71 // pred_check_branch
          %555 = sbr.rel (%p553) target = $region92
        $region91: #{tpu_custom_call.1} parent=71 // pred_region
          %556 = dma.done [#allocation10], 16
        $region92: #{tpu_custom_call.1} parent=71 // pred_fallthru
          _
        // Predicated region
        $region93: #{tpu_custom_call.1} parent=71 // pred_check
          %p557 = pneg %p252
        $region94: #{tpu_custom_call.1} parent=71 // pred_check_branch
          %559 = sbr.rel (%p557) target = $region96
        $region95: #{tpu_custom_call.1} parent=71 // pred_region
          %560 = dma.done [#allocation13], 16
        $region96: #{tpu_custom_call.1} parent=71 // pred_fallthru
          _
        // Predicated region
        $region97: #{tpu_custom_call.1} parent=71 // pred_check
          %p561 = pneg %p294
        $region98: #{tpu_custom_call.1} parent=71 // pred_check_branch
          %563 = sbr.rel (%p561) target = $region100
        $region99: #{tpu_custom_call.1} parent=71 // pred_region
          %564 = dma.done [#allocation13], 16
        $region100: #{tpu_custom_call.1} parent=71 // pred_fallthru
          _
        %s565 = sand.u32 %s57, 1
        %s566 = scalar_lea.sflag [#allocation4], %s565
        %s567 = sand.u32 %s57, 1
        %s568 = smul.addr %s567, 256
        %s569 = scalar_lea.vmem [#allocation3], %s568
        %p570 = pneg %p70
        %p571 = pneg %p67
        %s572 = sand.u32 %s35, 1
        %s573 = scalar_lea.sflag [#allocation7], %s572
        %s574 = sand.u32 %s85, 1
        %s575 = smul.addr %s574, 64
        %s576 = scalar_lea.vmem [#allocation6], %s575
        %p577 = pneg %p98
        %p578 = pneg %p95
        %s579 = sand.u32 %s35, 1
        %s580 = scalar_lea.sflag [#allocation7], %s579
        %s581 = sand.u32 %s113, 1
        %s582 = smul.addr %s581, 64
        %s583 = scalar_lea.vmem [#allocation8], %s582
        %p584 = pneg %p126
        %p585 = pneg %p123
        %p586 = pneg %p147
        %p587 = pneg %p144
        %p588 = pneg %p168
        %p589 = pneg %p165
        %p590 = pneg %p189
        %p591 = pneg %p186
        %p592 = pneg %p210
        %p593 = pneg %p207
        %p594 = pneg %p231
        %p595 = pneg %p228
        %p596 = pneg %p252
        %p597 = pneg %p249
        %p598 = pneg %p273
        %p599 = pneg %p270
        %p600 = pneg %p294
        %p601 = pneg %p291
        %p602 = pneg %p315
        %p603 = pneg %p312
        %p604 = pneg %p336
        %p605 = pneg %p333
        %p606 = pneg %p364
        %p607 = pneg %p361
        %s608 = sand.u32 %s351, 1
        %s609 = scalar_lea.sflag [#allocation5], %s608
        %s610 = sand.u32 %s351, 1
        %s611 = smul.addr %s610, 256
        %s612 = scalar_lea.vmem [#allocation15], %s611
        %s613 = smul.u32 4, %s40
        %s614 = smul.u32 4, %s40
        %v615 = vld [vmem:[%s535] sm:$0xff]
        %v616 = vld [vmem:[%s535 + $0x8] sm:$0xff]
        %v617 = vld [vmem:[%s535 + $0x10] sm:$0xff]
        %v618 = vld [vmem:[%s535 + $0x18] sm:$0xff]
        %v619 = vld [vmem:[%s535 + $0x20] sm:$0xff]
        %v620 = vld [vmem:[%s535 + $0x28] sm:$0xff]
        %v621 = vld [vmem:[%s535 + $0x30] sm:$0xff]
        %v622 = vld [vmem:[%s535 + $0x38] sm:$0xff]
        %v623 = vld [vmem:[%s526] sm:$0xff]
        %v624 = vld [vmem:[%s526 + $0x8] sm:$0xff]
        %v625 = vld [vmem:[%s526 + $0x10] sm:$0xff]
        %v626 = vld [vmem:[%s526 + $0x18] sm:$0xff]
        %v627 = vld [vmem:[%s526 + $0x20] sm:$0xff]
        %v628 = vld [vmem:[%s526 + $0x28] sm:$0xff]
        %v629 = vld [vmem:[%s526 + $0x30] sm:$0xff]
        %v630 = vld [vmem:[%s526 + $0x38] sm:$0xff]
        %v631 = vld [vmem:[%s526 + $0x40] sm:$0xff]
        %v632 = vld [vmem:[%s526 + $0x48] sm:$0xff]
        %v633 = vld [vmem:[%s526 + $0x50] sm:$0xff]
        %v634 = vld [vmem:[%s526 + $0x58] sm:$0xff]
        %v635 = vld [vmem:[%s526 + $0x60] sm:$0xff]
        %v636 = vld [vmem:[%s526 + $0x68] sm:$0xff]
        %v637 = vld [vmem:[%s526 + $0x70] sm:$0xff]
        %v638 = vld [vmem:[%s526 + $0x78] sm:$0xff]
        %v639 = vld [vmem:[%s526 + $0x80] sm:$0xff]
        %v640 = vld [vmem:[%s526 + $0x88] sm:$0xff]
        %v641 = vld [vmem:[%s526 + $0x90] sm:$0xff]
        %v642 = vld [vmem:[%s526 + $0x98] sm:$0xff]
        %v643 = vld [vmem:[%s526 + $0xa0] sm:$0xff]
        %v644 = vld [vmem:[%s526 + $0xa8] sm:$0xff]
        %v645 = vld [vmem:[%s526 + $0xb0] sm:$0xff]
        %v646 = vld [vmem:[%s526 + $0xb8] sm:$0xff]
        %v647 = vld [vmem:[%s526 + $0xc0] sm:$0xff]
        %v648 = vld [vmem:[%s526 + $0xc8] sm:$0xff]
        %v649 = vld [vmem:[%s526 + $0xd0] sm:$0xff]
        %v650 = vld [vmem:[%s526 + $0xd8] sm:$0xff]
        %v651 = vld [vmem:[%s526 + $0xe0] sm:$0xff]
        %v652 = vld [vmem:[%s526 + $0xe8] sm:$0xff]
        %v653 = vld [vmem:[%s526 + $0xf0] sm:$0xff]
        %v654 = vld [vmem:[%s526 + $0xf8] sm:$0xff]
        %v655 = vld [vmem:[%s544] sm:$0xff]
        %v656 = vld [vmem:[%s544 + $0x8] sm:$0xff]
        %v657 = vld [vmem:[%s544 + $0x10] sm:$0xff]
        %v658 = vld [vmem:[%s544 + $0x18] sm:$0xff]
        %v659 = vld [vmem:[%s544 + $0x20] sm:$0xff]
        %v660 = vld [vmem:[%s544 + $0x28] sm:$0xff]
        %v661 = vld [vmem:[%s544 + $0x30] sm:$0xff]
        %v662 = vld [vmem:[%s544 + $0x38] sm:$0xff]
        %v663 = vld [vmem:[%s3] sm:$0xff]
        %v664 = vld [vmem:[%s3 + $0x8] sm:$0xff]
        %v665 = vld [vmem:[#allocation9] sm:$0x1]
        %v667 = vlaneseq
        %v668 = vshrl.u32 %v667, 7
        %v669 = vsub.s32 0, %v668
        %v670 = vrot.slane %v665, %v669
        %vm672 = vcmask 130048
        %v674 = vsel %vm672, %v615, 0
        %v677 = vsel %vm672, %v616, 0
        %v680 = vsel %vm672, %v617, 0
        %v683 = vsel %vm672, %v618, 0
        %v686 = vsel %vm672, %v619, 0
        %v689 = vsel %vm672, %v620, 0
        %v692 = vsel %vm672, %v621, 0
        %v695 = vsel %vm672, %v622, 0
        %v698 = vsel %vm672, %v623, 0
        %v701 = vsel %vm672, %v624, 0
        %v704 = vsel %vm672, %v625, 0
        %v707 = vsel %vm672, %v626, 0
        %v710 = vsel %vm672, %v627, 0
        %v713 = vsel %vm672, %v628, 0
        %v716 = vsel %vm672, %v629, 0
        %v719 = vsel %vm672, %v630, 0
        %v722 = vsel %vm672, %v631, 0
        %v725 = vsel %vm672, %v632, 0
        %v728 = vsel %vm672, %v633, 0
        %v731 = vsel %vm672, %v634, 0
        %v734 = vsel %vm672, %v635, 0
        %v737 = vsel %vm672, %v636, 0
        %v740 = vsel %vm672, %v637, 0
        %v743 = vsel %vm672, %v638, 0
        %v746 = vsel %vm672, %v639, 0
        %v749 = vsel %vm672, %v640, 0
        %v752 = vsel %vm672, %v641, 0
        %v755 = vsel %vm672, %v642, 0
        %v758 = vsel %vm672, %v643, 0
        %v761 = vsel %vm672, %v644, 0
        %v764 = vsel %vm672, %v645, 0
        %v767 = vsel %vm672, %v646, 0
        %v770 = vsel %vm672, %v647, 0
        %v773 = vsel %vm672, %v648, 0
        %v776 = vsel %vm672, %v649, 0
        %v779 = vsel %vm672, %v650, 0
        %v782 = vsel %vm672, %v651, 0
        %v785 = vsel %vm672, %v652, 0
        %v788 = vsel %vm672, %v653, 0
        %v791 = vsel %vm672, %v654, 0
        %v794 = vsel %vm672, %v655, 0
        %v797 = vsel %vm672, %v656, 0
        %v800 = vsel %vm672, %v657, 0
        %v803 = vsel %vm672, %v658, 0
        %v806 = vsel %vm672, %v659, 0
        %v809 = vsel %vm672, %v660, 0
        %v812 = vsel %vm672, %v661, 0
        %v815 = vsel %vm672, %v662, 0
        %817 = vmatprep.subr.mxu0 0.0
        %818 = vmatpush1.msra.mxu0 0.0
        %819 = vmatprep.subr.mxu0 0.0
        %820 = vmatpush1.msra.mxu0 0.0
        %821 = vmatprep.subr.mxu0 0.0
        %822 = vmatpush1.msra.mxu0 0.0
        %823 = vmatprep.subr.mxu0 0.0
        %824 = vmatpush1.msra.mxu0 0.0
        %825 = vmatprep.subr.mxu0 0.0
        %826 = vmatpush1.msra.mxu0 0.0
        %827 = vmatprep.subr.mxu0 0.0
        %828 = vmatpush1.msra.mxu0 0.0
        %829 = vmatprep.subr.mxu0 0.0
        %830 = vmatpush1.msra.mxu0 0.0
        %831 = vmatprep.subr.mxu0 0.0
        %832 = vmatpush1.msra.mxu0 0.0
        %833 = vmatprep.subr.mxu0 0.0
        %834 = vmatpush1.msra.mxu0 0.0
        %835 = vmatprep.subr.mxu0 0.0
        %836 = vmatpush1.msra.mxu0 0.0
        %837 = vmatprep.subr.mxu0 0.0
        %838 = vmatpush1.msra.mxu0 0.0
        %839 = vmatprep.subr.mxu0 0.0
        %840 = vmatpush1.msra.mxu0 0.0
        %841 = vmatprep.subr.mxu0 0.0
        %842 = vmatpush1.msra.mxu0 0.0
        %843 = vmatprep.subr.mxu0 0.0
        %844 = vmatpush1.msra.mxu0 0.0
        %845 = vmatprep.subr.mxu0 0.0
        %846 = vmatpush1.msra.mxu0 %v664
        %847 = vmatprep.subr.mxu0 0.0
        %848 = vmatpush1.msra.mxu0 %v663
        %849 = vmatprep.subr.mxu0 0.0
        %850 = vmatpush2.msra.mxu0 0.0
        %851 = vmatprep.subr.mxu0 0.0
        %852 = vmatpush2.msra.mxu0 0.0
        %853 = vmatprep.subr.mxu0 0.0
        %854 = vmatpush2.msra.mxu0 0.0
        %855 = vmatprep.subr.mxu0 0.0
        %856 = vmatpush2.msra.mxu0 0.0
        %857 = vmatprep.subr.mxu0 0.0
        %858 = vmatpush2.msra.mxu0 0.0
        %859 = vmatprep.subr.mxu0 0.0
        %860 = vmatpush2.msra.mxu0 0.0
        %861 = vmatprep.subr.mxu0 0.0
        %862 = vmatpush2.msra.mxu0 0.0
        %863 = vmatprep.subr.mxu0 0.0
        %864 = vmatpush2.msra.mxu0 0.0
        %865 = vmatprep.subr.mxu0 0.0
        %866 = vmatpush2.msra.mxu0 0.0
        %867 = vmatprep.subr.mxu0 0.0
        %868 = vmatpush2.msra.mxu0 0.0
        %869 = vmatprep.subr.mxu0 0.0
        %870 = vmatpush2.msra.mxu0 0.0
        %871 = vmatprep.subr.mxu0 0.0
        %872 = vmatpush2.msra.mxu0 0.0
        %873 = vmatprep.subr.mxu0 0.0
        %874 = vmatpush2.msra.mxu0 0.0
        %875 = vmatprep.subr.mxu0 0.0
        %876 = vmatpush2.msra.mxu0 0.0
        %877 = vmatprep.subr.mxu0 0.0
        %878 = vmatpush2.msra.mxu0 0.0
        %879 = vmatprep.subr.mxu0 0.0
        %880 = vmatpush2.msra.mxu0 0.0
        %881 = vmatprep.mubr.f32.mxu0 0.0
        %882 = vmatmul.mubr.f32.gmra.mxu0 %v674
        %v883 = vpop.f32.mrf.mxu0
        %v884 = vadd.f32 %v670, %v883
        %v885 = vpop.f32.mrf.mxu0
        %886 = vmatprep.mubr.f32.mxu0 0.0
        %887 = vmatmul.mubr.f32.gmra.mxu0 %v677
        %v888 = vpop.f32.mrf.mxu0
        %v889 = vadd.f32 %v670, %v888
        %v890 = vpop.f32.mrf.mxu0
        %891 = vmatprep.mubr.f32.mxu0 0.0
        %892 = vmatmul.mubr.f32.gmra.mxu0 %v680
        %v893 = vpop.f32.mrf.mxu0
        %v894 = vadd.f32 %v670, %v893
        %v895 = vpop.f32.mrf.mxu0
        %896 = vmatprep.mubr.f32.mxu0 0.0
        %897 = vmatmul.mubr.f32.gmra.mxu0 %v683
        %v898 = vpop.f32.mrf.mxu0
        %v899 = vadd.f32 %v670, %v898
        %v900 = vpop.f32.mrf.mxu0
        %901 = vmatprep.mubr.f32.mxu0 0.0
        %902 = vmatmul.mubr.f32.gmra.mxu0 %v686
        %v903 = vpop.f32.mrf.mxu0
        %v904 = vadd.f32 %v670, %v903
        %v905 = vpop.f32.mrf.mxu0
        %906 = vmatprep.mubr.f32.mxu0 0.0
        %907 = vmatmul.mubr.f32.gmra.mxu0 %v689
        %v908 = vpop.f32.mrf.mxu0
        %v909 = vadd.f32 %v670, %v908
        %v910 = vpop.f32.mrf.mxu0
        %911 = vmatprep.mubr.f32.mxu0 0.0
        %912 = vmatmul.mubr.f32.gmra.mxu0 %v692
        %v913 = vpop.f32.mrf.mxu0
        %v914 = vadd.f32 %v670, %v913
        %v915 = vpop.f32.mrf.mxu0
        %916 = vmatprep.mubr.f32.mxu0 0.0
        %917 = vmatmul.mubr.f32.gmra.mxu0 %v695
        %v918 = vpop.f32.mrf.mxu0
        %v919 = vadd.f32 %v670, %v918
        %v920 = vpop.f32.mrf.mxu0
        %921 = vmatprep.mubr.f32.mxu0 0.0
        %922 = vmatmul.mubr.f32.gmra.mxu0 %v698
        %v923 = vpop.f32.mrf.mxu0
        %v924 = vadd.f32 %v670, %v923
        %v925 = vpop.f32.mrf.mxu0
        %926 = vmatprep.mubr.f32.mxu0 0.0
        %927 = vmatmul.mubr.f32.gmra.mxu0 %v701
        %v928 = vpop.f32.mrf.mxu0
        %v929 = vadd.f32 %v670, %v928
        %v930 = vpop.f32.mrf.mxu0
        %931 = vmatprep.mubr.f32.mxu0 0.0
        %932 = vmatmul.mubr.f32.gmra.mxu0 %v704
        %v933 = vpop.f32.mrf.mxu0
        %v934 = vadd.f32 %v670, %v933
        %v935 = vpop.f32.mrf.mxu0
        %936 = vmatprep.mubr.f32.mxu0 0.0
        %937 = vmatmul.mubr.f32.gmra.mxu0 %v707
        %v938 = vpop.f32.mrf.mxu0
        %v939 = vadd.f32 %v670, %v938
        %v940 = vpop.f32.mrf.mxu0
        %941 = vmatprep.mubr.f32.mxu0 0.0
        %942 = vmatmul.mubr.f32.gmra.mxu0 %v710
        %v943 = vpop.f32.mrf.mxu0
        %v944 = vadd.f32 %v670, %v943
        %v945 = vpop.f32.mrf.mxu0
        %946 = vmatprep.mubr.f32.mxu0 0.0
        %947 = vmatmul.mubr.f32.gmra.mxu0 %v713
        %v948 = vpop.f32.mrf.mxu0
        %v949 = vadd.f32 %v670, %v948
        %v950 = vpop.f32.mrf.mxu0
        %951 = vmatprep.mubr.f32.mxu0 0.0
        %952 = vmatmul.mubr.f32.gmra.mxu0 %v716
        %v953 = vpop.f32.mrf.mxu0
        %v954 = vadd.f32 %v670, %v953
        %v955 = vpop.f32.mrf.mxu0
        %956 = vmatprep.mubr.f32.mxu0 0.0
        %957 = vmatmul.mubr.f32.gmra.mxu0 %v719
        %v958 = vpop.f32.mrf.mxu0
        %v959 = vadd.f32 %v670, %v958
        %v960 = vpop.f32.mrf.mxu0
        %961 = vmatprep.mubr.f32.mxu0 0.0
        %962 = vmatmul.mubr.f32.gmra.mxu0 %v722
        %v963 = vpop.f32.mrf.mxu0
        %v964 = vadd.f32 %v670, %v963
        %v965 = vpop.f32.mrf.mxu0
        %966 = vmatprep.mubr.f32.mxu0 0.0
        %967 = vmatmul.mubr.f32.gmra.mxu0 %v725
        %v968 = vpop.f32.mrf.mxu0
        %v969 = vadd.f32 %v670, %v968
        %v970 = vpop.f32.mrf.mxu0
        %971 = vmatprep.mubr.f32.mxu0 0.0
        %972 = vmatmul.mubr.f32.gmra.mxu0 %v728
        %v973 = vpop.f32.mrf.mxu0
        %v974 = vadd.f32 %v670, %v973
        %v975 = vpop.f32.mrf.mxu0
        %976 = vmatprep.mubr.f32.mxu0 0.0
        %977 = vmatmul.mubr.f32.gmra.mxu0 %v731
        %v978 = vpop.f32.mrf.mxu0
        %v979 = vadd.f32 %v670, %v978
        %v980 = vpop.f32.mrf.mxu0
        %981 = vmatprep.mubr.f32.mxu0 0.0
        %982 = vmatmul.mubr.f32.gmra.mxu0 %v734
        %v983 = vpop.f32.mrf.mxu0
        %v984 = vadd.f32 %v670, %v983
        %v985 = vpop.f32.mrf.mxu0
        %986 = vmatprep.mubr.f32.mxu0 0.0
        %987 = vmatmul.mubr.f32.gmra.mxu0 %v737
        %v988 = vpop.f32.mrf.mxu0
        %v989 = vadd.f32 %v670, %v988
        %v990 = vpop.f32.mrf.mxu0
        %991 = vmatprep.mubr.f32.mxu0 0.0
        %992 = vmatmul.mubr.f32.gmra.mxu0 %v740
        %v993 = vpop.f32.mrf.mxu0
        %v994 = vadd.f32 %v670, %v993
        %v995 = vpop.f32.mrf.mxu0
        %996 = vmatprep.mubr.f32.mxu0 0.0
        %997 = vmatmul.mubr.f32.gmra.mxu0 %v743
        %v998 = vpop.f32.mrf.mxu0
        %v999 = vadd.f32 %v670, %v998
        %v1000 = vpop.f32.mrf.mxu0
        %1001 = vmatprep.mubr.f32.mxu0 0.0
        %1002 = vmatmul.mubr.f32.gmra.mxu0 %v746
        %v1003 = vpop.f32.mrf.mxu0
        %v1004 = vadd.f32 %v670, %v1003
        %v1005 = vpop.f32.mrf.mxu0
        %1006 = vmatprep.mubr.f32.mxu0 0.0
        %1007 = vmatmul.mubr.f32.gmra.mxu0 %v749
        %v1008 = vpop.f32.mrf.mxu0
        %v1009 = vadd.f32 %v670, %v1008
        %v1010 = vpop.f32.mrf.mxu0
        %1011 = vmatprep.mubr.f32.mxu0 0.0
        %1012 = vmatmul.mubr.f32.gmra.mxu0 %v752
        %v1013 = vpop.f32.mrf.mxu0
        %v1014 = vadd.f32 %v670, %v1013
        %v1015 = vpop.f32.mrf.mxu0
        %1016 = vmatprep.mubr.f32.mxu0 0.0
        %1017 = vmatmul.mubr.f32.gmra.mxu0 %v755
        %v1018 = vpop.f32.mrf.mxu0
        %v1019 = vadd.f32 %v670, %v1018
        %v1020 = vpop.f32.mrf.mxu0
        %1021 = vmatprep.mubr.f32.mxu0 0.0
        %1022 = vmatmul.mubr.f32.gmra.mxu0 %v758
        %v1023 = vpop.f32.mrf.mxu0
        %v1024 = vadd.f32 %v670, %v1023
        %v1025 = vpop.f32.mrf.mxu0
        %1026 = vmatprep.mubr.f32.mxu0 0.0
        %1027 = vmatmul.mubr.f32.gmra.mxu0 %v761
        %v1028 = vpop.f32.mrf.mxu0
        %v1029 = vadd.f32 %v670, %v1028
        %v1030 = vpop.f32.mrf.mxu0
        %1031 = vmatprep.mubr.f32.mxu0 0.0
        %1032 = vmatmul.mubr.f32.gmra.mxu0 %v764
        %v1033 = vpop.f32.mrf.mxu0
        %v1034 = vadd.f32 %v670, %v1033
        %v1035 = vpop.f32.mrf.mxu0
        %1036 = vmatprep.mubr.f32.mxu0 0.0
        %1037 = vmatmul.mubr.f32.gmra.mxu0 %v767
        %v1038 = vpop.f32.mrf.mxu0
        %v1039 = vadd.f32 %v670, %v1038
        %v1040 = vpop.f32.mrf.mxu0
        %1041 = vmatprep.mubr.f32.mxu0 0.0
        %1042 = vmatmul.mubr.f32.gmra.mxu0 %v770
        %v1043 = vpop.f32.mrf.mxu0
        %v1044 = vadd.f32 %v670, %v1043
        %v1045 = vpop.f32.mrf.mxu0
        %1046 = vmatprep.mubr.f32.mxu0 0.0
        %1047 = vmatmul.mubr.f32.gmra.mxu0 %v773
        %v1048 = vpop.f32.mrf.mxu0
        %v1049 = vadd.f32 %v670, %v1048
        %v1050 = vpop.f32.mrf.mxu0
        %1051 = vmatprep.mubr.f32.mxu0 0.0
        %1052 = vmatmul.mubr.f32.gmra.mxu0 %v776
        %v1053 = vpop.f32.mrf.mxu0
        %v1054 = vadd.f32 %v670, %v1053
        %v1055 = vpop.f32.mrf.mxu0
        %1056 = vmatprep.mubr.f32.mxu0 0.0
        %1057 = vmatmul.mubr.f32.gmra.mxu0 %v779
        %v1058 = vpop.f32.mrf.mxu0
        %v1059 = vadd.f32 %v670, %v1058
        %v1060 = vpop.f32.mrf.mxu0
        %1061 = vmatprep.mubr.f32.mxu0 0.0
        %1062 = vmatmul.mubr.f32.gmra.mxu0 %v782
        %v1063 = vpop.f32.mrf.mxu0
        %v1064 = vadd.f32 %v670, %v1063
        %v1065 = vpop.f32.mrf.mxu0
        %1066 = vmatprep.mubr.f32.mxu0 0.0
        %1067 = vmatmul.mubr.f32.gmra.mxu0 %v785
        %v1068 = vpop.f32.mrf.mxu0
        %v1069 = vadd.f32 %v670, %v1068
        %v1070 = vpop.f32.mrf.mxu0
        %1071 = vmatprep.mubr.f32.mxu0 0.0
        %1072 = vmatmul.mubr.f32.gmra.mxu0 %v788
        %v1073 = vpop.f32.mrf.mxu0
        %v1074 = vadd.f32 %v670, %v1073
        %v1075 = vpop.f32.mrf.mxu0
        %1076 = vmatprep.mubr.f32.mxu0 0.0
        %1077 = vmatmul.mubr.f32.gmra.mxu0 %v791
        %v1078 = vpop.f32.mrf.mxu0
        %v1079 = vadd.f32 %v670, %v1078
        %v1080 = vpop.f32.mrf.mxu0
        %1081 = vmatprep.mubr.f32.mxu0 0.0
        %1082 = vmatmul.mubr.f32.gmra.mxu0 %v794
        %v1083 = vpop.f32.mrf.mxu0
        %v1084 = vadd.f32 %v670, %v1083
        %v1085 = vpop.f32.mrf.mxu0
        %1086 = vmatprep.mubr.f32.mxu0 0.0
        %1087 = vmatmul.mubr.f32.gmra.mxu0 %v797
        %v1088 = vpop.f32.mrf.mxu0
        %v1089 = vadd.f32 %v670, %v1088
        %v1090 = vpop.f32.mrf.mxu0
        %1091 = vmatprep.mubr.f32.mxu0 0.0
        %1092 = vmatmul.mubr.f32.gmra.mxu0 %v800
        %v1093 = vpop.f32.mrf.mxu0
        %v1094 = vadd.f32 %v670, %v1093
        %v1095 = vpop.f32.mrf.mxu0
        %1096 = vmatprep.mubr.f32.mxu0 0.0
        %1097 = vmatmul.mubr.f32.gmra.mxu0 %v803
        %v1098 = vpop.f32.mrf.mxu0
        %v1099 = vadd.f32 %v670, %v1098
        %v1100 = vpop.f32.mrf.mxu0
        %1101 = vmatprep.mubr.f32.mxu0 0.0
        %1102 = vmatmul.mubr.f32.gmra.mxu0 %v806
        %v1103 = vpop.f32.mrf.mxu0
        %v1104 = vadd.f32 %v670, %v1103
        %v1105 = vpop.f32.mrf.mxu0
        %1106 = vmatprep.mubr.f32.mxu0 0.0
        %1107 = vmatmul.mubr.f32.gmra.mxu0 %v809
        %v1108 = vpop.f32.mrf.mxu0
        %v1109 = vadd.f32 %v670, %v1108
        %v1110 = vpop.f32.mrf.mxu0
        %1111 = vmatprep.mubr.f32.mxu0 0.0
        %1112 = vmatmul.mubr.f32.gmra.mxu0 %v812
        %v1113 = vpop.f32.mrf.mxu0
        %v1114 = vadd.f32 %v670, %v1113
        %v1115 = vpop.f32.mrf.mxu0
        %1116 = vmatprep.mubr.f32.mxu0 0.0
        %1117 = vmatmul.mubr.f32.gmra.mxu0 %v815
        %v1118 = vpop.f32.mrf.mxu0
        %v1119 = vadd.f32 %v670, %v1118
        %v1120 = vpop.f32.mrf.mxu0
        %1121 = vdwg.mxu0
        %v1122 = vmax.f32 %v884, 0.0
        %v1123 = vmax.f32 %v889, 0.0
        %v1124 = vmax.f32 %v894, 0.0
        %v1125 = vmax.f32 %v899, 0.0
        %v1126 = vmax.f32 %v904, 0.0
        %v1127 = vmax.f32 %v909, 0.0
        %v1128 = vmax.f32 %v914, 0.0
        %v1129 = vmax.f32 %v919, 0.0
        %v1130 = vmax.f32 %v924, 0.0
        %v1131 = vmax.f32 %v929, 0.0
        %v1132 = vmax.f32 %v934, 0.0
        %v1133 = vmax.f32 %v939, 0.0
        %v1134 = vmax.f32 %v944, 0.0
        %v1135 = vmax.f32 %v949, 0.0
        %v1136 = vmax.f32 %v954, 0.0
        %v1137 = vmax.f32 %v959, 0.0
        %v1138 = vmax.f32 %v964, 0.0
        %v1139 = vmax.f32 %v969, 0.0
        %v1140 = vmax.f32 %v974, 0.0
        %v1141 = vmax.f32 %v979, 0.0
        %v1142 = vmax.f32 %v984, 0.0
        %v1143 = vmax.f32 %v989, 0.0
        %v1144 = vmax.f32 %v994, 0.0
        %v1145 = vmax.f32 %v999, 0.0
        %v1146 = vmax.f32 %v1004, 0.0
        %v1147 = vmax.f32 %v1009, 0.0
        %v1148 = vmax.f32 %v1014, 0.0
        %v1149 = vmax.f32 %v1019, 0.0
        %v1150 = vmax.f32 %v1024, 0.0
        %v1151 = vmax.f32 %v1029, 0.0
        %v1152 = vmax.f32 %v1034, 0.0
        %v1153 = vmax.f32 %v1039, 0.0
        %v1154 = vmax.f32 %v1044, 0.0
        %v1155 = vmax.f32 %v1049, 0.0
        %v1156 = vmax.f32 %v1054, 0.0
        %v1157 = vmax.f32 %v1059, 0.0
        %v1158 = vmax.f32 %v1064, 0.0
        %v1159 = vmax.f32 %v1069, 0.0
        %v1160 = vmax.f32 %v1074, 0.0
        %v1161 = vmax.f32 %v1079, 0.0
        %v1162 = vmax.f32 %v1084, 0.0
        %v1163 = vmax.f32 %v1089, 0.0
        %v1164 = vmax.f32 %v1094, 0.0
        %v1165 = vmax.f32 %v1099, 0.0
        %v1166 = vmax.f32 %v1104, 0.0
        %v1167 = vmax.f32 %v1109, 0.0
        %v1168 = vmax.f32 %v1114, 0.0
        %v1169 = vmax.f32 %v1119, 0.0
        %vm1170 = vcmask 24576
        %1171 = vst.msk [vmem:[#allocation2] sm:$0x1] %vm1170, 0.0
        %1172 = vst.msk [vmem:[#allocation2 + $0x10] sm:$0x1] %vm1170, 0.0
        %1173 = vst.msk [vmem:[#allocation2 + $0x20] sm:$0x1] %vm1170, 0.0
        %1174 = vst.msk [vmem:[#allocation2 + $0x30] sm:$0x1] %vm1170, 0.0
        %1175 = vst.msk [vmem:[#allocation2 + $0x40] sm:$0x1] %vm1170, 0.0
        %1176 = vst.msk [vmem:[#allocation2 + $0x50] sm:$0x1] %vm1170, 0.0
        %1177 = vst.msk [vmem:[#allocation2 + $0x60] sm:$0x1] %vm1170, 0.0
        %1178 = vst.msk [vmem:[#allocation2 + $0x70] sm:$0x1] %vm1170, 0.0
        %1179 = vst.msk [vmem:[#allocation2 + $0x80] sm:$0x1] %vm1170, 0.0
        %1180 = vst.msk [vmem:[#allocation2 + $0x90] sm:$0x1] %vm1170, 0.0
        %1181 = vst.msk [vmem:[#allocation2 + $0xa0] sm:$0x1] %vm1170, 0.0
        %1182 = vst.msk [vmem:[#allocation2 + $0xb0] sm:$0x1] %vm1170, 0.0
        %1183 = vst.msk [vmem:[#allocation2 + $0xc0] sm:$0x1] %vm1170, 0.0
        %1184 = vst.msk [vmem:[#allocation2 + $0xd0] sm:$0x1] %vm1170, 0.0
        %1185 = vst.msk [vmem:[#allocation2 + $0xe0] sm:$0x1] %vm1170, 0.0
        %1186 = vst.msk [vmem:[#allocation2 + $0xf0] sm:$0x1] %vm1170, 0.0
        %1187 = vst.msk [vmem:[#allocation2 + $0x100] sm:$0x1] %vm1170, 0.0
        %1188 = vst.msk [vmem:[#allocation2 + $0x110] sm:$0x1] %vm1170, 0.0
        %1189 = vst.msk [vmem:[#allocation2 + $0x120] sm:$0x1] %vm1170, 0.0
        %1190 = vst.msk [vmem:[#allocation2 + $0x130] sm:$0x1] %vm1170, 0.0
        %1191 = vst.msk [vmem:[#allocation2 + $0x140] sm:$0x1] %vm1170, 0.0
        %1192 = vst.msk [vmem:[#allocation2 + $0x150] sm:$0x1] %vm1170, 0.0
        %1193 = vst.msk [vmem:[#allocation2 + $0x160] sm:$0x1] %vm1170, 0.0
        %1194 = vst.msk [vmem:[#allocation2 + $0x170] sm:$0x1] %vm1170, 0.0
        %1195 = vst.msk [vmem:[#allocation2 + $0x180] sm:$0x1] %vm1170, 0.0
        %1196 = vst.msk [vmem:[#allocation2 + $0x190] sm:$0x1] %vm1170, 0.0
        %1197 = vst.msk [vmem:[#allocation2 + $0x1a0] sm:$0x1] %vm1170, 0.0
        %1198 = vst.msk [vmem:[#allocation2 + $0x1b0] sm:$0x1] %vm1170, 0.0
        %1199 = vst.msk [vmem:[#allocation2 + $0x1c0] sm:$0x1] %vm1170, 0.0
        %1200 = vst.msk [vmem:[#allocation2 + $0x1d0] sm:$0x1] %vm1170, 0.0
        %1201 = vst.msk [vmem:[#allocation2 + $0x1e0] sm:$0x1] %vm1170, 0.0
        %1202 = vst.msk [vmem:[#allocation2 + $0x1f0] sm:$0x1] %vm1170, 0.0
        %1203 = vst.msk [vmem:[#allocation2 + $0x200] sm:$0x1] %vm1170, 0.0
        %1204 = vst.msk [vmem:[#allocation2 + $0x210] sm:$0x1] %vm1170, 0.0
        %1205 = vst.msk [vmem:[#allocation2 + $0x220] sm:$0x1] %vm1170, 0.0
        %1206 = vst.msk [vmem:[#allocation2 + $0x230] sm:$0x1] %vm1170, 0.0
        %1207 = vst.msk [vmem:[#allocation2 + $0x240] sm:$0x1] %vm1170, 0.0
        %1208 = vst.msk [vmem:[#allocation2 + $0x250] sm:$0x1] %vm1170, 0.0
        %1209 = vst.msk [vmem:[#allocation2 + $0x260] sm:$0x1] %vm1170, 0.0
        %1210 = vst.msk [vmem:[#allocation2 + $0x270] sm:$0x1] %vm1170, 0.0
        %1211 = vst.msk [vmem:[#allocation2 + $0x280] sm:$0x1] %vm1170, 0.0
        %1212 = vst.msk [vmem:[#allocation2 + $0x290] sm:$0x1] %vm1170, 0.0
        %1213 = vst.msk [vmem:[#allocation2 + $0x2a0] sm:$0x1] %vm1170, 0.0
        %1214 = vst.msk [vmem:[#allocation2 + $0x2b0] sm:$0x1] %vm1170, 0.0
        %1215 = vst.msk [vmem:[#allocation2 + $0x2c0] sm:$0x1] %vm1170, 0.0
        %1216 = vst.msk [vmem:[#allocation2 + $0x2d0] sm:$0x1] %vm1170, 0.0
        %1217 = vst.msk [vmem:[#allocation2 + $0x2e0] sm:$0x1] %vm1170, 0.0
        %1218 = vst.msk [vmem:[#allocation2 + $0x2f0] sm:$0x1] %vm1170, 0.0
        %1219 = vst.msk [vmem:[#allocation2 + $0x9] sm:$0x1] %vm1170, 0.0
        %1220 = vst.msk [vmem:[#allocation2 + $0x19] sm:$0x1] %vm1170, 0.0
        %1221 = vst.msk [vmem:[#allocation2 + $0x29] sm:$0x1] %vm1170, 0.0
        %1222 = vst.msk [vmem:[#allocation2 + $0x39] sm:$0x1] %vm1170, 0.0
        %1223 = vst.msk [vmem:[#allocation2 + $0x49] sm:$0x1] %vm1170, 0.0
        %1224 = vst.msk [vmem:[#allocation2 + $0x59] sm:$0x1] %vm1170, 0.0
        %1225 = vst.msk [vmem:[#allocation2 + $0x69] sm:$0x1] %vm1170, 0.0
        %1226 = vst.msk [vmem:[#allocation2 + $0x79] sm:$0x1] %vm1170, 0.0
        %1227 = vst.msk [vmem:[#allocation2 + $0x89] sm:$0x1] %vm1170, 0.0
        %1228 = vst.msk [vmem:[#allocation2 + $0x99] sm:$0x1] %vm1170, 0.0
        %1229 = vst.msk [vmem:[#allocation2 + $0xa9] sm:$0x1] %vm1170, 0.0
        %1230 = vst.msk [vmem:[#allocation2 + $0xb9] sm:$0x1] %vm1170, 0.0
        %1231 = vst.msk [vmem:[#allocation2 + $0xc9] sm:$0x1] %vm1170, 0.0
        %1232 = vst.msk [vmem:[#allocation2 + $0xd9] sm:$0x1] %vm1170, 0.0
        %1233 = vst.msk [vmem:[#allocation2 + $0xe9] sm:$0x1] %vm1170, 0.0
        %1234 = vst.msk [vmem:[#allocation2 + $0xf9] sm:$0x1] %vm1170, 0.0
        %1235 = vst.msk [vmem:[#allocation2 + $0x109] sm:$0x1] %vm1170, 0.0
        %1236 = vst.msk [vmem:[#allocation2 + $0x119] sm:$0x1] %vm1170, 0.0
        %1237 = vst.msk [vmem:[#allocation2 + $0x129] sm:$0x1] %vm1170, 0.0
        %1238 = vst.msk [vmem:[#allocation2 + $0x139] sm:$0x1] %vm1170, 0.0
        %1239 = vst.msk [vmem:[#allocation2 + $0x149] sm:$0x1] %vm1170, 0.0
        %1240 = vst.msk [vmem:[#allocation2 + $0x159] sm:$0x1] %vm1170, 0.0
        %1241 = vst.msk [vmem:[#allocation2 + $0x169] sm:$0x1] %vm1170, 0.0
        %1242 = vst.msk [vmem:[#allocation2 + $0x179] sm:$0x1] %vm1170, 0.0
        %1243 = vst.msk [vmem:[#allocation2 + $0x189] sm:$0x1] %vm1170, 0.0
        %1244 = vst.msk [vmem:[#allocation2 + $0x199] sm:$0x1] %vm1170, 0.0
        %1245 = vst.msk [vmem:[#allocation2 + $0x1a9] sm:$0x1] %vm1170, 0.0
        %1246 = vst.msk [vmem:[#allocation2 + $0x1b9] sm:$0x1] %vm1170, 0.0
        %1247 = vst.msk [vmem:[#allocation2 + $0x1c9] sm:$0x1] %vm1170, 0.0
        %1248 = vst.msk [vmem:[#allocation2 + $0x1d9] sm:$0x1] %vm1170, 0.0
        %1249 = vst.msk [vmem:[#allocation2 + $0x1e9] sm:$0x1] %vm1170, 0.0
        %1250 = vst.msk [vmem:[#allocation2 + $0x1f9] sm:$0x1] %vm1170, 0.0
        %1251 = vst.msk [vmem:[#allocation2 + $0x209] sm:$0x1] %vm1170, 0.0
        %1252 = vst.msk [vmem:[#allocation2 + $0x219] sm:$0x1] %vm1170, 0.0
        %1253 = vst.msk [vmem:[#allocation2 + $0x229] sm:$0x1] %vm1170, 0.0
        %1254 = vst.msk [vmem:[#allocation2 + $0x239] sm:$0x1] %vm1170, 0.0
        %1255 = vst.msk [vmem:[#allocation2 + $0x249] sm:$0x1] %vm1170, 0.0
        %1256 = vst.msk [vmem:[#allocation2 + $0x259] sm:$0x1] %vm1170, 0.0
        %1257 = vst.msk [vmem:[#allocation2 + $0x269] sm:$0x1] %vm1170, 0.0
        %1258 = vst.msk [vmem:[#allocation2 + $0x279] sm:$0x1] %vm1170, 0.0
        %1259 = vst.msk [vmem:[#allocation2 + $0x289] sm:$0x1] %vm1170, 0.0
        %1260 = vst.msk [vmem:[#allocation2 + $0x299] sm:$0x1] %vm1170, 0.0
        %1261 = vst.msk [vmem:[#allocation2 + $0x2a9] sm:$0x1] %vm1170, 0.0
        %1262 = vst.msk [vmem:[#allocation2 + $0x2b9] sm:$0x1] %vm1170, 0.0
        %1263 = vst.msk [vmem:[#allocation2 + $0x2c9] sm:$0x1] %vm1170, 0.0
        %1264 = vst.msk [vmem:[#allocation2 + $0x2d9] sm:$0x1] %vm1170, 0.0
        %1265 = vst.msk [vmem:[#allocation2 + $0x2e9] sm:$0x1] %vm1170, 0.0
        %1266 = vst.msk [vmem:[#allocation2 + $0x2f9] sm:$0x1] %vm1170, 0.0
        %vm1267 = vcmask 31744
        %1268 = vst.msk [vmem:[#allocation2 + $0x1] sm:$0xff] %vm1267, %v1122
        %1269 = vst.msk [vmem:[#allocation2 + $0x11] sm:$0xff] %vm1267, %v1123
        %1270 = vst.msk [vmem:[#allocation2 + $0x21] sm:$0xff] %vm1267, %v1124
        %1271 = vst.msk [vmem:[#allocation2 + $0x31] sm:$0xff] %vm1267, %v1125
        %1272 = vst.msk [vmem:[#allocation2 + $0x41] sm:$0xff] %vm1267, %v1126
        %1273 = vst.msk [vmem:[#allocation2 + $0x51] sm:$0xff] %vm1267, %v1127
        %1274 = vst.msk [vmem:[#allocation2 + $0x61] sm:$0xff] %vm1267, %v1128
        %1275 = vst.msk [vmem:[#allocation2 + $0x71] sm:$0xff] %vm1267, %v1129
        %1276 = vst.msk [vmem:[#allocation2 + $0x81] sm:$0xff] %vm1267, %v1130
        %1277 = vst.msk [vmem:[#allocation2 + $0x91] sm:$0xff] %vm1267, %v1131
        %1278 = vst.msk [vmem:[#allocation2 + $0xa1] sm:$0xff] %vm1267, %v1132
        %1279 = vst.msk [vmem:[#allocation2 + $0xb1] sm:$0xff] %vm1267, %v1133
        %1280 = vst.msk [vmem:[#allocation2 + $0xc1] sm:$0xff] %vm1267, %v1134
        %1281 = vst.msk [vmem:[#allocation2 + $0xd1] sm:$0xff] %vm1267, %v1135
        %1282 = vst.msk [vmem:[#allocation2 + $0xe1] sm:$0xff] %vm1267, %v1136
        %1283 = vst.msk [vmem:[#allocation2 + $0xf1] sm:$0xff] %vm1267, %v1137
        %1284 = vst.msk [vmem:[#allocation2 + $0x101] sm:$0xff] %vm1267, %v1138
        %1285 = vst.msk [vmem:[#allocation2 + $0x111] sm:$0xff] %vm1267, %v1139
        %1286 = vst.msk [vmem:[#allocation2 + $0x121] sm:$0xff] %vm1267, %v1140
        %1287 = vst.msk [vmem:[#allocation2 + $0x131] sm:$0xff] %vm1267, %v1141
        %1288 = vst.msk [vmem:[#allocation2 + $0x141] sm:$0xff] %vm1267, %v1142
        %1289 = vst.msk [vmem:[#allocation2 + $0x151] sm:$0xff] %vm1267, %v1143
        %1290 = vst.msk [vmem:[#allocation2 + $0x161] sm:$0xff] %vm1267, %v1144
        %1291 = vst.msk [vmem:[#allocation2 + $0x171] sm:$0xff] %vm1267, %v1145
        %1292 = vst.msk [vmem:[#allocation2 + $0x181] sm:$0xff] %vm1267, %v1146
        %1293 = vst.msk [vmem:[#allocation2 + $0x191] sm:$0xff] %vm1267, %v1147
        %1294 = vst.msk [vmem:[#allocation2 + $0x1a1] sm:$0xff] %vm1267, %v1148
        %1295 = vst.msk [vmem:[#allocation2 + $0x1b1] sm:$0xff] %vm1267, %v1149
        %1296 = vst.msk [vmem:[#allocation2 + $0x1c1] sm:$0xff] %vm1267, %v1150
        %1297 = vst.msk [vmem:[#allocation2 + $0x1d1] sm:$0xff] %vm1267, %v1151
        %1298 = vst.msk [vmem:[#allocation2 + $0x1e1] sm:$0xff] %vm1267, %v1152
        %1299 = vst.msk [vmem:[#allocation2 + $0x1f1] sm:$0xff] %vm1267, %v1153
        %1300 = vst.msk [vmem:[#allocation2 + $0x201] sm:$0xff] %vm1267, %v1154
        %1301 = vst.msk [vmem:[#allocation2 + $0x211] sm:$0xff] %vm1267, %v1155
        %1302 = vst.msk [vmem:[#allocation2 + $0x221] sm:$0xff] %vm1267, %v1156
        %1303 = vst.msk [vmem:[#allocation2 + $0x231] sm:$0xff] %vm1267, %v1157
        %1304 = vst.msk [vmem:[#allocation2 + $0x241] sm:$0xff] %vm1267, %v1158
        %1305 = vst.msk [vmem:[#allocation2 + $0x251] sm:$0xff] %vm1267, %v1159
        %1306 = vst.msk [vmem:[#allocation2 + $0x261] sm:$0xff] %vm1267, %v1160
        %1307 = vst.msk [vmem:[#allocation2 + $0x271] sm:$0xff] %vm1267, %v1161
        %1308 = vst.msk [vmem:[#allocation2 + $0x281] sm:$0xff] %vm1267, %v1162
        %1309 = vst.msk [vmem:[#allocation2 + $0x291] sm:$0xff] %vm1267, %v1163
        %1310 = vst.msk [vmem:[#allocation2 + $0x2a1] sm:$0xff] %vm1267, %v1164
        %1311 = vst.msk [vmem:[#allocation2 + $0x2b1] sm:$0xff] %vm1267, %v1165
        %1312 = vst.msk [vmem:[#allocation2 + $0x2c1] sm:$0xff] %vm1267, %v1166
        %1313 = vst.msk [vmem:[#allocation2 + $0x2d1] sm:$0xff] %vm1267, %v1167
        %1314 = vst.msk [vmem:[#allocation2 + $0x2e1] sm:$0xff] %vm1267, %v1168
        %1315 = vst.msk [vmem:[#allocation2 + $0x2f1] sm:$0xff] %vm1267, %v1169
        %v1316 = vld [vmem:[#allocation2] sm:$0xff]
        %v1317 = vld [vmem:[#allocation2 + $0x10] sm:$0xff]
        %v1318 = vld [vmem:[#allocation2 + $0x20] sm:$0xff]
        %v1319 = vld [vmem:[#allocation2 + $0x30] sm:$0xff]
        %v1320 = vld [vmem:[#allocation2 + $0x40] sm:$0xff]
        %v1321 = vld [vmem:[#allocation2 + $0x50] sm:$0xff]
        %v1322 = vld [vmem:[#allocation2 + $0x60] sm:$0xff]
        %v1323 = vld [vmem:[#allocation2 + $0x70] sm:$0xff]
        %v1324 = vld [vmem:[#allocation2 + $0x80] sm:$0xff]
        %v1325 = vld [vmem:[#allocation2 + $0x90] sm:$0xff]
        %v1326 = vld [vmem:[#allocation2 + $0xa0] sm:$0xff]
        %v1327 = vld [vmem:[#allocation2 + $0xb0] sm:$0xff]
        %v1328 = vld [vmem:[#allocation2 + $0xc0] sm:$0xff]
        %v1329 = vld [vmem:[#allocation2 + $0xd0] sm:$0xff]
        %v1330 = vld [vmem:[#allocation2 + $0xe0] sm:$0xff]
        %v1331 = vld [vmem:[#allocation2 + $0xf0] sm:$0xff]
        %v1332 = vld [vmem:[#allocation2 + $0x100] sm:$0xff]
        %v1333 = vld [vmem:[#allocation2 + $0x110] sm:$0xff]
        %v1334 = vld [vmem:[#allocation2 + $0x120] sm:$0xff]
        %v1335 = vld [vmem:[#allocation2 + $0x130] sm:$0xff]
        %v1336 = vld [vmem:[#allocation2 + $0x140] sm:$0xff]
        %v1337 = vld [vmem:[#allocation2 + $0x150] sm:$0xff]
        %v1338 = vld [vmem:[#allocation2 + $0x160] sm:$0xff]
        %v1339 = vld [vmem:[#allocation2 + $0x170] sm:$0xff]
        %v1340 = vld [vmem:[#allocation2 + $0x180] sm:$0xff]
        %v1341 = vld [vmem:[#allocation2 + $0x190] sm:$0xff]
        %v1342 = vld [vmem:[#allocation2 + $0x1a0] sm:$0xff]
        %v1343 = vld [vmem:[#allocation2 + $0x1b0] sm:$0xff]
        %v1344 = vld [vmem:[#allocation2 + $0x1c0] sm:$0xff]
        %v1345 = vld [vmem:[#allocation2 + $0x1d0] sm:$0xff]
        %v1346 = vld [vmem:[#allocation2 + $0x1e0] sm:$0xff]
        %v1347 = vld [vmem:[#allocation2 + $0x1f0] sm:$0xff]
        %v1348 = vld [vmem:[#allocation2 + $0x200] sm:$0xff]
        %v1349 = vld [vmem:[#allocation2 + $0x210] sm:$0xff]
        %v1350 = vld [vmem:[#allocation2 + $0x220] sm:$0xff]
        %v1351 = vld [vmem:[#allocation2 + $0x230] sm:$0xff]
        %v1352 = vld [vmem:[#allocation2 + $0x240] sm:$0xff]
        %v1353 = vld [vmem:[#allocation2 + $0x250] sm:$0xff]
        %v1354 = vld [vmem:[#allocation2 + $0x260] sm:$0xff]
        %v1355 = vld [vmem:[#allocation2 + $0x270] sm:$0xff]
        %v1356 = vld [vmem:[#allocation2 + $0x280] sm:$0xff]
        %v1357 = vld [vmem:[#allocation2 + $0x290] sm:$0xff]
        %v1358 = vld [vmem:[#allocation2 + $0x2a0] sm:$0xff]
        %v1359 = vld [vmem:[#allocation2 + $0x2b0] sm:$0xff]
        %v1360 = vld [vmem:[#allocation2 + $0x2c0] sm:$0xff]
        %v1361 = vld [vmem:[#allocation2 + $0x2d0] sm:$0xff]
        %v1362 = vld [vmem:[#allocation2 + $0x2e0] sm:$0xff]
        %v1363 = vld [vmem:[#allocation2 + $0x2f0] sm:$0xff]
        %v1364 = vld [vmem:[%s5] sm:$0xf]
        %v1365 = vld [vmem:[#allocation2 + $0x1] sm:$0xff]
        %v1366 = vld [vmem:[#allocation2 + $0x11] sm:$0xff]
        %v1367 = vld [vmem:[#allocation2 + $0x21] sm:$0xff]
        %v1368 = vld [vmem:[#allocation2 + $0x31] sm:$0xff]
        %v1369 = vld [vmem:[#allocation2 + $0x41] sm:$0xff]
        %v1370 = vld [vmem:[#allocation2 + $0x51] sm:$0xff]
        %v1371 = vld [vmem:[#allocation2 + $0x61] sm:$0xff]
        %v1372 = vld [vmem:[#allocation2 + $0x71] sm:$0xff]
        %v1373 = vld [vmem:[#allocation2 + $0x81] sm:$0xff]
        %v1374 = vld [vmem:[#allocation2 + $0x91] sm:$0xff]
        %v1375 = vld [vmem:[#allocation2 + $0xa1] sm:$0xff]
        %v1376 = vld [vmem:[#allocation2 + $0xb1] sm:$0xff]
        %v1377 = vld [vmem:[#allocation2 + $0xc1] sm:$0xff]
        %v1378 = vld [vmem:[#allocation2 + $0xd1] sm:$0xff]
        %v1379 = vld [vmem:[#allocation2 + $0xe1] sm:$0xff]
        %v1380 = vld [vmem:[#allocation2 + $0xf1] sm:$0xff]
        %v1381 = vld [vmem:[#allocation2 + $0x101] sm:$0xff]
        %v1382 = vld [vmem:[#allocation2 + $0x111] sm:$0xff]
        %v1383 = vld [vmem:[#allocation2 + $0x121] sm:$0xff]
        %v1384 = vld [vmem:[#allocation2 + $0x131] sm:$0xff]
        %v1385 = vld [vmem:[#allocation2 + $0x141] sm:$0xff]
        %v1386 = vld [vmem:[#allocation2 + $0x151] sm:$0xff]
        %v1387 = vld [vmem:[#allocation2 + $0x161] sm:$0xff]
        %v1388 = vld [vmem:[#allocation2 + $0x171] sm:$0xff]
        %v1389 = vld [vmem:[#allocation2 + $0x181] sm:$0xff]
        %v1390 = vld [vmem:[#allocation2 + $0x191] sm:$0xff]
        %v1391 = vld [vmem:[#allocation2 + $0x1a1] sm:$0xff]
        %v1392 = vld [vmem:[#allocation2 + $0x1b1] sm:$0xff]
        %v1393 = vld [vmem:[#allocation2 + $0x1c1] sm:$0xff]
        %v1394 = vld [vmem:[#allocation2 + $0x1d1] sm:$0xff]
        %v1395 = vld [vmem:[#allocation2 + $0x1e1] sm:$0xff]
        %v1396 = vld [vmem:[#allocation2 + $0x1f1] sm:$0xff]
        %v1397 = vld [vmem:[#allocation2 + $0x201] sm:$0xff]
        %v1398 = vld [vmem:[#allocation2 + $0x211] sm:$0xff]
        %v1399 = vld [vmem:[#allocation2 + $0x221] sm:$0xff]
        %v1400 = vld [vmem:[#allocation2 + $0x231] sm:$0xff]
        %v1401 = vld [vmem:[#allocation2 + $0x241] sm:$0xff]
        %v1402 = vld [vmem:[#allocation2 + $0x251] sm:$0xff]
        %v1403 = vld [vmem:[#allocation2 + $0x261] sm:$0xff]
        %v1404 = vld [vmem:[#allocation2 + $0x271] sm:$0xff]
        %v1405 = vld [vmem:[#allocation2 + $0x281] sm:$0xff]
        %v1406 = vld [vmem:[#allocation2 + $0x291] sm:$0xff]
        %v1407 = vld [vmem:[#allocation2 + $0x2a1] sm:$0xff]
        %v1408 = vld [vmem:[#allocation2 + $0x2b1] sm:$0xff]
        %v1409 = vld [vmem:[#allocation2 + $0x2c1] sm:$0xff]
        %v1410 = vld [vmem:[#allocation2 + $0x2d1] sm:$0xff]
        %v1411 = vld [vmem:[#allocation2 + $0x2e1] sm:$0xff]
        %v1412 = vld [vmem:[#allocation2 + $0x2f1] sm:$0xff]
        %s1413 = scalar_lea.vmem %s5, 4
        %v1414 = vld [vmem:[%s1413] sm:$0xf]
        %v1416 = vsel %vm1267, %v1365, 0
        %v1419 = vsel %vm1267, %v1366, 0
        %v1422 = vsel %vm1267, %v1367, 0
        %v1425 = vsel %vm1267, %v1368, 0
        %v1428 = vsel %vm1267, %v1369, 0
        %v1431 = vsel %vm1267, %v1370, 0
        %v1434 = vsel %vm1267, %v1371, 0
        %v1437 = vsel %vm1267, %v1372, 0
        %v1440 = vsel %vm1267, %v1373, 0
        %v1443 = vsel %vm1267, %v1374, 0
        %v1446 = vsel %vm1267, %v1375, 0
        %v1449 = vsel %vm1267, %v1376, 0
        %v1452 = vsel %vm1267, %v1377, 0
        %v1455 = vsel %vm1267, %v1378, 0
        %v1458 = vsel %vm1267, %v1379, 0
        %v1461 = vsel %vm1267, %v1380, 0
        %v1464 = vsel %vm1267, %v1381, 0
        %v1467 = vsel %vm1267, %v1382, 0
        %v1470 = vsel %vm1267, %v1383, 0
        %v1473 = vsel %vm1267, %v1384, 0
        %v1476 = vsel %vm1267, %v1385, 0
        %v1479 = vsel %vm1267, %v1386, 0
        %v1482 = vsel %vm1267, %v1387, 0
        %v1485 = vsel %vm1267, %v1388, 0
        %v1488 = vsel %vm1267, %v1389, 0
        %v1491 = vsel %vm1267, %v1390, 0
        %v1494 = vsel %vm1267, %v1391, 0
        %v1497 = vsel %vm1267, %v1392, 0
        %v1500 = vsel %vm1267, %v1393, 0
        %v1503 = vsel %vm1267, %v1394, 0
        %v1506 = vsel %vm1267, %v1395, 0
        %v1509 = vsel %vm1267, %v1396, 0
        %v1512 = vsel %vm1267, %v1397, 0
        %v1515 = vsel %vm1267, %v1398, 0
        %v1518 = vsel %vm1267, %v1399, 0
        %v1521 = vsel %vm1267, %v1400, 0
        %v1524 = vsel %vm1267, %v1401, 0
        %v1527 = vsel %vm1267, %v1402, 0
        %v1530 = vsel %vm1267, %v1403, 0
        %v1533 = vsel %vm1267, %v1404, 0
        %v1536 = vsel %vm1267, %v1405, 0
        %v1539 = vsel %vm1267, %v1406, 0
        %v1542 = vsel %vm1267, %v1407, 0
        %v1545 = vsel %vm1267, %v1408, 0
        %v1548 = vsel %vm1267, %v1409, 0
        %v1551 = vsel %vm1267, %v1410, 0
        %v1554 = vsel %vm1267, %v1411, 0
        %v1557 = vsel %vm1267, %v1412, 0
        %vm1559 = vcmask 1043456
        %v1561 = vsel %vm1559, %v1414, 0
        %1563 = vmatprep.subr.mxu0 0.0
        %1564 = vmatpush1.msra.mxu0 0.0
        %1565 = vmatprep.subr.mxu0 0.0
        %1566 = vmatpush1.msra.mxu0 0.0
        %1567 = vmatprep.subr.mxu0 0.0
        %1568 = vmatpush1.msra.mxu0 0.0
        %1569 = vmatprep.subr.mxu0 0.0
        %1570 = vmatpush1.msra.mxu0 0.0
        %1571 = vmatprep.subr.mxu0 0.0
        %1572 = vmatpush1.msra.mxu0 0.0
        %1573 = vmatprep.subr.mxu0 0.0
        %1574 = vmatpush1.msra.mxu0 0.0
        %1575 = vmatprep.subr.mxu0 0.0
        %1576 = vmatpush1.msra.mxu0 0.0
        %1577 = vmatprep.subr.mxu0 0.0
        %1578 = vmatpush1.msra.mxu0 0.0
        %1579 = vmatprep.subr.mxu0 0.0
        %1580 = vmatpush1.msra.mxu0 0.0
        %1581 = vmatprep.subr.mxu0 0.0
        %1582 = vmatpush1.msra.mxu0 0.0
        %1583 = vmatprep.subr.mxu0 0.0
        %1584 = vmatpush1.msra.mxu0 0.0
        %1585 = vmatprep.subr.mxu0 0.0
        %1586 = vmatpush1.msra.mxu0 0.0
        %1587 = vmatprep.subr.mxu0 0.0
        %1588 = vmatpush1.msra.mxu0 0.0
        %1589 = vmatprep.subr.mxu0 0.0
        %1590 = vmatpush1.msra.mxu0 0.0
        %1591 = vmatprep.subr.mxu0 0.0
        %1592 = vmatpush1.msra.mxu0 0.0
        %1593 = vmatprep.subr.mxu0 0.0
        %1594 = vmatpush1.msra.mxu0 %v1561
        %1595 = vmatprep.subr.mxu0 0.0
        %1596 = vmatpush2.msra.mxu0 0.0
        %1597 = vmatprep.subr.mxu0 0.0
        %1598 = vmatpush2.msra.mxu0 0.0
        %1599 = vmatprep.subr.mxu0 0.0
        %1600 = vmatpush2.msra.mxu0 0.0
        %1601 = vmatprep.subr.mxu0 0.0
        %1602 = vmatpush2.msra.mxu0 0.0
        %1603 = vmatprep.subr.mxu0 0.0
        %1604 = vmatpush2.msra.mxu0 0.0
        %1605 = vmatprep.subr.mxu0 0.0
        %1606 = vmatpush2.msra.mxu0 0.0
        %1607 = vmatprep.subr.mxu0 0.0
        %1608 = vmatpush2.msra.mxu0 0.0
        %1609 = vmatprep.subr.mxu0 0.0
        %1610 = vmatpush2.msra.mxu0 0.0
        %1611 = vmatprep.subr.mxu0 0.0
        %1612 = vmatpush2.msra.mxu0 0.0
        %1613 = vmatprep.subr.mxu0 0.0
        %1614 = vmatpush2.msra.mxu0 0.0
        %1615 = vmatprep.subr.mxu0 0.0
        %1616 = vmatpush2.msra.mxu0 0.0
        %1617 = vmatprep.subr.mxu0 0.0
        %1618 = vmatpush2.msra.mxu0 0.0
        %1619 = vmatprep.subr.mxu0 0.0
        %1620 = vmatpush2.msra.mxu0 0.0
        %1621 = vmatprep.subr.mxu0 0.0
        %1622 = vmatpush2.msra.mxu0 0.0
        %1623 = vmatprep.subr.mxu0 0.0
        %1624 = vmatpush2.msra.mxu0 0.0
        %1625 = vmatprep.subr.mxu0 0.0
        %1626 = vmatpush2.msra.mxu0 0.0
        %1627 = vmatprep.mubr.f32.mxu0 0.0
        %1628 = vmatmul.mubr.f32.gmra.mxu0 %v1416
        %v1629 = vpop.f32.mrf.mxu0
        %v1630 = vadd.f32 0.0, %v1629
        %v1631 = vpop.f32.mrf.mxu0
        %1632 = vmatprep.mubr.f32.mxu0 0.0
        %1633 = vmatmul.mubr.f32.gmra.mxu0 %v1419
        %v1634 = vpop.f32.mrf.mxu0
        %v1635 = vadd.f32 0.0, %v1634
        %v1636 = vpop.f32.mrf.mxu0
        %1637 = vmatprep.mubr.f32.mxu0 0.0
        %1638 = vmatmul.mubr.f32.gmra.mxu0 %v1422
        %v1639 = vpop.f32.mrf.mxu0
        %v1640 = vadd.f32 0.0, %v1639
        %v1641 = vpop.f32.mrf.mxu0
        %1642 = vmatprep.mubr.f32.mxu0 0.0
        %1643 = vmatmul.mubr.f32.gmra.mxu0 %v1425
        %v1644 = vpop.f32.mrf.mxu0
        %v1645 = vadd.f32 0.0, %v1644
        %v1646 = vpop.f32.mrf.mxu0
        %1647 = vmatprep.mubr.f32.mxu0 0.0
        %1648 = vmatmul.mubr.f32.gmra.mxu0 %v1428
        %v1649 = vpop.f32.mrf.mxu0
        %v1650 = vadd.f32 0.0, %v1649
        %v1651 = vpop.f32.mrf.mxu0
        %1652 = vmatprep.mubr.f32.mxu0 0.0
        %1653 = vmatmul.mubr.f32.gmra.mxu0 %v1431
        %v1654 = vpop.f32.mrf.mxu0
        %v1655 = vadd.f32 0.0, %v1654
        %v1656 = vpop.f32.mrf.mxu0
        %1657 = vmatprep.mubr.f32.mxu0 0.0
        %1658 = vmatmul.mubr.f32.gmra.mxu0 %v1434
        %v1659 = vpop.f32.mrf.mxu0
        %v1660 = vadd.f32 0.0, %v1659
        %v1661 = vpop.f32.mrf.mxu0
        %1662 = vmatprep.mubr.f32.mxu0 0.0
        %1663 = vmatmul.mubr.f32.gmra.mxu0 %v1437
        %v1664 = vpop.f32.mrf.mxu0
        %v1665 = vadd.f32 0.0, %v1664
        %v1666 = vpop.f32.mrf.mxu0
        %1667 = vmatprep.mubr.f32.mxu0 0.0
        %1668 = vmatmul.mubr.f32.gmra.mxu0 %v1440
        %v1669 = vpop.f32.mrf.mxu0
        %v1670 = vadd.f32 0.0, %v1669
        %v1671 = vpop.f32.mrf.mxu0
        %1672 = vmatprep.mubr.f32.mxu0 0.0
        %1673 = vmatmul.mubr.f32.gmra.mxu0 %v1443
        %v1674 = vpop.f32.mrf.mxu0
        %v1675 = vadd.f32 0.0, %v1674
        %v1676 = vpop.f32.mrf.mxu0
        %1677 = vmatprep.mubr.f32.mxu0 0.0
        %1678 = vmatmul.mubr.f32.gmra.mxu0 %v1446
        %v1679 = vpop.f32.mrf.mxu0
        %v1680 = vadd.f32 0.0, %v1679
        %v1681 = vpop.f32.mrf.mxu0
        %1682 = vmatprep.mubr.f32.mxu0 0.0
        %1683 = vmatmul.mubr.f32.gmra.mxu0 %v1449
        %v1684 = vpop.f32.mrf.mxu0
        %v1685 = vadd.f32 0.0, %v1684
        %v1686 = vpop.f32.mrf.mxu0
        %1687 = vmatprep.mubr.f32.mxu0 0.0
        %1688 = vmatmul.mubr.f32.gmra.mxu0 %v1452
        %v1689 = vpop.f32.mrf.mxu0
        %v1690 = vadd.f32 0.0, %v1689
        %v1691 = vpop.f32.mrf.mxu0
        %1692 = vmatprep.mubr.f32.mxu0 0.0
        %1693 = vmatmul.mubr.f32.gmra.mxu0 %v1455
        %v1694 = vpop.f32.mrf.mxu0
        %v1695 = vadd.f32 0.0, %v1694
        %v1696 = vpop.f32.mrf.mxu0
        %1697 = vmatprep.mubr.f32.mxu0 0.0
        %1698 = vmatmul.mubr.f32.gmra.mxu0 %v1458
        %v1699 = vpop.f32.mrf.mxu0
        %v1700 = vadd.f32 0.0, %v1699
        %v1701 = vpop.f32.mrf.mxu0
        %1702 = vmatprep.mubr.f32.mxu0 0.0
        %1703 = vmatmul.mubr.f32.gmra.mxu0 %v1461
        %v1704 = vpop.f32.mrf.mxu0
        %v1705 = vadd.f32 0.0, %v1704
        %v1706 = vpop.f32.mrf.mxu0
        %1707 = vmatprep.mubr.f32.mxu0 0.0
        %1708 = vmatmul.mubr.f32.gmra.mxu0 %v1464
        %v1709 = vpop.f32.mrf.mxu0
        %v1710 = vadd.f32 0.0, %v1709
        %v1711 = vpop.f32.mrf.mxu0
        %1712 = vmatprep.mubr.f32.mxu0 0.0
        %1713 = vmatmul.mubr.f32.gmra.mxu0 %v1467
        %v1714 = vpop.f32.mrf.mxu0
        %v1715 = vadd.f32 0.0, %v1714
        %v1716 = vpop.f32.mrf.mxu0
        %1717 = vmatprep.mubr.f32.mxu0 0.0
        %1718 = vmatmul.mubr.f32.gmra.mxu0 %v1470
        %v1719 = vpop.f32.mrf.mxu0
        %v1720 = vadd.f32 0.0, %v1719
        %v1721 = vpop.f32.mrf.mxu0
        %1722 = vmatprep.mubr.f32.mxu0 0.0
        %1723 = vmatmul.mubr.f32.gmra.mxu0 %v1473
        %v1724 = vpop.f32.mrf.mxu0
        %v1725 = vadd.f32 0.0, %v1724
        %v1726 = vpop.f32.mrf.mxu0
        %1727 = vmatprep.mubr.f32.mxu0 0.0
        %1728 = vmatmul.mubr.f32.gmra.mxu0 %v1476
        %v1729 = vpop.f32.mrf.mxu0
        %v1730 = vadd.f32 0.0, %v1729
        %v1731 = vpop.f32.mrf.mxu0
        %1732 = vmatprep.mubr.f32.mxu0 0.0
        %1733 = vmatmul.mubr.f32.gmra.mxu0 %v1479
        %v1734 = vpop.f32.mrf.mxu0
        %v1735 = vadd.f32 0.0, %v1734
        %v1736 = vpop.f32.mrf.mxu0
        %1737 = vmatprep.mubr.f32.mxu0 0.0
        %1738 = vmatmul.mubr.f32.gmra.mxu0 %v1482
        %v1739 = vpop.f32.mrf.mxu0
        %v1740 = vadd.f32 0.0, %v1739
        %v1741 = vpop.f32.mrf.mxu0
        %1742 = vmatprep.mubr.f32.mxu0 0.0
        %1743 = vmatmul.mubr.f32.gmra.mxu0 %v1485
        %v1744 = vpop.f32.mrf.mxu0
        %v1745 = vadd.f32 0.0, %v1744
        %v1746 = vpop.f32.mrf.mxu0
        %1747 = vmatprep.mubr.f32.mxu0 0.0
        %1748 = vmatmul.mubr.f32.gmra.mxu0 %v1488
        %v1749 = vpop.f32.mrf.mxu0
        %v1750 = vadd.f32 0.0, %v1749
        %v1751 = vpop.f32.mrf.mxu0
        %1752 = vmatprep.mubr.f32.mxu0 0.0
        %1753 = vmatmul.mubr.f32.gmra.mxu0 %v1491
        %v1754 = vpop.f32.mrf.mxu0
        %v1755 = vadd.f32 0.0, %v1754
        %v1756 = vpop.f32.mrf.mxu0
        %1757 = vmatprep.mubr.f32.mxu0 0.0
        %1758 = vmatmul.mubr.f32.gmra.mxu0 %v1494
        %v1759 = vpop.f32.mrf.mxu0
        %v1760 = vadd.f32 0.0, %v1759
        %v1761 = vpop.f32.mrf.mxu0
        %1762 = vmatprep.mubr.f32.mxu0 0.0
        %1763 = vmatmul.mubr.f32.gmra.mxu0 %v1497
        %v1764 = vpop.f32.mrf.mxu0
        %v1765 = vadd.f32 0.0, %v1764
        %v1766 = vpop.f32.mrf.mxu0
        %1767 = vmatprep.mubr.f32.mxu0 0.0
        %1768 = vmatmul.mubr.f32.gmra.mxu0 %v1500
        %v1769 = vpop.f32.mrf.mxu0
        %v1770 = vadd.f32 0.0, %v1769
        %v1771 = vpop.f32.mrf.mxu0
        %1772 = vmatprep.mubr.f32.mxu0 0.0
        %1773 = vmatmul.mubr.f32.gmra.mxu0 %v1503
        %v1774 = vpop.f32.mrf.mxu0
        %v1775 = vadd.f32 0.0, %v1774
        %v1776 = vpop.f32.mrf.mxu0
        %1777 = vmatprep.mubr.f32.mxu0 0.0
        %1778 = vmatmul.mubr.f32.gmra.mxu0 %v1506
        %v1779 = vpop.f32.mrf.mxu0
        %v1780 = vadd.f32 0.0, %v1779
        %v1781 = vpop.f32.mrf.mxu0
        %1782 = vmatprep.mubr.f32.mxu0 0.0
        %1783 = vmatmul.mubr.f32.gmra.mxu0 %v1509
        %v1784 = vpop.f32.mrf.mxu0
        %v1785 = vadd.f32 0.0, %v1784
        %v1786 = vpop.f32.mrf.mxu0
        %1787 = vmatprep.mubr.f32.mxu0 0.0
        %1788 = vmatmul.mubr.f32.gmra.mxu0 %v1512
        %v1789 = vpop.f32.mrf.mxu0
        %v1790 = vadd.f32 0.0, %v1789
        %v1791 = vpop.f32.mrf.mxu0
        %1792 = vmatprep.mubr.f32.mxu0 0.0
        %1793 = vmatmul.mubr.f32.gmra.mxu0 %v1515
        %v1794 = vpop.f32.mrf.mxu0
        %v1795 = vadd.f32 0.0, %v1794
        %v1796 = vpop.f32.mrf.mxu0
        %1797 = vmatprep.mubr.f32.mxu0 0.0
        %1798 = vmatmul.mubr.f32.gmra.mxu0 %v1518
        %v1799 = vpop.f32.mrf.mxu0
        %v1800 = vadd.f32 0.0, %v1799
        %v1801 = vpop.f32.mrf.mxu0
        %1802 = vmatprep.mubr.f32.mxu0 0.0
        %1803 = vmatmul.mubr.f32.gmra.mxu0 %v1521
        %v1804 = vpop.f32.mrf.mxu0
        %v1805 = vadd.f32 0.0, %v1804
        %v1806 = vpop.f32.mrf.mxu0
        %1807 = vmatprep.mubr.f32.mxu0 0.0
        %1808 = vmatmul.mubr.f32.gmra.mxu0 %v1524
        %v1809 = vpop.f32.mrf.mxu0
        %v1810 = vadd.f32 0.0, %v1809
        %v1811 = vpop.f32.mrf.mxu0
        %1812 = vmatprep.mubr.f32.mxu0 0.0
        %1813 = vmatmul.mubr.f32.gmra.mxu0 %v1527
        %v1814 = vpop.f32.mrf.mxu0
        %v1815 = vadd.f32 0.0, %v1814
        %v1816 = vpop.f32.mrf.mxu0
        %1817 = vmatprep.mubr.f32.mxu0 0.0
        %1818 = vmatmul.mubr.f32.gmra.mxu0 %v1530
        %v1819 = vpop.f32.mrf.mxu0
        %v1820 = vadd.f32 0.0, %v1819
        %v1821 = vpop.f32.mrf.mxu0
        %1822 = vmatprep.mubr.f32.mxu0 0.0
        %1823 = vmatmul.mubr.f32.gmra.mxu0 %v1533
        %v1824 = vpop.f32.mrf.mxu0
        %v1825 = vadd.f32 0.0, %v1824
        %v1826 = vpop.f32.mrf.mxu0
        %1827 = vmatprep.mubr.f32.mxu0 0.0
        %1828 = vmatmul.mubr.f32.gmra.mxu0 %v1536
        %v1829 = vpop.f32.mrf.mxu0
        %v1830 = vadd.f32 0.0, %v1829
        %v1831 = vpop.f32.mrf.mxu0
        %1832 = vmatprep.mubr.f32.mxu0 0.0
        %1833 = vmatmul.mubr.f32.gmra.mxu0 %v1539
        %v1834 = vpop.f32.mrf.mxu0
        %v1835 = vadd.f32 0.0, %v1834
        %v1836 = vpop.f32.mrf.mxu0
        %1837 = vmatprep.mubr.f32.mxu0 0.0
        %1838 = vmatmul.mubr.f32.gmra.mxu0 %v1542
        %v1839 = vpop.f32.mrf.mxu0
        %v1840 = vadd.f32 0.0, %v1839
        %v1841 = vpop.f32.mrf.mxu0
        %1842 = vmatprep.mubr.f32.mxu0 0.0
        %1843 = vmatmul.mubr.f32.gmra.mxu0 %v1545
        %v1844 = vpop.f32.mrf.mxu0
        %v1845 = vadd.f32 0.0, %v1844
        %v1846 = vpop.f32.mrf.mxu0
        %1847 = vmatprep.mubr.f32.mxu0 0.0
        %1848 = vmatmul.mubr.f32.gmra.mxu0 %v1548
        %v1849 = vpop.f32.mrf.mxu0
        %v1850 = vadd.f32 0.0, %v1849
        %v1851 = vpop.f32.mrf.mxu0
        %1852 = vmatprep.mubr.f32.mxu0 0.0
        %1853 = vmatmul.mubr.f32.gmra.mxu0 %v1551
        %v1854 = vpop.f32.mrf.mxu0
        %v1855 = vadd.f32 0.0, %v1854
        %v1856 = vpop.f32.mrf.mxu0
        %1857 = vmatprep.mubr.f32.mxu0 0.0
        %1858 = vmatmul.mubr.f32.gmra.mxu0 %v1554
        %v1859 = vpop.f32.mrf.mxu0
        %v1860 = vadd.f32 0.0, %v1859
        %v1861 = vpop.f32.mrf.mxu0
        %1862 = vmatprep.mubr.f32.mxu0 0.0
        %1863 = vmatmul.mubr.f32.gmra.mxu0 %v1557
        %v1864 = vpop.f32.mrf.mxu0
        %v1865 = vadd.f32 0.0, %v1864
        %v1866 = vpop.f32.mrf.mxu0
        %1867 = vdwg.mxu0
        %v1869 = vsel %vm1267, %v1316, 0
        %v1872 = vsel %vm1267, %v1317, 0
        %v1875 = vsel %vm1267, %v1318, 0
        %v1878 = vsel %vm1267, %v1319, 0
        %v1881 = vsel %vm1267, %v1320, 0
        %v1884 = vsel %vm1267, %v1321, 0
        %v1887 = vsel %vm1267, %v1322, 0
        %v1890 = vsel %vm1267, %v1323, 0
        %v1893 = vsel %vm1267, %v1324, 0
        %v1896 = vsel %vm1267, %v1325, 0
        %v1899 = vsel %vm1267, %v1326, 0
        %v1902 = vsel %vm1267, %v1327, 0
        %v1905 = vsel %vm1267, %v1328, 0
        %v1908 = vsel %vm1267, %v1329, 0
        %v1911 = vsel %vm1267, %v1330, 0
        %v1914 = vsel %vm1267, %v1331, 0
        %v1917 = vsel %vm1267, %v1332, 0
        %v1920 = vsel %vm1267, %v1333, 0
        %v1923 = vsel %vm1267, %v1334, 0
        %v1926 = vsel %vm1267, %v1335, 0
        %v1929 = vsel %vm1267, %v1336, 0
        %v1932 = vsel %vm1267, %v1337, 0
        %v1935 = vsel %vm1267, %v1338, 0
        %v1938 = vsel %vm1267, %v1339, 0
        %v1941 = vsel %vm1267, %v1340, 0
        %v1944 = vsel %vm1267, %v1341, 0
        %v1947 = vsel %vm1267, %v1342, 0
        %v1950 = vsel %vm1267, %v1343, 0
        %v1953 = vsel %vm1267, %v1344, 0
        %v1956 = vsel %vm1267, %v1345, 0
        %v1959 = vsel %vm1267, %v1346, 0
        %v1962 = vsel %vm1267, %v1347, 0
        %v1965 = vsel %vm1267, %v1348, 0
        %v1968 = vsel %vm1267, %v1349, 0
        %v1971 = vsel %vm1267, %v1350, 0
        %v1974 = vsel %vm1267, %v1351, 0
        %v1977 = vsel %vm1267, %v1352, 0
        %v1980 = vsel %vm1267, %v1353, 0
        %v1983 = vsel %vm1267, %v1354, 0
        %v1986 = vsel %vm1267, %v1355, 0
        %v1989 = vsel %vm1267, %v1356, 0
        %v1992 = vsel %vm1267, %v1357, 0
        %v1995 = vsel %vm1267, %v1358, 0
        %v1998 = vsel %vm1267, %v1359, 0
        %v2001 = vsel %vm1267, %v1360, 0
        %v2004 = vsel %vm1267, %v1361, 0
        %v2007 = vsel %vm1267, %v1362, 0
        %v2010 = vsel %vm1267, %v1363, 0
        %v2013 = vsel %vm1559, %v1364, 0
        %2015 = vmatprep.subr.mxu0 0.0
        %2016 = vmatpush1.msra.mxu0 0.0
        %2017 = vmatprep.subr.mxu0 0.0
        %2018 = vmatpush1.msra.mxu0 0.0
        %2019 = vmatprep.subr.mxu0 0.0
        %2020 = vmatpush1.msra.mxu0 0.0
        %2021 = vmatprep.subr.mxu0 0.0
        %2022 = vmatpush1.msra.mxu0 0.0
        %2023 = vmatprep.subr.mxu0 0.0
        %2024 = vmatpush1.msra.mxu0 0.0
        %2025 = vmatprep.subr.mxu0 0.0
        %2026 = vmatpush1.msra.mxu0 0.0
        %2027 = vmatprep.subr.mxu0 0.0
        %2028 = vmatpush1.msra.mxu0 0.0
        %2029 = vmatprep.subr.mxu0 0.0
        %2030 = vmatpush1.msra.mxu0 0.0
        %2031 = vmatprep.subr.mxu0 0.0
        %2032 = vmatpush1.msra.mxu0 0.0
        %2033 = vmatprep.subr.mxu0 0.0
        %2034 = vmatpush1.msra.mxu0 0.0
        %2035 = vmatprep.subr.mxu0 0.0
        %2036 = vmatpush1.msra.mxu0 0.0
        %2037 = vmatprep.subr.mxu0 0.0
        %2038 = vmatpush1.msra.mxu0 0.0
        %2039 = vmatprep.subr.mxu0 0.0
        %2040 = vmatpush1.msra.mxu0 0.0
        %2041 = vmatprep.subr.mxu0 0.0
        %2042 = vmatpush1.msra.mxu0 0.0
        %2043 = vmatprep.subr.mxu0 0.0
        %2044 = vmatpush1.msra.mxu0 0.0
        %2045 = vmatprep.subr.mxu0 0.0
        %2046 = vmatpush1.msra.mxu0 %v2013
        %2047 = vmatprep.subr.mxu0 0.0
        %2048 = vmatpush2.msra.mxu0 0.0
        %2049 = vmatprep.subr.mxu0 0.0
        %2050 = vmatpush2.msra.mxu0 0.0
        %2051 = vmatprep.subr.mxu0 0.0
        %2052 = vmatpush2.msra.mxu0 0.0
        %2053 = vmatprep.subr.mxu0 0.0
        %2054 = vmatpush2.msra.mxu0 0.0
        %2055 = vmatprep.subr.mxu0 0.0
        %2056 = vmatpush2.msra.mxu0 0.0
        %2057 = vmatprep.subr.mxu0 0.0
        %2058 = vmatpush2.msra.mxu0 0.0
        %2059 = vmatprep.subr.mxu0 0.0
        %2060 = vmatpush2.msra.mxu0 0.0
        %2061 = vmatprep.subr.mxu0 0.0
        %2062 = vmatpush2.msra.mxu0 0.0
        %2063 = vmatprep.subr.mxu0 0.0
        %2064 = vmatpush2.msra.mxu0 0.0
        %2065 = vmatprep.subr.mxu0 0.0
        %2066 = vmatpush2.msra.mxu0 0.0
        %2067 = vmatprep.subr.mxu0 0.0
        %2068 = vmatpush2.msra.mxu0 0.0
        %2069 = vmatprep.subr.mxu0 0.0
        %2070 = vmatpush2.msra.mxu0 0.0
        %2071 = vmatprep.subr.mxu0 0.0
        %2072 = vmatpush2.msra.mxu0 0.0
        %2073 = vmatprep.subr.mxu0 0.0
        %2074 = vmatpush2.msra.mxu0 0.0
        %2075 = vmatprep.subr.mxu0 0.0
        %2076 = vmatpush2.msra.mxu0 0.0
        %2077 = vmatprep.subr.mxu0 0.0
        %2078 = vmatpush2.msra.mxu0 0.0
        %2079 = vmatprep.mubr.f32.mxu0 0.0
        %2080 = vmatmul.mubr.f32.gmra.mxu0 %v1869
        %v2081 = vpop.f32.mrf.mxu0
        %v2082 = vadd.f32 %v1630, %v2081
        %v2083 = vpop.f32.mrf.mxu0
        %2084 = vmatprep.mubr.f32.mxu0 0.0
        %2085 = vmatmul.mubr.f32.gmra.mxu0 %v1872
        %v2086 = vpop.f32.mrf.mxu0
        %v2087 = vadd.f32 %v1635, %v2086
        %v2088 = vpop.f32.mrf.mxu0
        %2089 = vmatprep.mubr.f32.mxu0 0.0
        %2090 = vmatmul.mubr.f32.gmra.mxu0 %v1875
        %v2091 = vpop.f32.mrf.mxu0
        %v2092 = vadd.f32 %v1640, %v2091
        %v2093 = vpop.f32.mrf.mxu0
        %2094 = vmatprep.mubr.f32.mxu0 0.0
        %2095 = vmatmul.mubr.f32.gmra.mxu0 %v1878
        %v2096 = vpop.f32.mrf.mxu0
        %v2097 = vadd.f32 %v1645, %v2096
        %v2098 = vpop.f32.mrf.mxu0
        %2099 = vmatprep.mubr.f32.mxu0 0.0
        %2100 = vmatmul.mubr.f32.gmra.mxu0 %v1881
        %v2101 = vpop.f32.mrf.mxu0
        %v2102 = vadd.f32 %v1650, %v2101
        %v2103 = vpop.f32.mrf.mxu0
        %2104 = vmatprep.mubr.f32.mxu0 0.0
        %2105 = vmatmul.mubr.f32.gmra.mxu0 %v1884
        %v2106 = vpop.f32.mrf.mxu0
        %v2107 = vadd.f32 %v1655, %v2106
        %v2108 = vpop.f32.mrf.mxu0
        %2109 = vmatprep.mubr.f32.mxu0 0.0
        %2110 = vmatmul.mubr.f32.gmra.mxu0 %v1887
        %v2111 = vpop.f32.mrf.mxu0
        %v2112 = vadd.f32 %v1660, %v2111
        %v2113 = vpop.f32.mrf.mxu0
        %2114 = vmatprep.mubr.f32.mxu0 0.0
        %2115 = vmatmul.mubr.f32.gmra.mxu0 %v1890
        %v2116 = vpop.f32.mrf.mxu0
        %v2117 = vadd.f32 %v1665, %v2116
        %v2118 = vpop.f32.mrf.mxu0
        %2119 = vmatprep.mubr.f32.mxu0 0.0
        %2120 = vmatmul.mubr.f32.gmra.mxu0 %v1893
        %v2121 = vpop.f32.mrf.mxu0
        %v2122 = vadd.f32 %v1670, %v2121
        %v2123 = vpop.f32.mrf.mxu0
        %2124 = vmatprep.mubr.f32.mxu0 0.0
        %2125 = vmatmul.mubr.f32.gmra.mxu0 %v1896
        %v2126 = vpop.f32.mrf.mxu0
        %v2127 = vadd.f32 %v1675, %v2126
        %v2128 = vpop.f32.mrf.mxu0
        %2129 = vmatprep.mubr.f32.mxu0 0.0
        %2130 = vmatmul.mubr.f32.gmra.mxu0 %v1899
        %v2131 = vpop.f32.mrf.mxu0
        %v2132 = vadd.f32 %v1680, %v2131
        %v2133 = vpop.f32.mrf.mxu0
        %2134 = vmatprep.mubr.f32.mxu0 0.0
        %2135 = vmatmul.mubr.f32.gmra.mxu0 %v1902
        %v2136 = vpop.f32.mrf.mxu0
        %v2137 = vadd.f32 %v1685, %v2136
        %v2138 = vpop.f32.mrf.mxu0
        %2139 = vmatprep.mubr.f32.mxu0 0.0
        %2140 = vmatmul.mubr.f32.gmra.mxu0 %v1905
        %v2141 = vpop.f32.mrf.mxu0
        %v2142 = vadd.f32 %v1690, %v2141
        %v2143 = vpop.f32.mrf.mxu0
        %2144 = vmatprep.mubr.f32.mxu0 0.0
        %2145 = vmatmul.mubr.f32.gmra.mxu0 %v1908
        %v2146 = vpop.f32.mrf.mxu0
        %v2147 = vadd.f32 %v1695, %v2146
        %v2148 = vpop.f32.mrf.mxu0
        %2149 = vmatprep.mubr.f32.mxu0 0.0
        %2150 = vmatmul.mubr.f32.gmra.mxu0 %v1911
        %v2151 = vpop.f32.mrf.mxu0
        %v2152 = vadd.f32 %v1700, %v2151
        %v2153 = vpop.f32.mrf.mxu0
        %2154 = vmatprep.mubr.f32.mxu0 0.0
        %2155 = vmatmul.mubr.f32.gmra.mxu0 %v1914
        %v2156 = vpop.f32.mrf.mxu0
        %v2157 = vadd.f32 %v1705, %v2156
        %v2158 = vpop.f32.mrf.mxu0
        %2159 = vmatprep.mubr.f32.mxu0 0.0
        %2160 = vmatmul.mubr.f32.gmra.mxu0 %v1917
        %v2161 = vpop.f32.mrf.mxu0
        %v2162 = vadd.f32 %v1710, %v2161
        %v2163 = vpop.f32.mrf.mxu0
        %2164 = vmatprep.mubr.f32.mxu0 0.0
        %2165 = vmatmul.mubr.f32.gmra.mxu0 %v1920
        %v2166 = vpop.f32.mrf.mxu0
        %v2167 = vadd.f32 %v1715, %v2166
        %v2168 = vpop.f32.mrf.mxu0
        %2169 = vmatprep.mubr.f32.mxu0 0.0
        %2170 = vmatmul.mubr.f32.gmra.mxu0 %v1923
        %v2171 = vpop.f32.mrf.mxu0
        %v2172 = vadd.f32 %v1720, %v2171
        %v2173 = vpop.f32.mrf.mxu0
        %2174 = vmatprep.mubr.f32.mxu0 0.0
        %2175 = vmatmul.mubr.f32.gmra.mxu0 %v1926
        %v2176 = vpop.f32.mrf.mxu0
        %v2177 = vadd.f32 %v1725, %v2176
        %v2178 = vpop.f32.mrf.mxu0
        %2179 = vmatprep.mubr.f32.mxu0 0.0
        %2180 = vmatmul.mubr.f32.gmra.mxu0 %v1929
        %v2181 = vpop.f32.mrf.mxu0
        %v2182 = vadd.f32 %v1730, %v2181
        %v2183 = vpop.f32.mrf.mxu0
        %2184 = vmatprep.mubr.f32.mxu0 0.0
        %2185 = vmatmul.mubr.f32.gmra.mxu0 %v1932
        %v2186 = vpop.f32.mrf.mxu0
        %v2187 = vadd.f32 %v1735, %v2186
        %v2188 = vpop.f32.mrf.mxu0
        %2189 = vmatprep.mubr.f32.mxu0 0.0
        %2190 = vmatmul.mubr.f32.gmra.mxu0 %v1935
        %v2191 = vpop.f32.mrf.mxu0
        %v2192 = vadd.f32 %v1740, %v2191
        %v2193 = vpop.f32.mrf.mxu0
        %2194 = vmatprep.mubr.f32.mxu0 0.0
        %2195 = vmatmul.mubr.f32.gmra.mxu0 %v1938
        %v2196 = vpop.f32.mrf.mxu0
        %v2197 = vadd.f32 %v1745, %v2196
        %v2198 = vpop.f32.mrf.mxu0
        %2199 = vmatprep.mubr.f32.mxu0 0.0
        %2200 = vmatmul.mubr.f32.gmra.mxu0 %v1941
        %v2201 = vpop.f32.mrf.mxu0
        %v2202 = vadd.f32 %v1750, %v2201
        %v2203 = vpop.f32.mrf.mxu0
        %2204 = vmatprep.mubr.f32.mxu0 0.0
        %2205 = vmatmul.mubr.f32.gmra.mxu0 %v1944
        %v2206 = vpop.f32.mrf.mxu0
        %v2207 = vadd.f32 %v1755, %v2206
        %v2208 = vpop.f32.mrf.mxu0
        %2209 = vmatprep.mubr.f32.mxu0 0.0
        %2210 = vmatmul.mubr.f32.gmra.mxu0 %v1947
        %v2211 = vpop.f32.mrf.mxu0
        %v2212 = vadd.f32 %v1760, %v2211
        %v2213 = vpop.f32.mrf.mxu0
        %2214 = vmatprep.mubr.f32.mxu0 0.0
        %2215 = vmatmul.mubr.f32.gmra.mxu0 %v1950
        %v2216 = vpop.f32.mrf.mxu0
        %v2217 = vadd.f32 %v1765, %v2216
        %v2218 = vpop.f32.mrf.mxu0
        %2219 = vmatprep.mubr.f32.mxu0 0.0
        %2220 = vmatmul.mubr.f32.gmra.mxu0 %v1953
        %v2221 = vpop.f32.mrf.mxu0
        %v2222 = vadd.f32 %v1770, %v2221
        %v2223 = vpop.f32.mrf.mxu0
        %2224 = vmatprep.mubr.f32.mxu0 0.0
        %2225 = vmatmul.mubr.f32.gmra.mxu0 %v1956
        %v2226 = vpop.f32.mrf.mxu0
        %v2227 = vadd.f32 %v1775, %v2226
        %v2228 = vpop.f32.mrf.mxu0
        %2229 = vmatprep.mubr.f32.mxu0 0.0
        %2230 = vmatmul.mubr.f32.gmra.mxu0 %v1959
        %v2231 = vpop.f32.mrf.mxu0
        %v2232 = vadd.f32 %v1780, %v2231
        %v2233 = vpop.f32.mrf.mxu0
        %2234 = vmatprep.mubr.f32.mxu0 0.0
        %2235 = vmatmul.mubr.f32.gmra.mxu0 %v1962
        %v2236 = vpop.f32.mrf.mxu0
        %v2237 = vadd.f32 %v1785, %v2236
        %v2238 = vpop.f32.mrf.mxu0
        %2239 = vmatprep.mubr.f32.mxu0 0.0
        %2240 = vmatmul.mubr.f32.gmra.mxu0 %v1965
        %v2241 = vpop.f32.mrf.mxu0
        %v2242 = vadd.f32 %v1790, %v2241
        %v2243 = vpop.f32.mrf.mxu0
        %2244 = vmatprep.mubr.f32.mxu0 0.0
        %2245 = vmatmul.mubr.f32.gmra.mxu0 %v1968
        %v2246 = vpop.f32.mrf.mxu0
        %v2247 = vadd.f32 %v1795, %v2246
        %v2248 = vpop.f32.mrf.mxu0
        %2249 = vmatprep.mubr.f32.mxu0 0.0
        %2250 = vmatmul.mubr.f32.gmra.mxu0 %v1971
        %v2251 = vpop.f32.mrf.mxu0
        %v2252 = vadd.f32 %v1800, %v2251
        %v2253 = vpop.f32.mrf.mxu0
        %2254 = vmatprep.mubr.f32.mxu0 0.0
        %2255 = vmatmul.mubr.f32.gmra.mxu0 %v1974
        %v2256 = vpop.f32.mrf.mxu0
        %v2257 = vadd.f32 %v1805, %v2256
        %v2258 = vpop.f32.mrf.mxu0
        %2259 = vmatprep.mubr.f32.mxu0 0.0
        %2260 = vmatmul.mubr.f32.gmra.mxu0 %v1977
        %v2261 = vpop.f32.mrf.mxu0
        %v2262 = vadd.f32 %v1810, %v2261
        %v2263 = vpop.f32.mrf.mxu0
        %2264 = vmatprep.mubr.f32.mxu0 0.0
        %2265 = vmatmul.mubr.f32.gmra.mxu0 %v1980
        %v2266 = vpop.f32.mrf.mxu0
        %v2267 = vadd.f32 %v1815, %v2266
        %v2268 = vpop.f32.mrf.mxu0
        %2269 = vmatprep.mubr.f32.mxu0 0.0
        %2270 = vmatmul.mubr.f32.gmra.mxu0 %v1983
        %v2271 = vpop.f32.mrf.mxu0
        %v2272 = vadd.f32 %v1820, %v2271
        %v2273 = vpop.f32.mrf.mxu0
        %2274 = vmatprep.mubr.f32.mxu0 0.0
        %2275 = vmatmul.mubr.f32.gmra.mxu0 %v1986
        %v2276 = vpop.f32.mrf.mxu0
        %v2277 = vadd.f32 %v1825, %v2276
        %v2278 = vpop.f32.mrf.mxu0
        %2279 = vmatprep.mubr.f32.mxu0 0.0
        %2280 = vmatmul.mubr.f32.gmra.mxu0 %v1989
        %v2281 = vpop.f32.mrf.mxu0
        %v2282 = vadd.f32 %v1830, %v2281
        %v2283 = vpop.f32.mrf.mxu0
        %2284 = vmatprep.mubr.f32.mxu0 0.0
        %2285 = vmatmul.mubr.f32.gmra.mxu0 %v1992
        %v2286 = vpop.f32.mrf.mxu0
        %v2287 = vadd.f32 %v1835, %v2286
        %v2288 = vpop.f32.mrf.mxu0
        %2289 = vmatprep.mubr.f32.mxu0 0.0
        %2290 = vmatmul.mubr.f32.gmra.mxu0 %v1995
        %v2291 = vpop.f32.mrf.mxu0
        %v2292 = vadd.f32 %v1840, %v2291
        %v2293 = vpop.f32.mrf.mxu0
        %2294 = vmatprep.mubr.f32.mxu0 0.0
        %2295 = vmatmul.mubr.f32.gmra.mxu0 %v1998
        %v2296 = vpop.f32.mrf.mxu0
        %v2297 = vadd.f32 %v1845, %v2296
        %v2298 = vpop.f32.mrf.mxu0
        %2299 = vmatprep.mubr.f32.mxu0 0.0
        %2300 = vmatmul.mubr.f32.gmra.mxu0 %v2001
        %v2301 = vpop.f32.mrf.mxu0
        %v2302 = vadd.f32 %v1850, %v2301
        %v2303 = vpop.f32.mrf.mxu0
        %2304 = vmatprep.mubr.f32.mxu0 0.0
        %2305 = vmatmul.mubr.f32.gmra.mxu0 %v2004
        %v2306 = vpop.f32.mrf.mxu0
        %v2307 = vadd.f32 %v1855, %v2306
        %v2308 = vpop.f32.mrf.mxu0
        %2309 = vmatprep.mubr.f32.mxu0 0.0
        %2310 = vmatmul.mubr.f32.gmra.mxu0 %v2007
        %v2311 = vpop.f32.mrf.mxu0
        %v2312 = vadd.f32 %v1860, %v2311
        %v2313 = vpop.f32.mrf.mxu0
        %2314 = vmatprep.mubr.f32.mxu0 0.0
        %2315 = vmatmul.mubr.f32.gmra.mxu0 %v2010
        %v2316 = vpop.f32.mrf.mxu0
        %v2317 = vadd.f32 %v1865, %v2316
        %v2318 = vpop.f32.mrf.mxu0
        %2319 = vdwg.mxu0
        %v2320 = vld [vmem:[#allocation2 + $0x2] sm:$0xff]
        %v2321 = vld [vmem:[#allocation2 + $0x12] sm:$0xff]
        %v2322 = vld [vmem:[#allocation2 + $0x22] sm:$0xff]
        %v2323 = vld [vmem:[#allocation2 + $0x32] sm:$0xff]
        %v2324 = vld [vmem:[#allocation2 + $0x42] sm:$0xff]
        %v2325 = vld [vmem:[#allocation2 + $0x52] sm:$0xff]
        %v2326 = vld [vmem:[#allocation2 + $0x62] sm:$0xff]
        %v2327 = vld [vmem:[#allocation2 + $0x72] sm:$0xff]
        %v2328 = vld [vmem:[#allocation2 + $0x82] sm:$0xff]
        %v2329 = vld [vmem:[#allocation2 + $0x92] sm:$0xff]
        %v2330 = vld [vmem:[#allocation2 + $0xa2] sm:$0xff]
        %v2331 = vld [vmem:[#allocation2 + $0xb2] sm:$0xff]
        %v2332 = vld [vmem:[#allocation2 + $0xc2] sm:$0xff]
        %v2333 = vld [vmem:[#allocation2 + $0xd2] sm:$0xff]
        %v2334 = vld [vmem:[#allocation2 + $0xe2] sm:$0xff]
        %v2335 = vld [vmem:[#allocation2 + $0xf2] sm:$0xff]
        %v2336 = vld [vmem:[#allocation2 + $0x102] sm:$0xff]
        %v2337 = vld [vmem:[#allocation2 + $0x112] sm:$0xff]
        %v2338 = vld [vmem:[#allocation2 + $0x122] sm:$0xff]
        %v2339 = vld [vmem:[#allocation2 + $0x132] sm:$0xff]
        %v2340 = vld [vmem:[#allocation2 + $0x142] sm:$0xff]
        %v2341 = vld [vmem:[#allocation2 + $0x152] sm:$0xff]
        %v2342 = vld [vmem:[#allocation2 + $0x162] sm:$0xff]
        %v2343 = vld [vmem:[#allocation2 + $0x172] sm:$0xff]
        %v2344 = vld [vmem:[#allocation2 + $0x182] sm:$0xff]
        %v2345 = vld [vmem:[#allocation2 + $0x192] sm:$0xff]
        %v2346 = vld [vmem:[#allocation2 + $0x1a2] sm:$0xff]
        %v2347 = vld [vmem:[#allocation2 + $0x1b2] sm:$0xff]
        %v2348 = vld [vmem:[#allocation2 + $0x1c2] sm:$0xff]
        %v2349 = vld [vmem:[#allocation2 + $0x1d2] sm:$0xff]
        %v2350 = vld [vmem:[#allocation2 + $0x1e2] sm:$0xff]
        %v2351 = vld [vmem:[#allocation2 + $0x1f2] sm:$0xff]
        %v2352 = vld [vmem:[#allocation2 + $0x202] sm:$0xff]
        %v2353 = vld [vmem:[#allocation2 + $0x212] sm:$0xff]
        %v2354 = vld [vmem:[#allocation2 + $0x222] sm:$0xff]
        %v2355 = vld [vmem:[#allocation2 + $0x232] sm:$0xff]
        %v2356 = vld [vmem:[#allocation2 + $0x242] sm:$0xff]
        %v2357 = vld [vmem:[#allocation2 + $0x252] sm:$0xff]
        %v2358 = vld [vmem:[#allocation2 + $0x262] sm:$0xff]
        %v2359 = vld [vmem:[#allocation2 + $0x272] sm:$0xff]
        %v2360 = vld [vmem:[#allocation2 + $0x282] sm:$0xff]
        %v2361 = vld [vmem:[#allocation2 + $0x292] sm:$0xff]
        %v2362 = vld [vmem:[#allocation2 + $0x2a2] sm:$0xff]
        %v2363 = vld [vmem:[#allocation2 + $0x2b2] sm:$0xff]
        %v2364 = vld [vmem:[#allocation2 + $0x2c2] sm:$0xff]
        %v2365 = vld [vmem:[#allocation2 + $0x2d2] sm:$0xff]
        %v2366 = vld [vmem:[#allocation2 + $0x2e2] sm:$0xff]
        %v2367 = vld [vmem:[#allocation2 + $0x2f2] sm:$0xff]
        %s2368 = scalar_lea.vmem %s5, 8
        %v2369 = vld [vmem:[%s2368] sm:$0xf]
        %v2371 = vsel %vm1267, %v2320, 0
        %v2374 = vsel %vm1267, %v2321, 0
        %v2377 = vsel %vm1267, %v2322, 0
        %v2380 = vsel %vm1267, %v2323, 0
        %v2383 = vsel %vm1267, %v2324, 0
        %v2386 = vsel %vm1267, %v2325, 0
        %v2389 = vsel %vm1267, %v2326, 0
        %v2392 = vsel %vm1267, %v2327, 0
        %v2395 = vsel %vm1267, %v2328, 0
        %v2398 = vsel %vm1267, %v2329, 0
        %v2401 = vsel %vm1267, %v2330, 0
        %v2404 = vsel %vm1267, %v2331, 0
        %v2407 = vsel %vm1267, %v2332, 0
        %v2410 = vsel %vm1267, %v2333, 0
        %v2413 = vsel %vm1267, %v2334, 0
        %v2416 = vsel %vm1267, %v2335, 0
        %v2419 = vsel %vm1267, %v2336, 0
        %v2422 = vsel %vm1267, %v2337, 0
        %v2425 = vsel %vm1267, %v2338, 0
        %v2428 = vsel %vm1267, %v2339, 0
        %v2431 = vsel %vm1267, %v2340, 0
        %v2434 = vsel %vm1267, %v2341, 0
        %v2437 = vsel %vm1267, %v2342, 0
        %v2440 = vsel %vm1267, %v2343, 0
        %v2443 = vsel %vm1267, %v2344, 0
        %v2446 = vsel %vm1267, %v2345, 0
        %v2449 = vsel %vm1267, %v2346, 0
        %v2452 = vsel %vm1267, %v2347, 0
        %v2455 = vsel %vm1267, %v2348, 0
        %v2458 = vsel %vm1267, %v2349, 0
        %v2461 = vsel %vm1267, %v2350, 0
        %v2464 = vsel %vm1267, %v2351, 0
        %v2467 = vsel %vm1267, %v2352, 0
        %v2470 = vsel %vm1267, %v2353, 0
        %v2473 = vsel %vm1267, %v2354, 0
        %v2476 = vsel %vm1267, %v2355, 0
        %v2479 = vsel %vm1267, %v2356, 0
        %v2482 = vsel %vm1267, %v2357, 0
        %v2485 = vsel %vm1267, %v2358, 0
        %v2488 = vsel %vm1267, %v2359, 0
        %v2491 = vsel %vm1267, %v2360, 0
        %v2494 = vsel %vm1267, %v2361, 0
        %v2497 = vsel %vm1267, %v2362, 0
        %v2500 = vsel %vm1267, %v2363, 0
        %v2503 = vsel %vm1267, %v2364, 0
        %v2506 = vsel %vm1267, %v2365, 0
        %v2509 = vsel %vm1267, %v2366, 0
        %v2512 = vsel %vm1267, %v2367, 0
        %v2515 = vsel %vm1559, %v2369, 0
        %2517 = vmatprep.subr.mxu0 0.0
        %2518 = vmatpush1.msra.mxu0 0.0
        %2519 = vmatprep.subr.mxu0 0.0
        %2520 = vmatpush1.msra.mxu0 0.0
        %2521 = vmatprep.subr.mxu0 0.0
        %2522 = vmatpush1.msra.mxu0 0.0
        %2523 = vmatprep.subr.mxu0 0.0
        %2524 = vmatpush1.msra.mxu0 0.0
        %2525 = vmatprep.subr.mxu0 0.0
        %2526 = vmatpush1.msra.mxu0 0.0
        %2527 = vmatprep.subr.mxu0 0.0
        %2528 = vmatpush1.msra.mxu0 0.0
        %2529 = vmatprep.subr.mxu0 0.0
        %2530 = vmatpush1.msra.mxu0 0.0
        %2531 = vmatprep.subr.mxu0 0.0
        %2532 = vmatpush1.msra.mxu0 0.0
        %2533 = vmatprep.subr.mxu0 0.0
        %2534 = vmatpush1.msra.mxu0 0.0
        %2535 = vmatprep.subr.mxu0 0.0
        %2536 = vmatpush1.msra.mxu0 0.0
        %2537 = vmatprep.subr.mxu0 0.0
        %2538 = vmatpush1.msra.mxu0 0.0
        %2539 = vmatprep.subr.mxu0 0.0
        %2540 = vmatpush1.msra.mxu0 0.0
        %2541 = vmatprep.subr.mxu0 0.0
        %2542 = vmatpush1.msra.mxu0 0.0
        %2543 = vmatprep.subr.mxu0 0.0
        %2544 = vmatpush1.msra.mxu0 0.0
        %2545 = vmatprep.subr.mxu0 0.0
        %2546 = vmatpush1.msra.mxu0 0.0
        %2547 = vmatprep.subr.mxu0 0.0
        %2548 = vmatpush1.msra.mxu0 %v2515
        %2549 = vmatprep.subr.mxu0 0.0
        %2550 = vmatpush2.msra.mxu0 0.0
        %2551 = vmatprep.subr.mxu0 0.0
        %2552 = vmatpush2.msra.mxu0 0.0
        %2553 = vmatprep.subr.mxu0 0.0
        %2554 = vmatpush2.msra.mxu0 0.0
        %2555 = vmatprep.subr.mxu0 0.0
        %2556 = vmatpush2.msra.mxu0 0.0
        %2557 = vmatprep.subr.mxu0 0.0
        %2558 = vmatpush2.msra.mxu0 0.0
        %2559 = vmatprep.subr.mxu0 0.0
        %2560 = vmatpush2.msra.mxu0 0.0
        %2561 = vmatprep.subr.mxu0 0.0
        %2562 = vmatpush2.msra.mxu0 0.0
        %2563 = vmatprep.subr.mxu0 0.0
        %2564 = vmatpush2.msra.mxu0 0.0
        %2565 = vmatprep.subr.mxu0 0.0
        %2566 = vmatpush2.msra.mxu0 0.0
        %2567 = vmatprep.subr.mxu0 0.0
        %2568 = vmatpush2.msra.mxu0 0.0
        %2569 = vmatprep.subr.mxu0 0.0
        %2570 = vmatpush2.msra.mxu0 0.0
        %2571 = vmatprep.subr.mxu0 0.0
        %2572 = vmatpush2.msra.mxu0 0.0
        %2573 = vmatprep.subr.mxu0 0.0
        %2574 = vmatpush2.msra.mxu0 0.0
        %2575 = vmatprep.subr.mxu0 0.0
        %2576 = vmatpush2.msra.mxu0 0.0
        %2577 = vmatprep.subr.mxu0 0.0
        %2578 = vmatpush2.msra.mxu0 0.0
        %2579 = vmatprep.subr.mxu0 0.0
        %2580 = vmatpush2.msra.mxu0 0.0
        %2581 = vmatprep.mubr.f32.mxu0 0.0
        %2582 = vmatmul.mubr.f32.gmra.mxu0 %v2371
        %v2583 = vpop.f32.mrf.mxu0
        %v2584 = vadd.f32 0.0, %v2583
        %v2585 = vpop.f32.mrf.mxu0
        %2586 = vmatprep.mubr.f32.mxu0 0.0
        %2587 = vmatmul.mubr.f32.gmra.mxu0 %v2374
        %v2588 = vpop.f32.mrf.mxu0
        %v2589 = vadd.f32 0.0, %v2588
        %v2590 = vpop.f32.mrf.mxu0
        %2591 = vmatprep.mubr.f32.mxu0 0.0
        %2592 = vmatmul.mubr.f32.gmra.mxu0 %v2377
        %v2593 = vpop.f32.mrf.mxu0
        %v2594 = vadd.f32 0.0, %v2593
        %v2595 = vpop.f32.mrf.mxu0
        %2596 = vmatprep.mubr.f32.mxu0 0.0
        %2597 = vmatmul.mubr.f32.gmra.mxu0 %v2380
        %v2598 = vpop.f32.mrf.mxu0
        %v2599 = vadd.f32 0.0, %v2598
        %v2600 = vpop.f32.mrf.mxu0
        %2601 = vmatprep.mubr.f32.mxu0 0.0
        %2602 = vmatmul.mubr.f32.gmra.mxu0 %v2383
        %v2603 = vpop.f32.mrf.mxu0
        %v2604 = vadd.f32 0.0, %v2603
        %v2605 = vpop.f32.mrf.mxu0
        %2606 = vmatprep.mubr.f32.mxu0 0.0
        %2607 = vmatmul.mubr.f32.gmra.mxu0 %v2386
        %v2608 = vpop.f32.mrf.mxu0
        %v2609 = vadd.f32 0.0, %v2608
        %v2610 = vpop.f32.mrf.mxu0
        %2611 = vmatprep.mubr.f32.mxu0 0.0
        %2612 = vmatmul.mubr.f32.gmra.mxu0 %v2389
        %v2613 = vpop.f32.mrf.mxu0
        %v2614 = vadd.f32 0.0, %v2613
        %v2615 = vpop.f32.mrf.mxu0
        %2616 = vmatprep.mubr.f32.mxu0 0.0
        %2617 = vmatmul.mubr.f32.gmra.mxu0 %v2392
        %v2618 = vpop.f32.mrf.mxu0
        %v2619 = vadd.f32 0.0, %v2618
        %v2620 = vpop.f32.mrf.mxu0
        %2621 = vmatprep.mubr.f32.mxu0 0.0
        %2622 = vmatmul.mubr.f32.gmra.mxu0 %v2395
        %v2623 = vpop.f32.mrf.mxu0
        %v2624 = vadd.f32 0.0, %v2623
        %v2625 = vpop.f32.mrf.mxu0
        %2626 = vmatprep.mubr.f32.mxu0 0.0
        %2627 = vmatmul.mubr.f32.gmra.mxu0 %v2398
        %v2628 = vpop.f32.mrf.mxu0
        %v2629 = vadd.f32 0.0, %v2628
        %v2630 = vpop.f32.mrf.mxu0
        %2631 = vmatprep.mubr.f32.mxu0 0.0
        %2632 = vmatmul.mubr.f32.gmra.mxu0 %v2401
        %v2633 = vpop.f32.mrf.mxu0
        %v2634 = vadd.f32 0.0, %v2633
        %v2635 = vpop.f32.mrf.mxu0
        %2636 = vmatprep.mubr.f32.mxu0 0.0
        %2637 = vmatmul.mubr.f32.gmra.mxu0 %v2404
        %v2638 = vpop.f32.mrf.mxu0
        %v2639 = vadd.f32 0.0, %v2638
        %v2640 = vpop.f32.mrf.mxu0
        %2641 = vmatprep.mubr.f32.mxu0 0.0
        %2642 = vmatmul.mubr.f32.gmra.mxu0 %v2407
        %v2643 = vpop.f32.mrf.mxu0
        %v2644 = vadd.f32 0.0, %v2643
        %v2645 = vpop.f32.mrf.mxu0
        %2646 = vmatprep.mubr.f32.mxu0 0.0
        %2647 = vmatmul.mubr.f32.gmra.mxu0 %v2410
        %v2648 = vpop.f32.mrf.mxu0
        %v2649 = vadd.f32 0.0, %v2648
        %v2650 = vpop.f32.mrf.mxu0
        %2651 = vmatprep.mubr.f32.mxu0 0.0
        %2652 = vmatmul.mubr.f32.gmra.mxu0 %v2413
        %v2653 = vpop.f32.mrf.mxu0
        %v2654 = vadd.f32 0.0, %v2653
        %v2655 = vpop.f32.mrf.mxu0
        %2656 = vmatprep.mubr.f32.mxu0 0.0
        %2657 = vmatmul.mubr.f32.gmra.mxu0 %v2416
        %v2658 = vpop.f32.mrf.mxu0
        %v2659 = vadd.f32 0.0, %v2658
        %v2660 = vpop.f32.mrf.mxu0
        %2661 = vmatprep.mubr.f32.mxu0 0.0
        %2662 = vmatmul.mubr.f32.gmra.mxu0 %v2419
        %v2663 = vpop.f32.mrf.mxu0
        %v2664 = vadd.f32 0.0, %v2663
        %v2665 = vpop.f32.mrf.mxu0
        %2666 = vmatprep.mubr.f32.mxu0 0.0
        %2667 = vmatmul.mubr.f32.gmra.mxu0 %v2422
        %v2668 = vpop.f32.mrf.mxu0
        %v2669 = vadd.f32 0.0, %v2668
        %v2670 = vpop.f32.mrf.mxu0
        %2671 = vmatprep.mubr.f32.mxu0 0.0
        %2672 = vmatmul.mubr.f32.gmra.mxu0 %v2425
        %v2673 = vpop.f32.mrf.mxu0
        %v2674 = vadd.f32 0.0, %v2673
        %v2675 = vpop.f32.mrf.mxu0
        %2676 = vmatprep.mubr.f32.mxu0 0.0
        %2677 = vmatmul.mubr.f32.gmra.mxu0 %v2428
        %v2678 = vpop.f32.mrf.mxu0
        %v2679 = vadd.f32 0.0, %v2678
        %v2680 = vpop.f32.mrf.mxu0
        %2681 = vmatprep.mubr.f32.mxu0 0.0
        %2682 = vmatmul.mubr.f32.gmra.mxu0 %v2431
        %v2683 = vpop.f32.mrf.mxu0
        %v2684 = vadd.f32 0.0, %v2683
        %v2685 = vpop.f32.mrf.mxu0
        %2686 = vmatprep.mubr.f32.mxu0 0.0
        %2687 = vmatmul.mubr.f32.gmra.mxu0 %v2434
        %v2688 = vpop.f32.mrf.mxu0
        %v2689 = vadd.f32 0.0, %v2688
        %v2690 = vpop.f32.mrf.mxu0
        %2691 = vmatprep.mubr.f32.mxu0 0.0
        %2692 = vmatmul.mubr.f32.gmra.mxu0 %v2437
        %v2693 = vpop.f32.mrf.mxu0
        %v2694 = vadd.f32 0.0, %v2693
        %v2695 = vpop.f32.mrf.mxu0
        %2696 = vmatprep.mubr.f32.mxu0 0.0
        %2697 = vmatmul.mubr.f32.gmra.mxu0 %v2440
        %v2698 = vpop.f32.mrf.mxu0
        %v2699 = vadd.f32 0.0, %v2698
        %v2700 = vpop.f32.mrf.mxu0
        %2701 = vmatprep.mubr.f32.mxu0 0.0
        %2702 = vmatmul.mubr.f32.gmra.mxu0 %v2443
        %v2703 = vpop.f32.mrf.mxu0
        %v2704 = vadd.f32 0.0, %v2703
        %v2705 = vpop.f32.mrf.mxu0
        %2706 = vmatprep.mubr.f32.mxu0 0.0
        %2707 = vmatmul.mubr.f32.gmra.mxu0 %v2446
        %v2708 = vpop.f32.mrf.mxu0
        %v2709 = vadd.f32 0.0, %v2708
        %v2710 = vpop.f32.mrf.mxu0
        %2711 = vmatprep.mubr.f32.mxu0 0.0
        %2712 = vmatmul.mubr.f32.gmra.mxu0 %v2449
        %v2713 = vpop.f32.mrf.mxu0
        %v2714 = vadd.f32 0.0, %v2713
        %v2715 = vpop.f32.mrf.mxu0
        %2716 = vmatprep.mubr.f32.mxu0 0.0
        %2717 = vmatmul.mubr.f32.gmra.mxu0 %v2452
        %v2718 = vpop.f32.mrf.mxu0
        %v2719 = vadd.f32 0.0, %v2718
        %v2720 = vpop.f32.mrf.mxu0
        %2721 = vmatprep.mubr.f32.mxu0 0.0
        %2722 = vmatmul.mubr.f32.gmra.mxu0 %v2455
        %v2723 = vpop.f32.mrf.mxu0
        %v2724 = vadd.f32 0.0, %v2723
        %v2725 = vpop.f32.mrf.mxu0
        %2726 = vmatprep.mubr.f32.mxu0 0.0
        %2727 = vmatmul.mubr.f32.gmra.mxu0 %v2458
        %v2728 = vpop.f32.mrf.mxu0
        %v2729 = vadd.f32 0.0, %v2728
        %v2730 = vpop.f32.mrf.mxu0
        %2731 = vmatprep.mubr.f32.mxu0 0.0
        %2732 = vmatmul.mubr.f32.gmra.mxu0 %v2461
        %v2733 = vpop.f32.mrf.mxu0
        %v2734 = vadd.f32 0.0, %v2733
        %v2735 = vpop.f32.mrf.mxu0
        %2736 = vmatprep.mubr.f32.mxu0 0.0
        %2737 = vmatmul.mubr.f32.gmra.mxu0 %v2464
        %v2738 = vpop.f32.mrf.mxu0
        %v2739 = vadd.f32 0.0, %v2738
        %v2740 = vpop.f32.mrf.mxu0
        %2741 = vmatprep.mubr.f32.mxu0 0.0
        %2742 = vmatmul.mubr.f32.gmra.mxu0 %v2467
        %v2743 = vpop.f32.mrf.mxu0
        %v2744 = vadd.f32 0.0, %v2743
        %v2745 = vpop.f32.mrf.mxu0
        %2746 = vmatprep.mubr.f32.mxu0 0.0
        %2747 = vmatmul.mubr.f32.gmra.mxu0 %v2470
        %v2748 = vpop.f32.mrf.mxu0
        %v2749 = vadd.f32 0.0, %v2748
        %v2750 = vpop.f32.mrf.mxu0
        %2751 = vmatprep.mubr.f32.mxu0 0.0
        %2752 = vmatmul.mubr.f32.gmra.mxu0 %v2473
        %v2753 = vpop.f32.mrf.mxu0
        %v2754 = vadd.f32 0.0, %v2753
        %v2755 = vpop.f32.mrf.mxu0
        %2756 = vmatprep.mubr.f32.mxu0 0.0
        %2757 = vmatmul.mubr.f32.gmra.mxu0 %v2476
        %v2758 = vpop.f32.mrf.mxu0
        %v2759 = vadd.f32 0.0, %v2758
        %v2760 = vpop.f32.mrf.mxu0
        %2761 = vmatprep.mubr.f32.mxu0 0.0
        %2762 = vmatmul.mubr.f32.gmra.mxu0 %v2479
        %v2763 = vpop.f32.mrf.mxu0
        %v2764 = vadd.f32 0.0, %v2763
        %v2765 = vpop.f32.mrf.mxu0
        %2766 = vmatprep.mubr.f32.mxu0 0.0
        %2767 = vmatmul.mubr.f32.gmra.mxu0 %v2482
        %v2768 = vpop.f32.mrf.mxu0
        %v2769 = vadd.f32 0.0, %v2768
        %v2770 = vpop.f32.mrf.mxu0
        %2771 = vmatprep.mubr.f32.mxu0 0.0
        %2772 = vmatmul.mubr.f32.gmra.mxu0 %v2485
        %v2773 = vpop.f32.mrf.mxu0
        %v2774 = vadd.f32 0.0, %v2773
        %v2775 = vpop.f32.mrf.mxu0
        %2776 = vmatprep.mubr.f32.mxu0 0.0
        %2777 = vmatmul.mubr.f32.gmra.mxu0 %v2488
        %v2778 = vpop.f32.mrf.mxu0
        %v2779 = vadd.f32 0.0, %v2778
        %v2780 = vpop.f32.mrf.mxu0
        %2781 = vmatprep.mubr.f32.mxu0 0.0
        %2782 = vmatmul.mubr.f32.gmra.mxu0 %v2491
        %v2783 = vpop.f32.mrf.mxu0
        %v2784 = vadd.f32 0.0, %v2783
        %v2785 = vpop.f32.mrf.mxu0
        %2786 = vmatprep.mubr.f32.mxu0 0.0
        %2787 = vmatmul.mubr.f32.gmra.mxu0 %v2494
        %v2788 = vpop.f32.mrf.mxu0
        %v2789 = vadd.f32 0.0, %v2788
        %v2790 = vpop.f32.mrf.mxu0
        %2791 = vmatprep.mubr.f32.mxu0 0.0
        %2792 = vmatmul.mubr.f32.gmra.mxu0 %v2497
        %v2793 = vpop.f32.mrf.mxu0
        %v2794 = vadd.f32 0.0, %v2793
        %v2795 = vpop.f32.mrf.mxu0
        %2796 = vmatprep.mubr.f32.mxu0 0.0
        %2797 = vmatmul.mubr.f32.gmra.mxu0 %v2500
        %v2798 = vpop.f32.mrf.mxu0
        %v2799 = vadd.f32 0.0, %v2798
        %v2800 = vpop.f32.mrf.mxu0
        %2801 = vmatprep.mubr.f32.mxu0 0.0
        %2802 = vmatmul.mubr.f32.gmra.mxu0 %v2503
        %v2803 = vpop.f32.mrf.mxu0
        %v2804 = vadd.f32 0.0, %v2803
        %v2805 = vpop.f32.mrf.mxu0
        %2806 = vmatprep.mubr.f32.mxu0 0.0
        %2807 = vmatmul.mubr.f32.gmra.mxu0 %v2506
        %v2808 = vpop.f32.mrf.mxu0
        %v2809 = vadd.f32 0.0, %v2808
        %v2810 = vpop.f32.mrf.mxu0
        %2811 = vmatprep.mubr.f32.mxu0 0.0
        %2812 = vmatmul.mubr.f32.gmra.mxu0 %v2509
        %v2813 = vpop.f32.mrf.mxu0
        %v2814 = vadd.f32 0.0, %v2813
        %v2815 = vpop.f32.mrf.mxu0
        %2816 = vmatprep.mubr.f32.mxu0 0.0
        %2817 = vmatmul.mubr.f32.gmra.mxu0 %v2512
        %v2818 = vpop.f32.mrf.mxu0
        %v2819 = vadd.f32 0.0, %v2818
        %v2820 = vpop.f32.mrf.mxu0
        %2821 = vdwg.mxu0
        %v2822 = vadd.f32 %v2082, %v2584
        %v2823 = vadd.f32 %v2087, %v2589
        %v2824 = vadd.f32 %v2092, %v2594
        %v2825 = vadd.f32 %v2097, %v2599
        %v2826 = vadd.f32 %v2102, %v2604
        %v2827 = vadd.f32 %v2107, %v2609
        %v2828 = vadd.f32 %v2112, %v2614
        %v2829 = vadd.f32 %v2117, %v2619
        %v2830 = vadd.f32 %v2122, %v2624
        %v2831 = vadd.f32 %v2127, %v2629
        %v2832 = vadd.f32 %v2132, %v2634
        %v2833 = vadd.f32 %v2137, %v2639
        %v2834 = vadd.f32 %v2142, %v2644
        %v2835 = vadd.f32 %v2147, %v2649
        %v2836 = vadd.f32 %v2152, %v2654
        %v2837 = vadd.f32 %v2157, %v2659
        %v2838 = vadd.f32 %v2162, %v2664
        %v2839 = vadd.f32 %v2167, %v2669
        %v2840 = vadd.f32 %v2172, %v2674
        %v2841 = vadd.f32 %v2177, %v2679
        %v2842 = vadd.f32 %v2182, %v2684
        %v2843 = vadd.f32 %v2187, %v2689
        %v2844 = vadd.f32 %v2192, %v2694
        %v2845 = vadd.f32 %v2197, %v2699
        %v2846 = vadd.f32 %v2202, %v2704
        %v2847 = vadd.f32 %v2207, %v2709
        %v2848 = vadd.f32 %v2212, %v2714
        %v2849 = vadd.f32 %v2217, %v2719
        %v2850 = vadd.f32 %v2222, %v2724
        %v2851 = vadd.f32 %v2227, %v2729
        %v2852 = vadd.f32 %v2232, %v2734
        %v2853 = vadd.f32 %v2237, %v2739
        %v2854 = vadd.f32 %v2242, %v2744
        %v2855 = vadd.f32 %v2247, %v2749
        %v2856 = vadd.f32 %v2252, %v2754
        %v2857 = vadd.f32 %v2257, %v2759
        %v2858 = vadd.f32 %v2262, %v2764
        %v2859 = vadd.f32 %v2267, %v2769
        %v2860 = vadd.f32 %v2272, %v2774
        %v2861 = vadd.f32 %v2277, %v2779
        %v2862 = vadd.f32 %v2282, %v2784
        %v2863 = vadd.f32 %v2287, %v2789
        %v2864 = vadd.f32 %v2292, %v2794
        %v2865 = vadd.f32 %v2297, %v2799
        %v2866 = vadd.f32 %v2302, %v2804
        %v2867 = vadd.f32 %v2307, %v2809
        %v2868 = vadd.f32 %v2312, %v2814
        %v2869 = vadd.f32 %v2317, %v2819
        %v2870 = vld [vmem:[#allocation11] sm:$0x1]
        %v2872 = vlaneseq
        %v2873 = vshrl.u32 %v2872, 7
        %v2874 = vsub.s32 0, %v2873
        %v2875 = vrot.slane %v2870, %v2874
        %v2877 = vadd.f32 %v2822, %v2875
        %v2878 = vadd.f32 %v2823, %v2875
        %v2879 = vadd.f32 %v2824, %v2875
        %v2880 = vadd.f32 %v2825, %v2875
        %v2881 = vadd.f32 %v2826, %v2875
        %v2882 = vadd.f32 %v2827, %v2875
        %v2883 = vadd.f32 %v2828, %v2875
        %v2884 = vadd.f32 %v2829, %v2875
        %v2885 = vadd.f32 %v2830, %v2875
        %v2886 = vadd.f32 %v2831, %v2875
        %v2887 = vadd.f32 %v2832, %v2875
        %v2888 = vadd.f32 %v2833, %v2875
        %v2889 = vadd.f32 %v2834, %v2875
        %v2890 = vadd.f32 %v2835, %v2875
        %v2891 = vadd.f32 %v2836, %v2875
        %v2892 = vadd.f32 %v2837, %v2875
        %v2893 = vadd.f32 %v2838, %v2875
        %v2894 = vadd.f32 %v2839, %v2875
        %v2895 = vadd.f32 %v2840, %v2875
        %v2896 = vadd.f32 %v2841, %v2875
        %v2897 = vadd.f32 %v2842, %v2875
        %v2898 = vadd.f32 %v2843, %v2875
        %v2899 = vadd.f32 %v2844, %v2875
        %v2900 = vadd.f32 %v2845, %v2875
        %v2901 = vadd.f32 %v2846, %v2875
        %v2902 = vadd.f32 %v2847, %v2875
        %v2903 = vadd.f32 %v2848, %v2875
        %v2904 = vadd.f32 %v2849, %v2875
        %v2905 = vadd.f32 %v2850, %v2875
        %v2906 = vadd.f32 %v2851, %v2875
        %v2907 = vadd.f32 %v2852, %v2875
        %v2908 = vadd.f32 %v2853, %v2875
        %v2909 = vadd.f32 %v2854, %v2875
        %v2910 = vadd.f32 %v2855, %v2875
        %v2911 = vadd.f32 %v2856, %v2875
        %v2912 = vadd.f32 %v2857, %v2875
        %v2913 = vadd.f32 %v2858, %v2875
        %v2914 = vadd.f32 %v2859, %v2875
        %v2915 = vadd.f32 %v2860, %v2875
        %v2916 = vadd.f32 %v2861, %v2875
        %v2917 = vadd.f32 %v2862, %v2875
        %v2918 = vadd.f32 %v2863, %v2875
        %v2919 = vadd.f32 %v2864, %v2875
        %v2920 = vadd.f32 %v2865, %v2875
        %v2921 = vadd.f32 %v2866, %v2875
        %v2922 = vadd.f32 %v2867, %v2875
        %v2923 = vadd.f32 %v2868, %v2875
        %v2924 = vadd.f32 %v2869, %v2875
        %v2925 = vmax.f32 %v2877, 0.0
        %v2926 = vmax.f32 %v2878, 0.0
        %v2927 = vmax.f32 %v2879, 0.0
        %v2928 = vmax.f32 %v2880, 0.0
        %v2929 = vmax.f32 %v2881, 0.0
        %v2930 = vmax.f32 %v2882, 0.0
        %v2931 = vmax.f32 %v2883, 0.0
        %v2932 = vmax.f32 %v2884, 0.0
        %v2933 = vmax.f32 %v2885, 0.0
        %v2934 = vmax.f32 %v2886, 0.0
        %v2935 = vmax.f32 %v2887, 0.0
        %v2936 = vmax.f32 %v2888, 0.0
        %v2937 = vmax.f32 %v2889, 0.0
        %v2938 = vmax.f32 %v2890, 0.0
        %v2939 = vmax.f32 %v2891, 0.0
        %v2940 = vmax.f32 %v2892, 0.0
        %v2941 = vmax.f32 %v2893, 0.0
        %v2942 = vmax.f32 %v2894, 0.0
        %v2943 = vmax.f32 %v2895, 0.0
        %v2944 = vmax.f32 %v2896, 0.0
        %v2945 = vmax.f32 %v2897, 0.0
        %v2946 = vmax.f32 %v2898, 0.0
        %v2947 = vmax.f32 %v2899, 0.0
        %v2948 = vmax.f32 %v2900, 0.0
        %v2949 = vmax.f32 %v2901, 0.0
        %v2950 = vmax.f32 %v2902, 0.0
        %v2951 = vmax.f32 %v2903, 0.0
        %v2952 = vmax.f32 %v2904, 0.0
        %v2953 = vmax.f32 %v2905, 0.0
        %v2954 = vmax.f32 %v2906, 0.0
        %v2955 = vmax.f32 %v2907, 0.0
        %v2956 = vmax.f32 %v2908, 0.0
        %v2957 = vmax.f32 %v2909, 0.0
        %v2958 = vmax.f32 %v2910, 0.0
        %v2959 = vmax.f32 %v2911, 0.0
        %v2960 = vmax.f32 %v2912, 0.0
        %v2961 = vmax.f32 %v2913, 0.0
        %v2962 = vmax.f32 %v2914, 0.0
        %v2963 = vmax.f32 %v2915, 0.0
        %v2964 = vmax.f32 %v2916, 0.0
        %v2965 = vmax.f32 %v2917, 0.0
        %v2966 = vmax.f32 %v2918, 0.0
        %v2967 = vmax.f32 %v2919, 0.0
        %v2968 = vmax.f32 %v2920, 0.0
        %v2969 = vmax.f32 %v2921, 0.0
        %v2970 = vmax.f32 %v2922, 0.0
        %v2971 = vmax.f32 %v2923, 0.0
        %v2972 = vmax.f32 %v2924, 0.0
        %v2973 = vld [vmem:[%s7] sm:$0xf]
        %s2974 = scalar_lea.vmem %s7, 4
        %v2975 = vld [vmem:[%s2974] sm:$0xf]
        %v2977 = vsel %vm1267, %v2925, 0
        %v2980 = vsel %vm1267, %v2926, 0
        %v2983 = vsel %vm1267, %v2927, 0
        %v2986 = vsel %vm1267, %v2928, 0
        %v2989 = vsel %vm1267, %v2929, 0
        %v2992 = vsel %vm1267, %v2930, 0
        %v2995 = vsel %vm1267, %v2931, 0
        %v2998 = vsel %vm1267, %v2932, 0
        %v3001 = vsel %vm1267, %v2933, 0
        %v3004 = vsel %vm1267, %v2934, 0
        %v3007 = vsel %vm1267, %v2935, 0
        %v3010 = vsel %vm1267, %v2936, 0
        %v3013 = vsel %vm1267, %v2937, 0
        %v3016 = vsel %vm1267, %v2938, 0
        %v3019 = vsel %vm1267, %v2939, 0
        %v3022 = vsel %vm1267, %v2940, 0
        %v3025 = vsel %vm1267, %v2941, 0
        %v3028 = vsel %vm1267, %v2942, 0
        %v3031 = vsel %vm1267, %v2943, 0
        %v3034 = vsel %vm1267, %v2944, 0
        %v3037 = vsel %vm1267, %v2945, 0
        %v3040 = vsel %vm1267, %v2946, 0
        %v3043 = vsel %vm1267, %v2947, 0
        %v3046 = vsel %vm1267, %v2948, 0
        %v3049 = vsel %vm1267, %v2949, 0
        %v3052 = vsel %vm1267, %v2950, 0
        %v3055 = vsel %vm1267, %v2951, 0
        %v3058 = vsel %vm1267, %v2952, 0
        %v3061 = vsel %vm1267, %v2953, 0
        %v3064 = vsel %vm1267, %v2954, 0
        %v3067 = vsel %vm1267, %v2955, 0
        %v3070 = vsel %vm1267, %v2956, 0
        %v3073 = vsel %vm1267, %v2957, 0
        %v3076 = vsel %vm1267, %v2958, 0
        %v3079 = vsel %vm1267, %v2959, 0
        %v3082 = vsel %vm1267, %v2960, 0
        %v3085 = vsel %vm1267, %v2961, 0
        %v3088 = vsel %vm1267, %v2962, 0
        %v3091 = vsel %vm1267, %v2963, 0
        %v3094 = vsel %vm1267, %v2964, 0
        %v3097 = vsel %vm1267, %v2965, 0
        %v3100 = vsel %vm1267, %v2966, 0
        %v3103 = vsel %vm1267, %v2967, 0
        %v3106 = vsel %vm1267, %v2968, 0
        %v3109 = vsel %vm1267, %v2969, 0
        %v3112 = vsel %vm1267, %v2970, 0
        %v3115 = vsel %vm1267, %v2971, 0
        %v3118 = vsel %vm1267, %v2972, 0
        %v3121 = vsel %vm1559, %v2975, 0
        %3123 = vmatprep.subr.mxu0 0.0
        %3124 = vmatpush1.msra.mxu0 0.0
        %3125 = vmatprep.subr.mxu0 0.0
        %3126 = vmatpush1.msra.mxu0 0.0
        %3127 = vmatprep.subr.mxu0 0.0
        %3128 = vmatpush1.msra.mxu0 0.0
        %3129 = vmatprep.subr.mxu0 0.0
        %3130 = vmatpush1.msra.mxu0 0.0
        %3131 = vmatprep.subr.mxu0 0.0
        %3132 = vmatpush1.msra.mxu0 0.0
        %3133 = vmatprep.subr.mxu0 0.0
        %3134 = vmatpush1.msra.mxu0 0.0
        %3135 = vmatprep.subr.mxu0 0.0
        %3136 = vmatpush1.msra.mxu0 0.0
        %3137 = vmatprep.subr.mxu0 0.0
        %3138 = vmatpush1.msra.mxu0 0.0
        %3139 = vmatprep.subr.mxu0 0.0
        %3140 = vmatpush1.msra.mxu0 0.0
        %3141 = vmatprep.subr.mxu0 0.0
        %3142 = vmatpush1.msra.mxu0 0.0
        %3143 = vmatprep.subr.mxu0 0.0
        %3144 = vmatpush1.msra.mxu0 0.0
        %3145 = vmatprep.subr.mxu0 0.0
        %3146 = vmatpush1.msra.mxu0 0.0
        %3147 = vmatprep.subr.mxu0 0.0
        %3148 = vmatpush1.msra.mxu0 0.0
        %3149 = vmatprep.subr.mxu0 0.0
        %3150 = vmatpush1.msra.mxu0 0.0
        %3151 = vmatprep.subr.mxu0 0.0
        %3152 = vmatpush1.msra.mxu0 0.0
        %3153 = vmatprep.subr.mxu0 0.0
        %3154 = vmatpush1.msra.mxu0 %v3121
        %3155 = vmatprep.subr.mxu0 0.0
        %3156 = vmatpush2.msra.mxu0 0.0
        %3157 = vmatprep.subr.mxu0 0.0
        %3158 = vmatpush2.msra.mxu0 0.0
        %3159 = vmatprep.subr.mxu0 0.0
        %3160 = vmatpush2.msra.mxu0 0.0
        %3161 = vmatprep.subr.mxu0 0.0
        %3162 = vmatpush2.msra.mxu0 0.0
        %3163 = vmatprep.subr.mxu0 0.0
        %3164 = vmatpush2.msra.mxu0 0.0
        %3165 = vmatprep.subr.mxu0 0.0
        %3166 = vmatpush2.msra.mxu0 0.0
        %3167 = vmatprep.subr.mxu0 0.0
        %3168 = vmatpush2.msra.mxu0 0.0
        %3169 = vmatprep.subr.mxu0 0.0
        %3170 = vmatpush2.msra.mxu0 0.0
        %3171 = vmatprep.subr.mxu0 0.0
        %3172 = vmatpush2.msra.mxu0 0.0
        %3173 = vmatprep.subr.mxu0 0.0
        %3174 = vmatpush2.msra.mxu0 0.0
        %3175 = vmatprep.subr.mxu0 0.0
        %3176 = vmatpush2.msra.mxu0 0.0
        %3177 = vmatprep.subr.mxu0 0.0
        %3178 = vmatpush2.msra.mxu0 0.0
        %3179 = vmatprep.subr.mxu0 0.0
        %3180 = vmatpush2.msra.mxu0 0.0
        %3181 = vmatprep.subr.mxu0 0.0
        %3182 = vmatpush2.msra.mxu0 0.0
        %3183 = vmatprep.subr.mxu0 0.0
        %3184 = vmatpush2.msra.mxu0 0.0
        %3185 = vmatprep.subr.mxu0 0.0
        %3186 = vmatpush2.msra.mxu0 0.0
        %3187 = vmatprep.mubr.f32.mxu0 0.0
        %3188 = vmatmul.mubr.f32.gmra.mxu0 %v2977
        %v3189 = vpop.f32.mrf.mxu0
        %v3190 = vadd.f32 0.0, %v3189
        %v3191 = vpop.f32.mrf.mxu0
        %3192 = vmatprep.mubr.f32.mxu0 0.0
        %3193 = vmatmul.mubr.f32.gmra.mxu0 %v2980
        %v3194 = vpop.f32.mrf.mxu0
        %v3195 = vadd.f32 0.0, %v3194
        %v3196 = vpop.f32.mrf.mxu0
        %3197 = vmatprep.mubr.f32.mxu0 0.0
        %3198 = vmatmul.mubr.f32.gmra.mxu0 %v2983
        %v3199 = vpop.f32.mrf.mxu0
        %v3200 = vadd.f32 0.0, %v3199
        %v3201 = vpop.f32.mrf.mxu0
        %3202 = vmatprep.mubr.f32.mxu0 0.0
        %3203 = vmatmul.mubr.f32.gmra.mxu0 %v2986
        %v3204 = vpop.f32.mrf.mxu0
        %v3205 = vadd.f32 0.0, %v3204
        %v3206 = vpop.f32.mrf.mxu0
        %3207 = vmatprep.mubr.f32.mxu0 0.0
        %3208 = vmatmul.mubr.f32.gmra.mxu0 %v2989
        %v3209 = vpop.f32.mrf.mxu0
        %v3210 = vadd.f32 0.0, %v3209
        %v3211 = vpop.f32.mrf.mxu0
        %3212 = vmatprep.mubr.f32.mxu0 0.0
        %3213 = vmatmul.mubr.f32.gmra.mxu0 %v2992
        %v3214 = vpop.f32.mrf.mxu0
        %v3215 = vadd.f32 0.0, %v3214
        %v3216 = vpop.f32.mrf.mxu0
        %3217 = vmatprep.mubr.f32.mxu0 0.0
        %3218 = vmatmul.mubr.f32.gmra.mxu0 %v2995
        %v3219 = vpop.f32.mrf.mxu0
        %v3220 = vadd.f32 0.0, %v3219
        %v3221 = vpop.f32.mrf.mxu0
        %3222 = vmatprep.mubr.f32.mxu0 0.0
        %3223 = vmatmul.mubr.f32.gmra.mxu0 %v2998
        %v3224 = vpop.f32.mrf.mxu0
        %v3225 = vadd.f32 0.0, %v3224
        %v3226 = vpop.f32.mrf.mxu0
        %3227 = vmatprep.mubr.f32.mxu0 0.0
        %3228 = vmatmul.mubr.f32.gmra.mxu0 %v3001
        %v3229 = vpop.f32.mrf.mxu0
        %v3230 = vadd.f32 0.0, %v3229
        %v3231 = vpop.f32.mrf.mxu0
        %3232 = vmatprep.mubr.f32.mxu0 0.0
        %3233 = vmatmul.mubr.f32.gmra.mxu0 %v3004
        %v3234 = vpop.f32.mrf.mxu0
        %v3235 = vadd.f32 0.0, %v3234
        %v3236 = vpop.f32.mrf.mxu0
        %3237 = vmatprep.mubr.f32.mxu0 0.0
        %3238 = vmatmul.mubr.f32.gmra.mxu0 %v3007
        %v3239 = vpop.f32.mrf.mxu0
        %v3240 = vadd.f32 0.0, %v3239
        %v3241 = vpop.f32.mrf.mxu0
        %3242 = vmatprep.mubr.f32.mxu0 0.0
        %3243 = vmatmul.mubr.f32.gmra.mxu0 %v3010
        %v3244 = vpop.f32.mrf.mxu0
        %v3245 = vadd.f32 0.0, %v3244
        %v3246 = vpop.f32.mrf.mxu0
        %3247 = vmatprep.mubr.f32.mxu0 0.0
        %3248 = vmatmul.mubr.f32.gmra.mxu0 %v3013
        %v3249 = vpop.f32.mrf.mxu0
        %v3250 = vadd.f32 0.0, %v3249
        %v3251 = vpop.f32.mrf.mxu0
        %3252 = vmatprep.mubr.f32.mxu0 0.0
        %3253 = vmatmul.mubr.f32.gmra.mxu0 %v3016
        %v3254 = vpop.f32.mrf.mxu0
        %v3255 = vadd.f32 0.0, %v3254
        %v3256 = vpop.f32.mrf.mxu0
        %3257 = vmatprep.mubr.f32.mxu0 0.0
        %3258 = vmatmul.mubr.f32.gmra.mxu0 %v3019
        %v3259 = vpop.f32.mrf.mxu0
        %v3260 = vadd.f32 0.0, %v3259
        %v3261 = vpop.f32.mrf.mxu0
        %3262 = vmatprep.mubr.f32.mxu0 0.0
        %3263 = vmatmul.mubr.f32.gmra.mxu0 %v3022
        %v3264 = vpop.f32.mrf.mxu0
        %v3265 = vadd.f32 0.0, %v3264
        %v3266 = vpop.f32.mrf.mxu0
        %3267 = vmatprep.mubr.f32.mxu0 0.0
        %3268 = vmatmul.mubr.f32.gmra.mxu0 %v3025
        %v3269 = vpop.f32.mrf.mxu0
        %v3270 = vadd.f32 0.0, %v3269
        %v3271 = vpop.f32.mrf.mxu0
        %3272 = vmatprep.mubr.f32.mxu0 0.0
        %3273 = vmatmul.mubr.f32.gmra.mxu0 %v3028
        %v3274 = vpop.f32.mrf.mxu0
        %v3275 = vadd.f32 0.0, %v3274
        %v3276 = vpop.f32.mrf.mxu0
        %3277 = vmatprep.mubr.f32.mxu0 0.0
        %3278 = vmatmul.mubr.f32.gmra.mxu0 %v3031
        %v3279 = vpop.f32.mrf.mxu0
        %v3280 = vadd.f32 0.0, %v3279
        %v3281 = vpop.f32.mrf.mxu0
        %3282 = vmatprep.mubr.f32.mxu0 0.0
        %3283 = vmatmul.mubr.f32.gmra.mxu0 %v3034
        %v3284 = vpop.f32.mrf.mxu0
        %v3285 = vadd.f32 0.0, %v3284
        %v3286 = vpop.f32.mrf.mxu0
        %3287 = vmatprep.mubr.f32.mxu0 0.0
        %3288 = vmatmul.mubr.f32.gmra.mxu0 %v3037
        %v3289 = vpop.f32.mrf.mxu0
        %v3290 = vadd.f32 0.0, %v3289
        %v3291 = vpop.f32.mrf.mxu0
        %3292 = vmatprep.mubr.f32.mxu0 0.0
        %3293 = vmatmul.mubr.f32.gmra.mxu0 %v3040
        %v3294 = vpop.f32.mrf.mxu0
        %v3295 = vadd.f32 0.0, %v3294
        %v3296 = vpop.f32.mrf.mxu0
        %3297 = vmatprep.mubr.f32.mxu0 0.0
        %3298 = vmatmul.mubr.f32.gmra.mxu0 %v3043
        %v3299 = vpop.f32.mrf.mxu0
        %v3300 = vadd.f32 0.0, %v3299
        %v3301 = vpop.f32.mrf.mxu0
        %3302 = vmatprep.mubr.f32.mxu0 0.0
        %3303 = vmatmul.mubr.f32.gmra.mxu0 %v3046
        %v3304 = vpop.f32.mrf.mxu0
        %v3305 = vadd.f32 0.0, %v3304
        %v3306 = vpop.f32.mrf.mxu0
        %3307 = vmatprep.mubr.f32.mxu0 0.0
        %3308 = vmatmul.mubr.f32.gmra.mxu0 %v3049
        %v3309 = vpop.f32.mrf.mxu0
        %v3310 = vadd.f32 0.0, %v3309
        %v3311 = vpop.f32.mrf.mxu0
        %3312 = vmatprep.mubr.f32.mxu0 0.0
        %3313 = vmatmul.mubr.f32.gmra.mxu0 %v3052
        %v3314 = vpop.f32.mrf.mxu0
        %v3315 = vadd.f32 0.0, %v3314
        %v3316 = vpop.f32.mrf.mxu0
        %3317 = vmatprep.mubr.f32.mxu0 0.0
        %3318 = vmatmul.mubr.f32.gmra.mxu0 %v3055
        %v3319 = vpop.f32.mrf.mxu0
        %v3320 = vadd.f32 0.0, %v3319
        %v3321 = vpop.f32.mrf.mxu0
        %3322 = vmatprep.mubr.f32.mxu0 0.0
        %3323 = vmatmul.mubr.f32.gmra.mxu0 %v3058
        %v3324 = vpop.f32.mrf.mxu0
        %v3325 = vadd.f32 0.0, %v3324
        %v3326 = vpop.f32.mrf.mxu0
        %3327 = vmatprep.mubr.f32.mxu0 0.0
        %3328 = vmatmul.mubr.f32.gmra.mxu0 %v3061
        %v3329 = vpop.f32.mrf.mxu0
        %v3330 = vadd.f32 0.0, %v3329
        %v3331 = vpop.f32.mrf.mxu0
        %3332 = vmatprep.mubr.f32.mxu0 0.0
        %3333 = vmatmul.mubr.f32.gmra.mxu0 %v3064
        %v3334 = vpop.f32.mrf.mxu0
        %v3335 = vadd.f32 0.0, %v3334
        %v3336 = vpop.f32.mrf.mxu0
        %3337 = vmatprep.mubr.f32.mxu0 0.0
        %3338 = vmatmul.mubr.f32.gmra.mxu0 %v3067
        %v3339 = vpop.f32.mrf.mxu0
        %v3340 = vadd.f32 0.0, %v3339
        %v3341 = vpop.f32.mrf.mxu0
        %3342 = vmatprep.mubr.f32.mxu0 0.0
        %3343 = vmatmul.mubr.f32.gmra.mxu0 %v3070
        %v3344 = vpop.f32.mrf.mxu0
        %v3345 = vadd.f32 0.0, %v3344
        %v3346 = vpop.f32.mrf.mxu0
        %3347 = vmatprep.mubr.f32.mxu0 0.0
        %3348 = vmatmul.mubr.f32.gmra.mxu0 %v3073
        %v3349 = vpop.f32.mrf.mxu0
        %v3350 = vadd.f32 0.0, %v3349
        %v3351 = vpop.f32.mrf.mxu0
        %3352 = vmatprep.mubr.f32.mxu0 0.0
        %3353 = vmatmul.mubr.f32.gmra.mxu0 %v3076
        %v3354 = vpop.f32.mrf.mxu0
        %v3355 = vadd.f32 0.0, %v3354
        %v3356 = vpop.f32.mrf.mxu0
        %3357 = vmatprep.mubr.f32.mxu0 0.0
        %3358 = vmatmul.mubr.f32.gmra.mxu0 %v3079
        %v3359 = vpop.f32.mrf.mxu0
        %v3360 = vadd.f32 0.0, %v3359
        %v3361 = vpop.f32.mrf.mxu0
        %3362 = vmatprep.mubr.f32.mxu0 0.0
        %3363 = vmatmul.mubr.f32.gmra.mxu0 %v3082
        %v3364 = vpop.f32.mrf.mxu0
        %v3365 = vadd.f32 0.0, %v3364
        %v3366 = vpop.f32.mrf.mxu0
        %3367 = vmatprep.mubr.f32.mxu0 0.0
        %3368 = vmatmul.mubr.f32.gmra.mxu0 %v3085
        %v3369 = vpop.f32.mrf.mxu0
        %v3370 = vadd.f32 0.0, %v3369
        %v3371 = vpop.f32.mrf.mxu0
        %3372 = vmatprep.mubr.f32.mxu0 0.0
        %3373 = vmatmul.mubr.f32.gmra.mxu0 %v3088
        %v3374 = vpop.f32.mrf.mxu0
        %v3375 = vadd.f32 0.0, %v3374
        %v3376 = vpop.f32.mrf.mxu0
        %3377 = vmatprep.mubr.f32.mxu0 0.0
        %3378 = vmatmul.mubr.f32.gmra.mxu0 %v3091
        %v3379 = vpop.f32.mrf.mxu0
        %v3380 = vadd.f32 0.0, %v3379
        %v3381 = vpop.f32.mrf.mxu0
        %3382 = vmatprep.mubr.f32.mxu0 0.0
        %3383 = vmatmul.mubr.f32.gmra.mxu0 %v3094
        %v3384 = vpop.f32.mrf.mxu0
        %v3385 = vadd.f32 0.0, %v3384
        %v3386 = vpop.f32.mrf.mxu0
        %3387 = vmatprep.mubr.f32.mxu0 0.0
        %3388 = vmatmul.mubr.f32.gmra.mxu0 %v3097
        %v3389 = vpop.f32.mrf.mxu0
        %v3390 = vadd.f32 0.0, %v3389
        %v3391 = vpop.f32.mrf.mxu0
        %3392 = vmatprep.mubr.f32.mxu0 0.0
        %3393 = vmatmul.mubr.f32.gmra.mxu0 %v3100
        %v3394 = vpop.f32.mrf.mxu0
        %v3395 = vadd.f32 0.0, %v3394
        %v3396 = vpop.f32.mrf.mxu0
        %3397 = vmatprep.mubr.f32.mxu0 0.0
        %3398 = vmatmul.mubr.f32.gmra.mxu0 %v3103
        %v3399 = vpop.f32.mrf.mxu0
        %v3400 = vadd.f32 0.0, %v3399
        %v3401 = vpop.f32.mrf.mxu0
        %3402 = vmatprep.mubr.f32.mxu0 0.0
        %3403 = vmatmul.mubr.f32.gmra.mxu0 %v3106
        %v3404 = vpop.f32.mrf.mxu0
        %v3405 = vadd.f32 0.0, %v3404
        %v3406 = vpop.f32.mrf.mxu0
        %3407 = vmatprep.mubr.f32.mxu0 0.0
        %3408 = vmatmul.mubr.f32.gmra.mxu0 %v3109
        %v3409 = vpop.f32.mrf.mxu0
        %v3410 = vadd.f32 0.0, %v3409
        %v3411 = vpop.f32.mrf.mxu0
        %3412 = vmatprep.mubr.f32.mxu0 0.0
        %3413 = vmatmul.mubr.f32.gmra.mxu0 %v3112
        %v3414 = vpop.f32.mrf.mxu0
        %v3415 = vadd.f32 0.0, %v3414
        %v3416 = vpop.f32.mrf.mxu0
        %3417 = vmatprep.mubr.f32.mxu0 0.0
        %3418 = vmatmul.mubr.f32.gmra.mxu0 %v3115
        %v3419 = vpop.f32.mrf.mxu0
        %v3420 = vadd.f32 0.0, %v3419
        %v3421 = vpop.f32.mrf.mxu0
        %3422 = vmatprep.mubr.f32.mxu0 0.0
        %3423 = vmatmul.mubr.f32.gmra.mxu0 %v3118
        %v3424 = vpop.f32.mrf.mxu0
        %v3425 = vadd.f32 0.0, %v3424
        %v3426 = vpop.f32.mrf.mxu0
        %3427 = vdwg.mxu0
        %v3429 = vsel %vm1267, 0.0, 0
        %v3432 = vsel %vm1559, %v2973, 0
        %3434 = vmatprep.subr.mxu0 0.0
        %3435 = vmatpush1.msra.mxu0 0.0
        %3436 = vmatprep.subr.mxu0 0.0
        %3437 = vmatpush1.msra.mxu0 0.0
        %3438 = vmatprep.subr.mxu0 0.0
        %3439 = vmatpush1.msra.mxu0 0.0
        %3440 = vmatprep.subr.mxu0 0.0
        %3441 = vmatpush1.msra.mxu0 0.0
        %3442 = vmatprep.subr.mxu0 0.0
        %3443 = vmatpush1.msra.mxu0 0.0
        %3444 = vmatprep.subr.mxu0 0.0
        %3445 = vmatpush1.msra.mxu0 0.0
        %3446 = vmatprep.subr.mxu0 0.0
        %3447 = vmatpush1.msra.mxu0 0.0
        %3448 = vmatprep.subr.mxu0 0.0
        %3449 = vmatpush1.msra.mxu0 0.0
        %3450 = vmatprep.subr.mxu0 0.0
        %3451 = vmatpush1.msra.mxu0 0.0
        %3452 = vmatprep.subr.mxu0 0.0
        %3453 = vmatpush1.msra.mxu0 0.0
        %3454 = vmatprep.subr.mxu0 0.0
        %3455 = vmatpush1.msra.mxu0 0.0
        %3456 = vmatprep.subr.mxu0 0.0
        %3457 = vmatpush1.msra.mxu0 0.0
        %3458 = vmatprep.subr.mxu0 0.0
        %3459 = vmatpush1.msra.mxu0 0.0
        %3460 = vmatprep.subr.mxu0 0.0
        %3461 = vmatpush1.msra.mxu0 0.0
        %3462 = vmatprep.subr.mxu0 0.0
        %3463 = vmatpush1.msra.mxu0 0.0
        %3464 = vmatprep.subr.mxu0 0.0
        %3465 = vmatpush1.msra.mxu0 %v3432
        %3466 = vmatprep.subr.mxu0 0.0
        %3467 = vmatpush2.msra.mxu0 0.0
        %3468 = vmatprep.subr.mxu0 0.0
        %3469 = vmatpush2.msra.mxu0 0.0
        %3470 = vmatprep.subr.mxu0 0.0
        %3471 = vmatpush2.msra.mxu0 0.0
        %3472 = vmatprep.subr.mxu0 0.0
        %3473 = vmatpush2.msra.mxu0 0.0
        %3474 = vmatprep.subr.mxu0 0.0
        %3475 = vmatpush2.msra.mxu0 0.0
        %3476 = vmatprep.subr.mxu0 0.0
        %3477 = vmatpush2.msra.mxu0 0.0
        %3478 = vmatprep.subr.mxu0 0.0
        %3479 = vmatpush2.msra.mxu0 0.0
        %3480 = vmatprep.subr.mxu0 0.0
        %3481 = vmatpush2.msra.mxu0 0.0
        %3482 = vmatprep.subr.mxu0 0.0
        %3483 = vmatpush2.msra.mxu0 0.0
        %3484 = vmatprep.subr.mxu0 0.0
        %3485 = vmatpush2.msra.mxu0 0.0
        %3486 = vmatprep.subr.mxu0 0.0
        %3487 = vmatpush2.msra.mxu0 0.0
        %3488 = vmatprep.subr.mxu0 0.0
        %3489 = vmatpush2.msra.mxu0 0.0
        %3490 = vmatprep.subr.mxu0 0.0
        %3491 = vmatpush2.msra.mxu0 0.0
        %3492 = vmatprep.subr.mxu0 0.0
        %3493 = vmatpush2.msra.mxu0 0.0
        %3494 = vmatprep.subr.mxu0 0.0
        %3495 = vmatpush2.msra.mxu0 0.0
        %3496 = vmatprep.subr.mxu0 0.0
        %3497 = vmatpush2.msra.mxu0 0.0
        %3498 = vmatprep.mubr.f32.mxu0 0.0
        %3499 = vmatmul.mubr.f32.gmra.mxu0 %v3429
        %v3500 = vpop.f32.mrf.mxu0
        %v3501 = vadd.f32 %v3190, %v3500
        %v3502 = vpop.f32.mrf.mxu0
        %3503 = vmatprep.mubr.f32.mxu0 0.0
        %3504 = vmatmul.mubr.f32.gmra.mxu0 %v2977
        %v3505 = vpop.f32.mrf.mxu0
        %v3506 = vadd.f32 %v3195, %v3505
        %v3507 = vpop.f32.mrf.mxu0
        %3508 = vmatprep.mubr.f32.mxu0 0.0
        %3509 = vmatmul.mubr.f32.gmra.mxu0 %v2980
        %v3510 = vpop.f32.mrf.mxu0
        %v3511 = vadd.f32 %v3200, %v3510
        %v3512 = vpop.f32.mrf.mxu0
        %3513 = vmatprep.mubr.f32.mxu0 0.0
        %3514 = vmatmul.mubr.f32.gmra.mxu0 %v2983
        %v3515 = vpop.f32.mrf.mxu0
        %v3516 = vadd.f32 %v3205, %v3515
        %v3517 = vpop.f32.mrf.mxu0
        %3518 = vmatprep.mubr.f32.mxu0 0.0
        %3519 = vmatmul.mubr.f32.gmra.mxu0 %v2986
        %v3520 = vpop.f32.mrf.mxu0
        %v3521 = vadd.f32 %v3210, %v3520
        %v3522 = vpop.f32.mrf.mxu0
        %3523 = vmatprep.mubr.f32.mxu0 0.0
        %3524 = vmatmul.mubr.f32.gmra.mxu0 %v2989
        %v3525 = vpop.f32.mrf.mxu0
        %v3526 = vadd.f32 %v3215, %v3525
        %v3527 = vpop.f32.mrf.mxu0
        %3528 = vmatprep.mubr.f32.mxu0 0.0
        %3529 = vmatmul.mubr.f32.gmra.mxu0 %v2992
        %v3530 = vpop.f32.mrf.mxu0
        %v3531 = vadd.f32 %v3220, %v3530
        %v3532 = vpop.f32.mrf.mxu0
        %3533 = vmatprep.mubr.f32.mxu0 0.0
        %3534 = vmatmul.mubr.f32.gmra.mxu0 %v2995
        %v3535 = vpop.f32.mrf.mxu0
        %v3536 = vadd.f32 %v3225, %v3535
        %v3537 = vpop.f32.mrf.mxu0
        %3538 = vmatprep.mubr.f32.mxu0 0.0
        %3539 = vmatmul.mubr.f32.gmra.mxu0 %v3429
        %v3540 = vpop.f32.mrf.mxu0
        %v3541 = vadd.f32 %v3230, %v3540
        %v3542 = vpop.f32.mrf.mxu0
        %3543 = vmatprep.mubr.f32.mxu0 0.0
        %3544 = vmatmul.mubr.f32.gmra.mxu0 %v3001
        %v3545 = vpop.f32.mrf.mxu0
        %v3546 = vadd.f32 %v3235, %v3545
        %v3547 = vpop.f32.mrf.mxu0
        %3548 = vmatprep.mubr.f32.mxu0 0.0
        %3549 = vmatmul.mubr.f32.gmra.mxu0 %v3004
        %v3550 = vpop.f32.mrf.mxu0
        %v3551 = vadd.f32 %v3240, %v3550
        %v3552 = vpop.f32.mrf.mxu0
        %3553 = vmatprep.mubr.f32.mxu0 0.0
        %3554 = vmatmul.mubr.f32.gmra.mxu0 %v3007
        %v3555 = vpop.f32.mrf.mxu0
        %v3556 = vadd.f32 %v3245, %v3555
        %v3557 = vpop.f32.mrf.mxu0
        %3558 = vmatprep.mubr.f32.mxu0 0.0
        %3559 = vmatmul.mubr.f32.gmra.mxu0 %v3010
        %v3560 = vpop.f32.mrf.mxu0
        %v3561 = vadd.f32 %v3250, %v3560
        %v3562 = vpop.f32.mrf.mxu0
        %3563 = vmatprep.mubr.f32.mxu0 0.0
        %3564 = vmatmul.mubr.f32.gmra.mxu0 %v3013
        %v3565 = vpop.f32.mrf.mxu0
        %v3566 = vadd.f32 %v3255, %v3565
        %v3567 = vpop.f32.mrf.mxu0
        %3568 = vmatprep.mubr.f32.mxu0 0.0
        %3569 = vmatmul.mubr.f32.gmra.mxu0 %v3016
        %v3570 = vpop.f32.mrf.mxu0
        %v3571 = vadd.f32 %v3260, %v3570
        %v3572 = vpop.f32.mrf.mxu0
        %3573 = vmatprep.mubr.f32.mxu0 0.0
        %3574 = vmatmul.mubr.f32.gmra.mxu0 %v3019
        %v3575 = vpop.f32.mrf.mxu0
        %v3576 = vadd.f32 %v3265, %v3575
        %v3577 = vpop.f32.mrf.mxu0
        %3578 = vmatprep.mubr.f32.mxu0 0.0
        %3579 = vmatmul.mubr.f32.gmra.mxu0 %v3429
        %v3580 = vpop.f32.mrf.mxu0
        %v3581 = vadd.f32 %v3270, %v3580
        %v3582 = vpop.f32.mrf.mxu0
        %3583 = vmatprep.mubr.f32.mxu0 0.0
        %3584 = vmatmul.mubr.f32.gmra.mxu0 %v3025
        %v3585 = vpop.f32.mrf.mxu0
        %v3586 = vadd.f32 %v3275, %v3585
        %v3587 = vpop.f32.mrf.mxu0
        %3588 = vmatprep.mubr.f32.mxu0 0.0
        %3589 = vmatmul.mubr.f32.gmra.mxu0 %v3028
        %v3590 = vpop.f32.mrf.mxu0
        %v3591 = vadd.f32 %v3280, %v3590
        %v3592 = vpop.f32.mrf.mxu0
        %3593 = vmatprep.mubr.f32.mxu0 0.0
        %3594 = vmatmul.mubr.f32.gmra.mxu0 %v3031
        %v3595 = vpop.f32.mrf.mxu0
        %v3596 = vadd.f32 %v3285, %v3595
        %v3597 = vpop.f32.mrf.mxu0
        %3598 = vmatprep.mubr.f32.mxu0 0.0
        %3599 = vmatmul.mubr.f32.gmra.mxu0 %v3034
        %v3600 = vpop.f32.mrf.mxu0
        %v3601 = vadd.f32 %v3290, %v3600
        %v3602 = vpop.f32.mrf.mxu0
        %3603 = vmatprep.mubr.f32.mxu0 0.0
        %3604 = vmatmul.mubr.f32.gmra.mxu0 %v3037
        %v3605 = vpop.f32.mrf.mxu0
        %v3606 = vadd.f32 %v3295, %v3605
        %v3607 = vpop.f32.mrf.mxu0
        %3608 = vmatprep.mubr.f32.mxu0 0.0
        %3609 = vmatmul.mubr.f32.gmra.mxu0 %v3040
        %v3610 = vpop.f32.mrf.mxu0
        %v3611 = vadd.f32 %v3300, %v3610
        %v3612 = vpop.f32.mrf.mxu0
        %3613 = vmatprep.mubr.f32.mxu0 0.0
        %3614 = vmatmul.mubr.f32.gmra.mxu0 %v3043
        %v3615 = vpop.f32.mrf.mxu0
        %v3616 = vadd.f32 %v3305, %v3615
        %v3617 = vpop.f32.mrf.mxu0
        %3618 = vmatprep.mubr.f32.mxu0 0.0
        %3619 = vmatmul.mubr.f32.gmra.mxu0 %v3429
        %v3620 = vpop.f32.mrf.mxu0
        %v3621 = vadd.f32 %v3310, %v3620
        %v3622 = vpop.f32.mrf.mxu0
        %3623 = vmatprep.mubr.f32.mxu0 0.0
        %3624 = vmatmul.mubr.f32.gmra.mxu0 %v3049
        %v3625 = vpop.f32.mrf.mxu0
        %v3626 = vadd.f32 %v3315, %v3625
        %v3627 = vpop.f32.mrf.mxu0
        %3628 = vmatprep.mubr.f32.mxu0 0.0
        %3629 = vmatmul.mubr.f32.gmra.mxu0 %v3052
        %v3630 = vpop.f32.mrf.mxu0
        %v3631 = vadd.f32 %v3320, %v3630
        %v3632 = vpop.f32.mrf.mxu0
        %3633 = vmatprep.mubr.f32.mxu0 0.0
        %3634 = vmatmul.mubr.f32.gmra.mxu0 %v3055
        %v3635 = vpop.f32.mrf.mxu0
        %v3636 = vadd.f32 %v3325, %v3635
        %v3637 = vpop.f32.mrf.mxu0
        %3638 = vmatprep.mubr.f32.mxu0 0.0
        %3639 = vmatmul.mubr.f32.gmra.mxu0 %v3058
        %v3640 = vpop.f32.mrf.mxu0
        %v3641 = vadd.f32 %v3330, %v3640
        %v3642 = vpop.f32.mrf.mxu0
        %3643 = vmatprep.mubr.f32.mxu0 0.0
        %3644 = vmatmul.mubr.f32.gmra.mxu0 %v3061
        %v3645 = vpop.f32.mrf.mxu0
        %v3646 = vadd.f32 %v3335, %v3645
        %v3647 = vpop.f32.mrf.mxu0
        %3648 = vmatprep.mubr.f32.mxu0 0.0
        %3649 = vmatmul.mubr.f32.gmra.mxu0 %v3064
        %v3650 = vpop.f32.mrf.mxu0
        %v3651 = vadd.f32 %v3340, %v3650
        %v3652 = vpop.f32.mrf.mxu0
        %3653 = vmatprep.mubr.f32.mxu0 0.0
        %3654 = vmatmul.mubr.f32.gmra.mxu0 %v3067
        %v3655 = vpop.f32.mrf.mxu0
        %v3656 = vadd.f32 %v3345, %v3655
        %v3657 = vpop.f32.mrf.mxu0
        %3658 = vmatprep.mubr.f32.mxu0 0.0
        %3659 = vmatmul.mubr.f32.gmra.mxu0 %v3429
        %v3660 = vpop.f32.mrf.mxu0
        %v3661 = vadd.f32 %v3350, %v3660
        %v3662 = vpop.f32.mrf.mxu0
        %3663 = vmatprep.mubr.f32.mxu0 0.0
        %3664 = vmatmul.mubr.f32.gmra.mxu0 %v3073
        %v3665 = vpop.f32.mrf.mxu0
        %v3666 = vadd.f32 %v3355, %v3665
        %v3667 = vpop.f32.mrf.mxu0
        %3668 = vmatprep.mubr.f32.mxu0 0.0
        %3669 = vmatmul.mubr.f32.gmra.mxu0 %v3076
        %v3670 = vpop.f32.mrf.mxu0
        %v3671 = vadd.f32 %v3360, %v3670
        %v3672 = vpop.f32.mrf.mxu0
        %3673 = vmatprep.mubr.f32.mxu0 0.0
        %3674 = vmatmul.mubr.f32.gmra.mxu0 %v3079
        %v3675 = vpop.f32.mrf.mxu0
        %v3676 = vadd.f32 %v3365, %v3675
        %v3677 = vpop.f32.mrf.mxu0
        %3678 = vmatprep.mubr.f32.mxu0 0.0
        %3679 = vmatmul.mubr.f32.gmra.mxu0 %v3082
        %v3680 = vpop.f32.mrf.mxu0
        %v3681 = vadd.f32 %v3370, %v3680
        %v3682 = vpop.f32.mrf.mxu0
        %3683 = vmatprep.mubr.f32.mxu0 0.0
        %3684 = vmatmul.mubr.f32.gmra.mxu0 %v3085
        %v3685 = vpop.f32.mrf.mxu0
        %v3686 = vadd.f32 %v3375, %v3685
        %v3687 = vpop.f32.mrf.mxu0
        %3688 = vmatprep.mubr.f32.mxu0 0.0
        %3689 = vmatmul.mubr.f32.gmra.mxu0 %v3088
        %v3690 = vpop.f32.mrf.mxu0
        %v3691 = vadd.f32 %v3380, %v3690
        %v3692 = vpop.f32.mrf.mxu0
        %3693 = vmatprep.mubr.f32.mxu0 0.0
        %3694 = vmatmul.mubr.f32.gmra.mxu0 %v3091
        %v3695 = vpop.f32.mrf.mxu0
        %v3696 = vadd.f32 %v3385, %v3695
        %v3697 = vpop.f32.mrf.mxu0
        %3698 = vmatprep.mubr.f32.mxu0 0.0
        %3699 = vmatmul.mubr.f32.gmra.mxu0 %v3429
        %v3700 = vpop.f32.mrf.mxu0
        %v3701 = vadd.f32 %v3390, %v3700
        %v3702 = vpop.f32.mrf.mxu0
        %3703 = vmatprep.mubr.f32.mxu0 0.0
        %3704 = vmatmul.mubr.f32.gmra.mxu0 %v3097
        %v3705 = vpop.f32.mrf.mxu0
        %v3706 = vadd.f32 %v3395, %v3705
        %v3707 = vpop.f32.mrf.mxu0
        %3708 = vmatprep.mubr.f32.mxu0 0.0
        %3709 = vmatmul.mubr.f32.gmra.mxu0 %v3100
        %v3710 = vpop.f32.mrf.mxu0
        %v3711 = vadd.f32 %v3400, %v3710
        %v3712 = vpop.f32.mrf.mxu0
        %3713 = vmatprep.mubr.f32.mxu0 0.0
        %3714 = vmatmul.mubr.f32.gmra.mxu0 %v3103
        %v3715 = vpop.f32.mrf.mxu0
        %v3716 = vadd.f32 %v3405, %v3715
        %v3717 = vpop.f32.mrf.mxu0
        %3718 = vmatprep.mubr.f32.mxu0 0.0
        %3719 = vmatmul.mubr.f32.gmra.mxu0 %v3106
        %v3720 = vpop.f32.mrf.mxu0
        %v3721 = vadd.f32 %v3410, %v3720
        %v3722 = vpop.f32.mrf.mxu0
        %3723 = vmatprep.mubr.f32.mxu0 0.0
        %3724 = vmatmul.mubr.f32.gmra.mxu0 %v3109
        %v3725 = vpop.f32.mrf.mxu0
        %v3726 = vadd.f32 %v3415, %v3725
        %v3727 = vpop.f32.mrf.mxu0
        %3728 = vmatprep.mubr.f32.mxu0 0.0
        %3729 = vmatmul.mubr.f32.gmra.mxu0 %v3112
        %v3730 = vpop.f32.mrf.mxu0
        %v3731 = vadd.f32 %v3420, %v3730
        %v3732 = vpop.f32.mrf.mxu0
        %3733 = vmatprep.mubr.f32.mxu0 0.0
        %3734 = vmatmul.mubr.f32.gmra.mxu0 %v3115
        %v3735 = vpop.f32.mrf.mxu0
        %v3736 = vadd.f32 %v3425, %v3735
        %v3737 = vpop.f32.mrf.mxu0
        %3738 = vdwg.mxu0
        %s3739 = scalar_lea.vmem %s7, 8
        %v3740 = vld [vmem:[%s3739] sm:$0xf]
        %v3742 = vsel %vm1559, %v3740, 0
        %3744 = vmatprep.subr.mxu0 0.0
        %3745 = vmatpush1.msra.mxu0 0.0
        %3746 = vmatprep.subr.mxu0 0.0
        %3747 = vmatpush1.msra.mxu0 0.0
        %3748 = vmatprep.subr.mxu0 0.0
        %3749 = vmatpush1.msra.mxu0 0.0
        %3750 = vmatprep.subr.mxu0 0.0
        %3751 = vmatpush1.msra.mxu0 0.0
        %3752 = vmatprep.subr.mxu0 0.0
        %3753 = vmatpush1.msra.mxu0 0.0
        %3754 = vmatprep.subr.mxu0 0.0
        %3755 = vmatpush1.msra.mxu0 0.0
        %3756 = vmatprep.subr.mxu0 0.0
        %3757 = vmatpush1.msra.mxu0 0.0
        %3758 = vmatprep.subr.mxu0 0.0
        %3759 = vmatpush1.msra.mxu0 0.0
        %3760 = vmatprep.subr.mxu0 0.0
        %3761 = vmatpush1.msra.mxu0 0.0
        %3762 = vmatprep.subr.mxu0 0.0
        %3763 = vmatpush1.msra.mxu0 0.0
        %3764 = vmatprep.subr.mxu0 0.0
        %3765 = vmatpush1.msra.mxu0 0.0
        %3766 = vmatprep.subr.mxu0 0.0
        %3767 = vmatpush1.msra.mxu0 0.0
        %3768 = vmatprep.subr.mxu0 0.0
        %3769 = vmatpush1.msra.mxu0 0.0
        %3770 = vmatprep.subr.mxu0 0.0
        %3771 = vmatpush1.msra.mxu0 0.0
        %3772 = vmatprep.subr.mxu0 0.0
        %3773 = vmatpush1.msra.mxu0 0.0
        %3774 = vmatprep.subr.mxu0 0.0
        %3775 = vmatpush1.msra.mxu0 %v3742
        %3776 = vmatprep.subr.mxu0 0.0
        %3777 = vmatpush2.msra.mxu0 0.0
        %3778 = vmatprep.subr.mxu0 0.0
        %3779 = vmatpush2.msra.mxu0 0.0
        %3780 = vmatprep.subr.mxu0 0.0
        %3781 = vmatpush2.msra.mxu0 0.0
        %3782 = vmatprep.subr.mxu0 0.0
        %3783 = vmatpush2.msra.mxu0 0.0
        %3784 = vmatprep.subr.mxu0 0.0
        %3785 = vmatpush2.msra.mxu0 0.0
        %3786 = vmatprep.subr.mxu0 0.0
        %3787 = vmatpush2.msra.mxu0 0.0
        %3788 = vmatprep.subr.mxu0 0.0
        %3789 = vmatpush2.msra.mxu0 0.0
        %3790 = vmatprep.subr.mxu0 0.0
        %3791 = vmatpush2.msra.mxu0 0.0
        %3792 = vmatprep.subr.mxu0 0.0
        %3793 = vmatpush2.msra.mxu0 0.0
        %3794 = vmatprep.subr.mxu0 0.0
        %3795 = vmatpush2.msra.mxu0 0.0
        %3796 = vmatprep.subr.mxu0 0.0
        %3797 = vmatpush2.msra.mxu0 0.0
        %3798 = vmatprep.subr.mxu0 0.0
        %3799 = vmatpush2.msra.mxu0 0.0
        %3800 = vmatprep.subr.mxu0 0.0
        %3801 = vmatpush2.msra.mxu0 0.0
        %3802 = vmatprep.subr.mxu0 0.0
        %3803 = vmatpush2.msra.mxu0 0.0
        %3804 = vmatprep.subr.mxu0 0.0
        %3805 = vmatpush2.msra.mxu0 0.0
        %3806 = vmatprep.subr.mxu0 0.0
        %3807 = vmatpush2.msra.mxu0 0.0
        %3808 = vmatprep.mubr.f32.mxu0 0.0
        %3809 = vmatmul.mubr.f32.gmra.mxu0 %v2980
        %v3810 = vpop.f32.mrf.mxu0
        %v3811 = vadd.f32 0.0, %v3810
        %v3812 = vpop.f32.mrf.mxu0
        %3813 = vmatprep.mubr.f32.mxu0 0.0
        %3814 = vmatmul.mubr.f32.gmra.mxu0 %v2983
        %v3815 = vpop.f32.mrf.mxu0
        %v3816 = vadd.f32 0.0, %v3815
        %v3817 = vpop.f32.mrf.mxu0
        %3818 = vmatprep.mubr.f32.mxu0 0.0
        %3819 = vmatmul.mubr.f32.gmra.mxu0 %v2986
        %v3820 = vpop.f32.mrf.mxu0
        %v3821 = vadd.f32 0.0, %v3820
        %v3822 = vpop.f32.mrf.mxu0
        %3823 = vmatprep.mubr.f32.mxu0 0.0
        %3824 = vmatmul.mubr.f32.gmra.mxu0 %v2989
        %v3825 = vpop.f32.mrf.mxu0
        %v3826 = vadd.f32 0.0, %v3825
        %v3827 = vpop.f32.mrf.mxu0
        %3828 = vmatprep.mubr.f32.mxu0 0.0
        %3829 = vmatmul.mubr.f32.gmra.mxu0 %v2992
        %v3830 = vpop.f32.mrf.mxu0
        %v3831 = vadd.f32 0.0, %v3830
        %v3832 = vpop.f32.mrf.mxu0
        %3833 = vmatprep.mubr.f32.mxu0 0.0
        %3834 = vmatmul.mubr.f32.gmra.mxu0 %v2995
        %v3835 = vpop.f32.mrf.mxu0
        %v3836 = vadd.f32 0.0, %v3835
        %v3837 = vpop.f32.mrf.mxu0
        %3838 = vmatprep.mubr.f32.mxu0 0.0
        %3839 = vmatmul.mubr.f32.gmra.mxu0 %v2998
        %v3840 = vpop.f32.mrf.mxu0
        %v3841 = vadd.f32 0.0, %v3840
        %v3842 = vpop.f32.mrf.mxu0
        %3843 = vmatprep.mubr.f32.mxu0 0.0
        %3844 = vmatmul.mubr.f32.gmra.mxu0 %v3429
        %v3845 = vpop.f32.mrf.mxu0
        %v3846 = vadd.f32 0.0, %v3845
        %v3847 = vpop.f32.mrf.mxu0
        %3848 = vmatprep.mubr.f32.mxu0 0.0
        %3849 = vmatmul.mubr.f32.gmra.mxu0 %v3004
        %v3850 = vpop.f32.mrf.mxu0
        %v3851 = vadd.f32 0.0, %v3850
        %v3852 = vpop.f32.mrf.mxu0
        %3853 = vmatprep.mubr.f32.mxu0 0.0
        %3854 = vmatmul.mubr.f32.gmra.mxu0 %v3007
        %v3855 = vpop.f32.mrf.mxu0
        %v3856 = vadd.f32 0.0, %v3855
        %v3857 = vpop.f32.mrf.mxu0
        %3858 = vmatprep.mubr.f32.mxu0 0.0
        %3859 = vmatmul.mubr.f32.gmra.mxu0 %v3010
        %v3860 = vpop.f32.mrf.mxu0
        %v3861 = vadd.f32 0.0, %v3860
        %v3862 = vpop.f32.mrf.mxu0
        %3863 = vmatprep.mubr.f32.mxu0 0.0
        %3864 = vmatmul.mubr.f32.gmra.mxu0 %v3013
        %v3865 = vpop.f32.mrf.mxu0
        %v3866 = vadd.f32 0.0, %v3865
        %v3867 = vpop.f32.mrf.mxu0
        %3868 = vmatprep.mubr.f32.mxu0 0.0
        %3869 = vmatmul.mubr.f32.gmra.mxu0 %v3016
        %v3870 = vpop.f32.mrf.mxu0
        %v3871 = vadd.f32 0.0, %v3870
        %v3872 = vpop.f32.mrf.mxu0
        %3873 = vmatprep.mubr.f32.mxu0 0.0
        %3874 = vmatmul.mubr.f32.gmra.mxu0 %v3019
        %v3875 = vpop.f32.mrf.mxu0
        %v3876 = vadd.f32 0.0, %v3875
        %v3877 = vpop.f32.mrf.mxu0
        %3878 = vmatprep.mubr.f32.mxu0 0.0
        %3879 = vmatmul.mubr.f32.gmra.mxu0 %v3022
        %v3880 = vpop.f32.mrf.mxu0
        %v3881 = vadd.f32 0.0, %v3880
        %v3882 = vpop.f32.mrf.mxu0
        %3883 = vmatprep.mubr.f32.mxu0 0.0
        %3884 = vmatmul.mubr.f32.gmra.mxu0 %v3429
        %v3885 = vpop.f32.mrf.mxu0
        %v3886 = vadd.f32 0.0, %v3885
        %v3887 = vpop.f32.mrf.mxu0
        %3888 = vmatprep.mubr.f32.mxu0 0.0
        %3889 = vmatmul.mubr.f32.gmra.mxu0 %v3028
        %v3890 = vpop.f32.mrf.mxu0
        %v3891 = vadd.f32 0.0, %v3890
        %v3892 = vpop.f32.mrf.mxu0
        %3893 = vmatprep.mubr.f32.mxu0 0.0
        %3894 = vmatmul.mubr.f32.gmra.mxu0 %v3031
        %v3895 = vpop.f32.mrf.mxu0
        %v3896 = vadd.f32 0.0, %v3895
        %v3897 = vpop.f32.mrf.mxu0
        %3898 = vmatprep.mubr.f32.mxu0 0.0
        %3899 = vmatmul.mubr.f32.gmra.mxu0 %v3034
        %v3900 = vpop.f32.mrf.mxu0
        %v3901 = vadd.f32 0.0, %v3900
        %v3902 = vpop.f32.mrf.mxu0
        %3903 = vmatprep.mubr.f32.mxu0 0.0
        %3904 = vmatmul.mubr.f32.gmra.mxu0 %v3037
        %v3905 = vpop.f32.mrf.mxu0
        %v3906 = vadd.f32 0.0, %v3905
        %v3907 = vpop.f32.mrf.mxu0
        %3908 = vmatprep.mubr.f32.mxu0 0.0
        %3909 = vmatmul.mubr.f32.gmra.mxu0 %v3040
        %v3910 = vpop.f32.mrf.mxu0
        %v3911 = vadd.f32 0.0, %v3910
        %v3912 = vpop.f32.mrf.mxu0
        %3913 = vmatprep.mubr.f32.mxu0 0.0
        %3914 = vmatmul.mubr.f32.gmra.mxu0 %v3043
        %v3915 = vpop.f32.mrf.mxu0
        %v3916 = vadd.f32 0.0, %v3915
        %v3917 = vpop.f32.mrf.mxu0
        %3918 = vmatprep.mubr.f32.mxu0 0.0
        %3919 = vmatmul.mubr.f32.gmra.mxu0 %v3046
        %v3920 = vpop.f32.mrf.mxu0
        %v3921 = vadd.f32 0.0, %v3920
        %v3922 = vpop.f32.mrf.mxu0
        %3923 = vmatprep.mubr.f32.mxu0 0.0
        %3924 = vmatmul.mubr.f32.gmra.mxu0 %v3429
        %v3925 = vpop.f32.mrf.mxu0
        %v3926 = vadd.f32 0.0, %v3925
        %v3927 = vpop.f32.mrf.mxu0
        %3928 = vmatprep.mubr.f32.mxu0 0.0
        %3929 = vmatmul.mubr.f32.gmra.mxu0 %v3052
        %v3930 = vpop.f32.mrf.mxu0
        %v3931 = vadd.f32 0.0, %v3930
        %v3932 = vpop.f32.mrf.mxu0
        %3933 = vmatprep.mubr.f32.mxu0 0.0
        %3934 = vmatmul.mubr.f32.gmra.mxu0 %v3055
        %v3935 = vpop.f32.mrf.mxu0
        %v3936 = vadd.f32 0.0, %v3935
        %v3937 = vpop.f32.mrf.mxu0
        %3938 = vmatprep.mubr.f32.mxu0 0.0
        %3939 = vmatmul.mubr.f32.gmra.mxu0 %v3058
        %v3940 = vpop.f32.mrf.mxu0
        %v3941 = vadd.f32 0.0, %v3940
        %v3942 = vpop.f32.mrf.mxu0
        %3943 = vmatprep.mubr.f32.mxu0 0.0
        %3944 = vmatmul.mubr.f32.gmra.mxu0 %v3061
        %v3945 = vpop.f32.mrf.mxu0
        %v3946 = vadd.f32 0.0, %v3945
        %v3947 = vpop.f32.mrf.mxu0
        %3948 = vmatprep.mubr.f32.mxu0 0.0
        %3949 = vmatmul.mubr.f32.gmra.mxu0 %v3064
        %v3950 = vpop.f32.mrf.mxu0
        %v3951 = vadd.f32 0.0, %v3950
        %v3952 = vpop.f32.mrf.mxu0
        %3953 = vmatprep.mubr.f32.mxu0 0.0
        %3954 = vmatmul.mubr.f32.gmra.mxu0 %v3067
        %v3955 = vpop.f32.mrf.mxu0
        %v3956 = vadd.f32 0.0, %v3955
        %v3957 = vpop.f32.mrf.mxu0
        %3958 = vmatprep.mubr.f32.mxu0 0.0
        %3959 = vmatmul.mubr.f32.gmra.mxu0 %v3070
        %v3960 = vpop.f32.mrf.mxu0
        %v3961 = vadd.f32 0.0, %v3960
        %v3962 = vpop.f32.mrf.mxu0
        %3963 = vmatprep.mubr.f32.mxu0 0.0
        %3964 = vmatmul.mubr.f32.gmra.mxu0 %v3429
        %v3965 = vpop.f32.mrf.mxu0
        %v3966 = vadd.f32 0.0, %v3965
        %v3967 = vpop.f32.mrf.mxu0
        %3968 = vmatprep.mubr.f32.mxu0 0.0
        %3969 = vmatmul.mubr.f32.gmra.mxu0 %v3076
        %v3970 = vpop.f32.mrf.mxu0
        %v3971 = vadd.f32 0.0, %v3970
        %v3972 = vpop.f32.mrf.mxu0
        %3973 = vmatprep.mubr.f32.mxu0 0.0
        %3974 = vmatmul.mubr.f32.gmra.mxu0 %v3079
        %v3975 = vpop.f32.mrf.mxu0
        %v3976 = vadd.f32 0.0, %v3975
        %v3977 = vpop.f32.mrf.mxu0
        %3978 = vmatprep.mubr.f32.mxu0 0.0
        %3979 = vmatmul.mubr.f32.gmra.mxu0 %v3082
        %v3980 = vpop.f32.mrf.mxu0
        %v3981 = vadd.f32 0.0, %v3980
        %v3982 = vpop.f32.mrf.mxu0
        %3983 = vmatprep.mubr.f32.mxu0 0.0
        %3984 = vmatmul.mubr.f32.gmra.mxu0 %v3085
        %v3985 = vpop.f32.mrf.mxu0
        %v3986 = vadd.f32 0.0, %v3985
        %v3987 = vpop.f32.mrf.mxu0
        %3988 = vmatprep.mubr.f32.mxu0 0.0
        %3989 = vmatmul.mubr.f32.gmra.mxu0 %v3088
        %v3990 = vpop.f32.mrf.mxu0
        %v3991 = vadd.f32 0.0, %v3990
        %v3992 = vpop.f32.mrf.mxu0
        %3993 = vmatprep.mubr.f32.mxu0 0.0
        %3994 = vmatmul.mubr.f32.gmra.mxu0 %v3091
        %v3995 = vpop.f32.mrf.mxu0
        %v3996 = vadd.f32 0.0, %v3995
        %v3997 = vpop.f32.mrf.mxu0
        %3998 = vmatprep.mubr.f32.mxu0 0.0
        %3999 = vmatmul.mubr.f32.gmra.mxu0 %v3094
        %v4000 = vpop.f32.mrf.mxu0
        %v4001 = vadd.f32 0.0, %v4000
        %v4002 = vpop.f32.mrf.mxu0
        %4003 = vmatprep.mubr.f32.mxu0 0.0
        %4004 = vmatmul.mubr.f32.gmra.mxu0 %v3429
        %v4005 = vpop.f32.mrf.mxu0
        %v4006 = vadd.f32 0.0, %v4005
        %v4007 = vpop.f32.mrf.mxu0
        %4008 = vmatprep.mubr.f32.mxu0 0.0
        %4009 = vmatmul.mubr.f32.gmra.mxu0 %v3100
        %v4010 = vpop.f32.mrf.mxu0
        %v4011 = vadd.f32 0.0, %v4010
        %v4012 = vpop.f32.mrf.mxu0
        %4013 = vmatprep.mubr.f32.mxu0 0.0
        %4014 = vmatmul.mubr.f32.gmra.mxu0 %v3103
        %v4015 = vpop.f32.mrf.mxu0
        %v4016 = vadd.f32 0.0, %v4015
        %v4017 = vpop.f32.mrf.mxu0
        %4018 = vmatprep.mubr.f32.mxu0 0.0
        %4019 = vmatmul.mubr.f32.gmra.mxu0 %v3106
        %v4020 = vpop.f32.mrf.mxu0
        %v4021 = vadd.f32 0.0, %v4020
        %v4022 = vpop.f32.mrf.mxu0
        %4023 = vmatprep.mubr.f32.mxu0 0.0
        %4024 = vmatmul.mubr.f32.gmra.mxu0 %v3109
        %v4025 = vpop.f32.mrf.mxu0
        %v4026 = vadd.f32 0.0, %v4025
        %v4027 = vpop.f32.mrf.mxu0
        %4028 = vmatprep.mubr.f32.mxu0 0.0
        %4029 = vmatmul.mubr.f32.gmra.mxu0 %v3112
        %v4030 = vpop.f32.mrf.mxu0
        %v4031 = vadd.f32 0.0, %v4030
        %v4032 = vpop.f32.mrf.mxu0
        %4033 = vmatprep.mubr.f32.mxu0 0.0
        %4034 = vmatmul.mubr.f32.gmra.mxu0 %v3115
        %v4035 = vpop.f32.mrf.mxu0
        %v4036 = vadd.f32 0.0, %v4035
        %v4037 = vpop.f32.mrf.mxu0
        %4038 = vmatprep.mubr.f32.mxu0 0.0
        %4039 = vmatmul.mubr.f32.gmra.mxu0 %v3118
        %v4040 = vpop.f32.mrf.mxu0
        %v4041 = vadd.f32 0.0, %v4040
        %v4042 = vpop.f32.mrf.mxu0
        %4043 = vmatprep.mubr.f32.mxu0 0.0
        %4044 = vmatmul.mubr.f32.gmra.mxu0 %v3429
        %v4045 = vpop.f32.mrf.mxu0
        %v4046 = vadd.f32 0.0, %v4045
        %v4047 = vpop.f32.mrf.mxu0
        %4048 = vdwg.mxu0
        %v4049 = vadd.f32 %v3501, %v3811
        %v4050 = vadd.f32 %v3506, %v3816
        %v4051 = vadd.f32 %v3511, %v3821
        %v4052 = vadd.f32 %v3516, %v3826
        %v4053 = vadd.f32 %v3521, %v3831
        %v4054 = vadd.f32 %v3526, %v3836
        %v4055 = vadd.f32 %v3531, %v3841
        %v4056 = vadd.f32 %v3536, %v3846
        %v4057 = vadd.f32 %v3541, %v3851
        %v4058 = vadd.f32 %v3546, %v3856
        %v4059 = vadd.f32 %v3551, %v3861
        %v4060 = vadd.f32 %v3556, %v3866
        %v4061 = vadd.f32 %v3561, %v3871
        %v4062 = vadd.f32 %v3566, %v3876
        %v4063 = vadd.f32 %v3571, %v3881
        %v4064 = vadd.f32 %v3576, %v3886
        %v4065 = vadd.f32 %v3581, %v3891
        %v4066 = vadd.f32 %v3586, %v3896
        %v4067 = vadd.f32 %v3591, %v3901
        %v4068 = vadd.f32 %v3596, %v3906
        %v4069 = vadd.f32 %v3601, %v3911
        %v4070 = vadd.f32 %v3606, %v3916
        %v4071 = vadd.f32 %v3611, %v3921
        %v4072 = vadd.f32 %v3616, %v3926
        %v4073 = vadd.f32 %v3621, %v3931
        %v4074 = vadd.f32 %v3626, %v3936
        %v4075 = vadd.f32 %v3631, %v3941
        %v4076 = vadd.f32 %v3636, %v3946
        %v4077 = vadd.f32 %v3641, %v3951
        %v4078 = vadd.f32 %v3646, %v3956
        %v4079 = vadd.f32 %v3651, %v3961
        %v4080 = vadd.f32 %v3656, %v3966
        %v4081 = vadd.f32 %v3661, %v3971
        %v4082 = vadd.f32 %v3666, %v3976
        %v4083 = vadd.f32 %v3671, %v3981
        %v4084 = vadd.f32 %v3676, %v3986
        %v4085 = vadd.f32 %v3681, %v3991
        %v4086 = vadd.f32 %v3686, %v3996
        %v4087 = vadd.f32 %v3691, %v4001
        %v4088 = vadd.f32 %v3696, %v4006
        %v4089 = vadd.f32 %v3701, %v4011
        %v4090 = vadd.f32 %v3706, %v4016
        %v4091 = vadd.f32 %v3711, %v4021
        %v4092 = vadd.f32 %v3716, %v4026
        %v4093 = vadd.f32 %v3721, %v4031
        %v4094 = vadd.f32 %v3726, %v4036
        %v4095 = vadd.f32 %v3731, %v4041
        %v4096 = vadd.f32 %v3736, %v4046
        %v4097 = vld [vmem:[#allocation12] sm:$0x1]
        %v4099 = vlaneseq
        %v4100 = vshrl.u32 %v4099, 7
        %v4101 = vsub.s32 0, %v4100
        %v4102 = vrot.slane %v4097, %v4101
        %v4104 = vadd.f32 %v4049, %v4102
        %v4105 = vadd.f32 %v4050, %v4102
        %v4106 = vadd.f32 %v4051, %v4102
        %v4107 = vadd.f32 %v4052, %v4102
        %v4108 = vadd.f32 %v4053, %v4102
        %v4109 = vadd.f32 %v4054, %v4102
        %v4110 = vadd.f32 %v4055, %v4102
        %v4111 = vadd.f32 %v4056, %v4102
        %v4112 = vadd.f32 %v4057, %v4102
        %v4113 = vadd.f32 %v4058, %v4102
        %v4114 = vadd.f32 %v4059, %v4102
        %v4115 = vadd.f32 %v4060, %v4102
        %v4116 = vadd.f32 %v4061, %v4102
        %v4117 = vadd.f32 %v4062, %v4102
        %v4118 = vadd.f32 %v4063, %v4102
        %v4119 = vadd.f32 %v4064, %v4102
        %v4120 = vadd.f32 %v4065, %v4102
        %v4121 = vadd.f32 %v4066, %v4102
        %v4122 = vadd.f32 %v4067, %v4102
        %v4123 = vadd.f32 %v4068, %v4102
        %v4124 = vadd.f32 %v4069, %v4102
        %v4125 = vadd.f32 %v4070, %v4102
        %v4126 = vadd.f32 %v4071, %v4102
        %v4127 = vadd.f32 %v4072, %v4102
        %v4128 = vadd.f32 %v4073, %v4102
        %v4129 = vadd.f32 %v4074, %v4102
        %v4130 = vadd.f32 %v4075, %v4102
        %v4131 = vadd.f32 %v4076, %v4102
        %v4132 = vadd.f32 %v4077, %v4102
        %v4133 = vadd.f32 %v4078, %v4102
        %v4134 = vadd.f32 %v4079, %v4102
        %v4135 = vadd.f32 %v4080, %v4102
        %v4136 = vadd.f32 %v4081, %v4102
        %v4137 = vadd.f32 %v4082, %v4102
        %v4138 = vadd.f32 %v4083, %v4102
        %v4139 = vadd.f32 %v4084, %v4102
        %v4140 = vadd.f32 %v4085, %v4102
        %v4141 = vadd.f32 %v4086, %v4102
        %v4142 = vadd.f32 %v4087, %v4102
        %v4143 = vadd.f32 %v4088, %v4102
        %v4144 = vadd.f32 %v4089, %v4102
        %v4145 = vadd.f32 %v4090, %v4102
        %v4146 = vadd.f32 %v4091, %v4102
        %v4147 = vadd.f32 %v4092, %v4102
        %v4148 = vadd.f32 %v4093, %v4102
        %v4149 = vadd.f32 %v4094, %v4102
        %v4150 = vadd.f32 %v4095, %v4102
        %v4151 = vadd.f32 %v4096, %v4102
        %v4152 = vadd.f32 %v4104, %v2877
        %v4153 = vadd.f32 %v4105, %v2878
        %v4154 = vadd.f32 %v4106, %v2879
        %v4155 = vadd.f32 %v4107, %v2880
        %v4156 = vadd.f32 %v4108, %v2881
        %v4157 = vadd.f32 %v4109, %v2882
        %v4158 = vadd.f32 %v4110, %v2883
        %v4159 = vadd.f32 %v4111, %v2884
        %v4160 = vadd.f32 %v4112, %v2885
        %v4161 = vadd.f32 %v4113, %v2886
        %v4162 = vadd.f32 %v4114, %v2887
        %v4163 = vadd.f32 %v4115, %v2888
        %v4164 = vadd.f32 %v4116, %v2889
        %v4165 = vadd.f32 %v4117, %v2890
        %v4166 = vadd.f32 %v4118, %v2891
        %v4167 = vadd.f32 %v4119, %v2892
        %v4168 = vadd.f32 %v4120, %v2893
        %v4169 = vadd.f32 %v4121, %v2894
        %v4170 = vadd.f32 %v4122, %v2895
        %v4171 = vadd.f32 %v4123, %v2896
        %v4172 = vadd.f32 %v4124, %v2897
        %v4173 = vadd.f32 %v4125, %v2898
        %v4174 = vadd.f32 %v4126, %v2899
        %v4175 = vadd.f32 %v4127, %v2900
        %v4176 = vadd.f32 %v4128, %v2901
        %v4177 = vadd.f32 %v4129, %v2902
        %v4178 = vadd.f32 %v4130, %v2903
        %v4179 = vadd.f32 %v4131, %v2904
        %v4180 = vadd.f32 %v4132, %v2905
        %v4181 = vadd.f32 %v4133, %v2906
        %v4182 = vadd.f32 %v4134, %v2907
        %v4183 = vadd.f32 %v4135, %v2908
        %v4184 = vadd.f32 %v4136, %v2909
        %v4185 = vadd.f32 %v4137, %v2910
        %v4186 = vadd.f32 %v4138, %v2911
        %v4187 = vadd.f32 %v4139, %v2912
        %v4188 = vadd.f32 %v4140, %v2913
        %v4189 = vadd.f32 %v4141, %v2914
        %v4190 = vadd.f32 %v4142, %v2915
        %v4191 = vadd.f32 %v4143, %v2916
        %v4192 = vadd.f32 %v4144, %v2917
        %v4193 = vadd.f32 %v4145, %v2918
        %v4194 = vadd.f32 %v4146, %v2919
        %v4195 = vadd.f32 %v4147, %v2920
        %v4196 = vadd.f32 %v4148, %v2921
        %v4197 = vadd.f32 %v4149, %v2922
        %v4198 = vadd.f32 %v4150, %v2923
        %v4199 = vadd.f32 %v4151, %v2924
        %v4200 = vmax.f32 %v4152, 0.0
        %v4201 = vmax.f32 %v4153, 0.0
        %v4202 = vmax.f32 %v4154, 0.0
        %v4203 = vmax.f32 %v4155, 0.0
        %v4204 = vmax.f32 %v4156, 0.0
        %v4205 = vmax.f32 %v4157, 0.0
        %v4206 = vmax.f32 %v4158, 0.0
        %v4207 = vmax.f32 %v4159, 0.0
        %v4208 = vmax.f32 %v4160, 0.0
        %v4209 = vmax.f32 %v4161, 0.0
        %v4210 = vmax.f32 %v4162, 0.0
        %v4211 = vmax.f32 %v4163, 0.0
        %v4212 = vmax.f32 %v4164, 0.0
        %v4213 = vmax.f32 %v4165, 0.0
        %v4214 = vmax.f32 %v4166, 0.0
        %v4215 = vmax.f32 %v4167, 0.0
        %v4216 = vmax.f32 %v4168, 0.0
        %v4217 = vmax.f32 %v4169, 0.0
        %v4218 = vmax.f32 %v4170, 0.0
        %v4219 = vmax.f32 %v4171, 0.0
        %v4220 = vmax.f32 %v4172, 0.0
        %v4221 = vmax.f32 %v4173, 0.0
        %v4222 = vmax.f32 %v4174, 0.0
        %v4223 = vmax.f32 %v4175, 0.0
        %v4224 = vmax.f32 %v4176, 0.0
        %v4225 = vmax.f32 %v4177, 0.0
        %v4226 = vmax.f32 %v4178, 0.0
        %v4227 = vmax.f32 %v4179, 0.0
        %v4228 = vmax.f32 %v4180, 0.0
        %v4229 = vmax.f32 %v4181, 0.0
        %v4230 = vmax.f32 %v4182, 0.0
        %v4231 = vmax.f32 %v4183, 0.0
        %v4232 = vmax.f32 %v4184, 0.0
        %v4233 = vmax.f32 %v4185, 0.0
        %v4234 = vmax.f32 %v4186, 0.0
        %v4235 = vmax.f32 %v4187, 0.0
        %v4236 = vmax.f32 %v4188, 0.0
        %v4237 = vmax.f32 %v4189, 0.0
        %v4238 = vmax.f32 %v4190, 0.0
        %v4239 = vmax.f32 %v4191, 0.0
        %v4240 = vmax.f32 %v4192, 0.0
        %v4241 = vmax.f32 %v4193, 0.0
        %v4242 = vmax.f32 %v4194, 0.0
        %v4243 = vmax.f32 %v4195, 0.0
        %v4244 = vmax.f32 %v4196, 0.0
        %v4245 = vmax.f32 %v4197, 0.0
        %v4246 = vmax.f32 %v4198, 0.0
        %v4247 = vmax.f32 %v4199, 0.0
        %p4248 = scmp.gt.s32.totalorder %s40, 0
        %s4249 = scalar_select %p4248, 1, 0
        %s4250 = scvt.s32.f32 %s4249
        %v4251 = vstv %s4250
        %v4252 = vmul.f32 %v4200, %v4251
        %v4253 = vmul.f32 %v4201, %v4251
        %v4254 = vmul.f32 %v4202, %v4251
        %v4255 = vmul.f32 %v4203, %v4251
        %v4256 = vmul.f32 %v4204, %v4251
        %v4257 = vmul.f32 %v4205, %v4251
        %v4258 = vmul.f32 %v4206, %v4251
        %v4259 = vmul.f32 %v4207, %v4251
        %p4260 = scmp.lt.s32.totalorder %s40, 1
        %s4261 = scalar_select %p4260, 1, 0
        %s4262 = scvt.s32.f32 %s4261
        %v4263 = vstv %s4262
        %v4264 = vmul.f32 %v4240, %v4263
        %v4265 = vmul.f32 %v4241, %v4263
        %v4266 = vmul.f32 %v4242, %v4263
        %v4267 = vmul.f32 %v4243, %v4263
        %v4268 = vmul.f32 %v4244, %v4263
        %v4269 = vmul.f32 %v4245, %v4263
        %v4270 = vmul.f32 %v4246, %v4263
        %v4271 = vmul.f32 %v4247, %v4263
        %v4272 = vld [vmem:[%s9] sm:$0xf]
        %s4273 = scalar_lea.vmem %s9, 4
        %v4274 = vld [vmem:[%s4273] sm:$0xf]
        %v4276 = vsel %vm1267, %v4208, 0
        %v4279 = vsel %vm1267, %v4209, 0
        %v4282 = vsel %vm1267, %v4210, 0
        %v4285 = vsel %vm1267, %v4211, 0
        %v4288 = vsel %vm1267, %v4212, 0
        %v4291 = vsel %vm1267, %v4213, 0
        %v4294 = vsel %vm1267, %v4214, 0
        %v4297 = vsel %vm1267, %v4215, 0
        %v4300 = vsel %vm1267, %v4216, 0
        %v4303 = vsel %vm1267, %v4217, 0
        %v4306 = vsel %vm1267, %v4218, 0
        %v4309 = vsel %vm1267, %v4219, 0
        %v4312 = vsel %vm1267, %v4220, 0
        %v4315 = vsel %vm1267, %v4221, 0
        %v4318 = vsel %vm1267, %v4222, 0
        %v4321 = vsel %vm1267, %v4223, 0
        %v4324 = vsel %vm1267, %v4224, 0
        %v4327 = vsel %vm1267, %v4225, 0
        %v4330 = vsel %vm1267, %v4226, 0
        %v4333 = vsel %vm1267, %v4227, 0
        %v4336 = vsel %vm1267, %v4228, 0
        %v4339 = vsel %vm1267, %v4229, 0
        %v4342 = vsel %vm1267, %v4230, 0
        %v4345 = vsel %vm1267, %v4231, 0
        %v4348 = vsel %vm1267, %v4232, 0
        %v4351 = vsel %vm1267, %v4233, 0
        %v4354 = vsel %vm1267, %v4234, 0
        %v4357 = vsel %vm1267, %v4235, 0
        %v4360 = vsel %vm1267, %v4236, 0
        %v4363 = vsel %vm1267, %v4237, 0
        %v4366 = vsel %vm1267, %v4238, 0
        %v4369 = vsel %vm1267, %v4239, 0
        %v4372 = vsel %vm1559, %v4274, 0
        %4374 = vmatprep.subr.mxu0 0.0
        %4375 = vmatpush1.msra.mxu0 0.0
        %4376 = vmatprep.subr.mxu0 0.0
        %4377 = vmatpush1.msra.mxu0 0.0
        %4378 = vmatprep.subr.mxu0 0.0
        %4379 = vmatpush1.msra.mxu0 0.0
        %4380 = vmatprep.subr.mxu0 0.0
        %4381 = vmatpush1.msra.mxu0 0.0
        %4382 = vmatprep.subr.mxu0 0.0
        %4383 = vmatpush1.msra.mxu0 0.0
        %4384 = vmatprep.subr.mxu0 0.0
        %4385 = vmatpush1.msra.mxu0 0.0
        %4386 = vmatprep.subr.mxu0 0.0
        %4387 = vmatpush1.msra.mxu0 0.0
        %4388 = vmatprep.subr.mxu0 0.0
        %4389 = vmatpush1.msra.mxu0 0.0
        %4390 = vmatprep.subr.mxu0 0.0
        %4391 = vmatpush1.msra.mxu0 0.0
        %4392 = vmatprep.subr.mxu0 0.0
        %4393 = vmatpush1.msra.mxu0 0.0
        %4394 = vmatprep.subr.mxu0 0.0
        %4395 = vmatpush1.msra.mxu0 0.0
        %4396 = vmatprep.subr.mxu0 0.0
        %4397 = vmatpush1.msra.mxu0 0.0
        %4398 = vmatprep.subr.mxu0 0.0
        %4399 = vmatpush1.msra.mxu0 0.0
        %4400 = vmatprep.subr.mxu0 0.0
        %4401 = vmatpush1.msra.mxu0 0.0
        %4402 = vmatprep.subr.mxu0 0.0
        %4403 = vmatpush1.msra.mxu0 0.0
        %4404 = vmatprep.subr.mxu0 0.0
        %4405 = vmatpush1.msra.mxu0 %v4372
        %4406 = vmatprep.subr.mxu0 0.0
        %4407 = vmatpush2.msra.mxu0 0.0
        %4408 = vmatprep.subr.mxu0 0.0
        %4409 = vmatpush2.msra.mxu0 0.0
        %4410 = vmatprep.subr.mxu0 0.0
        %4411 = vmatpush2.msra.mxu0 0.0
        %4412 = vmatprep.subr.mxu0 0.0
        %4413 = vmatpush2.msra.mxu0 0.0
        %4414 = vmatprep.subr.mxu0 0.0
        %4415 = vmatpush2.msra.mxu0 0.0
        %4416 = vmatprep.subr.mxu0 0.0
        %4417 = vmatpush2.msra.mxu0 0.0
        %4418 = vmatprep.subr.mxu0 0.0
        %4419 = vmatpush2.msra.mxu0 0.0
        %4420 = vmatprep.subr.mxu0 0.0
        %4421 = vmatpush2.msra.mxu0 0.0
        %4422 = vmatprep.subr.mxu0 0.0
        %4423 = vmatpush2.msra.mxu0 0.0
        %4424 = vmatprep.subr.mxu0 0.0
        %4425 = vmatpush2.msra.mxu0 0.0
        %4426 = vmatprep.subr.mxu0 0.0
        %4427 = vmatpush2.msra.mxu0 0.0
        %4428 = vmatprep.subr.mxu0 0.0
        %4429 = vmatpush2.msra.mxu0 0.0
        %4430 = vmatprep.subr.mxu0 0.0
        %4431 = vmatpush2.msra.mxu0 0.0
        %4432 = vmatprep.subr.mxu0 0.0
        %4433 = vmatpush2.msra.mxu0 0.0
        %4434 = vmatprep.subr.mxu0 0.0
        %4435 = vmatpush2.msra.mxu0 0.0
        %4436 = vmatprep.subr.mxu0 0.0
        %4437 = vmatpush2.msra.mxu0 0.0
        %4438 = vmatprep.mubr.f32.mxu0 0.0
        %4439 = vmatmul.mubr.f32.gmra.mxu0 %v4276
        %v4440 = vpop.f32.mrf.mxu0
        %v4441 = vadd.f32 0.0, %v4440
        %v4442 = vpop.f32.mrf.mxu0
        %4443 = vmatprep.mubr.f32.mxu0 0.0
        %4444 = vmatmul.mubr.f32.gmra.mxu0 %v4279
        %v4445 = vpop.f32.mrf.mxu0
        %v4446 = vadd.f32 0.0, %v4445
        %v4447 = vpop.f32.mrf.mxu0
        %4448 = vmatprep.mubr.f32.mxu0 0.0
        %4449 = vmatmul.mubr.f32.gmra.mxu0 %v4282
        %v4450 = vpop.f32.mrf.mxu0
        %v4451 = vadd.f32 0.0, %v4450
        %v4452 = vpop.f32.mrf.mxu0
        %4453 = vmatprep.mubr.f32.mxu0 0.0
        %4454 = vmatmul.mubr.f32.gmra.mxu0 %v4285
        %v4455 = vpop.f32.mrf.mxu0
        %v4456 = vadd.f32 0.0, %v4455
        %v4457 = vpop.f32.mrf.mxu0
        %4458 = vmatprep.mubr.f32.mxu0 0.0
        %4459 = vmatmul.mubr.f32.gmra.mxu0 %v4288
        %v4460 = vpop.f32.mrf.mxu0
        %v4461 = vadd.f32 0.0, %v4460
        %v4462 = vpop.f32.mrf.mxu0
        %4463 = vmatprep.mubr.f32.mxu0 0.0
        %4464 = vmatmul.mubr.f32.gmra.mxu0 %v4291
        %v4465 = vpop.f32.mrf.mxu0
        %v4466 = vadd.f32 0.0, %v4465
        %v4467 = vpop.f32.mrf.mxu0
        %4468 = vmatprep.mubr.f32.mxu0 0.0
        %4469 = vmatmul.mubr.f32.gmra.mxu0 %v4294
        %v4470 = vpop.f32.mrf.mxu0
        %v4471 = vadd.f32 0.0, %v4470
        %v4472 = vpop.f32.mrf.mxu0
        %4473 = vmatprep.mubr.f32.mxu0 0.0
        %4474 = vmatmul.mubr.f32.gmra.mxu0 %v4297
        %v4475 = vpop.f32.mrf.mxu0
        %v4476 = vadd.f32 0.0, %v4475
        %v4477 = vpop.f32.mrf.mxu0
        %4478 = vmatprep.mubr.f32.mxu0 0.0
        %4479 = vmatmul.mubr.f32.gmra.mxu0 %v4300
        %v4480 = vpop.f32.mrf.mxu0
        %v4481 = vadd.f32 0.0, %v4480
        %v4482 = vpop.f32.mrf.mxu0
        %4483 = vmatprep.mubr.f32.mxu0 0.0
        %4484 = vmatmul.mubr.f32.gmra.mxu0 %v4303
        %v4485 = vpop.f32.mrf.mxu0
        %v4486 = vadd.f32 0.0, %v4485
        %v4487 = vpop.f32.mrf.mxu0
        %4488 = vmatprep.mubr.f32.mxu0 0.0
        %4489 = vmatmul.mubr.f32.gmra.mxu0 %v4306
        %v4490 = vpop.f32.mrf.mxu0
        %v4491 = vadd.f32 0.0, %v4490
        %v4492 = vpop.f32.mrf.mxu0
        %4493 = vmatprep.mubr.f32.mxu0 0.0
        %4494 = vmatmul.mubr.f32.gmra.mxu0 %v4309
        %v4495 = vpop.f32.mrf.mxu0
        %v4496 = vadd.f32 0.0, %v4495
        %v4497 = vpop.f32.mrf.mxu0
        %4498 = vmatprep.mubr.f32.mxu0 0.0
        %4499 = vmatmul.mubr.f32.gmra.mxu0 %v4312
        %v4500 = vpop.f32.mrf.mxu0
        %v4501 = vadd.f32 0.0, %v4500
        %v4502 = vpop.f32.mrf.mxu0
        %4503 = vmatprep.mubr.f32.mxu0 0.0
        %4504 = vmatmul.mubr.f32.gmra.mxu0 %v4315
        %v4505 = vpop.f32.mrf.mxu0
        %v4506 = vadd.f32 0.0, %v4505
        %v4507 = vpop.f32.mrf.mxu0
        %4508 = vmatprep.mubr.f32.mxu0 0.0
        %4509 = vmatmul.mubr.f32.gmra.mxu0 %v4318
        %v4510 = vpop.f32.mrf.mxu0
        %v4511 = vadd.f32 0.0, %v4510
        %v4512 = vpop.f32.mrf.mxu0
        %4513 = vmatprep.mubr.f32.mxu0 0.0
        %4514 = vmatmul.mubr.f32.gmra.mxu0 %v4321
        %v4515 = vpop.f32.mrf.mxu0
        %v4516 = vadd.f32 0.0, %v4515
        %v4517 = vpop.f32.mrf.mxu0
        %4518 = vmatprep.mubr.f32.mxu0 0.0
        %4519 = vmatmul.mubr.f32.gmra.mxu0 %v4324
        %v4520 = vpop.f32.mrf.mxu0
        %v4521 = vadd.f32 0.0, %v4520
        %v4522 = vpop.f32.mrf.mxu0
        %4523 = vmatprep.mubr.f32.mxu0 0.0
        %4524 = vmatmul.mubr.f32.gmra.mxu0 %v4327
        %v4525 = vpop.f32.mrf.mxu0
        %v4526 = vadd.f32 0.0, %v4525
        %v4527 = vpop.f32.mrf.mxu0
        %4528 = vmatprep.mubr.f32.mxu0 0.0
        %4529 = vmatmul.mubr.f32.gmra.mxu0 %v4330
        %v4530 = vpop.f32.mrf.mxu0
        %v4531 = vadd.f32 0.0, %v4530
        %v4532 = vpop.f32.mrf.mxu0
        %4533 = vmatprep.mubr.f32.mxu0 0.0
        %4534 = vmatmul.mubr.f32.gmra.mxu0 %v4333
        %v4535 = vpop.f32.mrf.mxu0
        %v4536 = vadd.f32 0.0, %v4535
        %v4537 = vpop.f32.mrf.mxu0
        %4538 = vmatprep.mubr.f32.mxu0 0.0
        %4539 = vmatmul.mubr.f32.gmra.mxu0 %v4336
        %v4540 = vpop.f32.mrf.mxu0
        %v4541 = vadd.f32 0.0, %v4540
        %v4542 = vpop.f32.mrf.mxu0
        %4543 = vmatprep.mubr.f32.mxu0 0.0
        %4544 = vmatmul.mubr.f32.gmra.mxu0 %v4339
        %v4545 = vpop.f32.mrf.mxu0
        %v4546 = vadd.f32 0.0, %v4545
        %v4547 = vpop.f32.mrf.mxu0
        %4548 = vmatprep.mubr.f32.mxu0 0.0
        %4549 = vmatmul.mubr.f32.gmra.mxu0 %v4342
        %v4550 = vpop.f32.mrf.mxu0
        %v4551 = vadd.f32 0.0, %v4550
        %v4552 = vpop.f32.mrf.mxu0
        %4553 = vmatprep.mubr.f32.mxu0 0.0
        %4554 = vmatmul.mubr.f32.gmra.mxu0 %v4345
        %v4555 = vpop.f32.mrf.mxu0
        %v4556 = vadd.f32 0.0, %v4555
        %v4557 = vpop.f32.mrf.mxu0
        %4558 = vmatprep.mubr.f32.mxu0 0.0
        %4559 = vmatmul.mubr.f32.gmra.mxu0 %v4348
        %v4560 = vpop.f32.mrf.mxu0
        %v4561 = vadd.f32 0.0, %v4560
        %v4562 = vpop.f32.mrf.mxu0
        %4563 = vmatprep.mubr.f32.mxu0 0.0
        %4564 = vmatmul.mubr.f32.gmra.mxu0 %v4351
        %v4565 = vpop.f32.mrf.mxu0
        %v4566 = vadd.f32 0.0, %v4565
        %v4567 = vpop.f32.mrf.mxu0
        %4568 = vmatprep.mubr.f32.mxu0 0.0
        %4569 = vmatmul.mubr.f32.gmra.mxu0 %v4354
        %v4570 = vpop.f32.mrf.mxu0
        %v4571 = vadd.f32 0.0, %v4570
        %v4572 = vpop.f32.mrf.mxu0
        %4573 = vmatprep.mubr.f32.mxu0 0.0
        %4574 = vmatmul.mubr.f32.gmra.mxu0 %v4357
        %v4575 = vpop.f32.mrf.mxu0
        %v4576 = vadd.f32 0.0, %v4575
        %v4577 = vpop.f32.mrf.mxu0
        %4578 = vmatprep.mubr.f32.mxu0 0.0
        %4579 = vmatmul.mubr.f32.gmra.mxu0 %v4360
        %v4580 = vpop.f32.mrf.mxu0
        %v4581 = vadd.f32 0.0, %v4580
        %v4582 = vpop.f32.mrf.mxu0
        %4583 = vmatprep.mubr.f32.mxu0 0.0
        %4584 = vmatmul.mubr.f32.gmra.mxu0 %v4363
        %v4585 = vpop.f32.mrf.mxu0
        %v4586 = vadd.f32 0.0, %v4585
        %v4587 = vpop.f32.mrf.mxu0
        %4588 = vmatprep.mubr.f32.mxu0 0.0
        %4589 = vmatmul.mubr.f32.gmra.mxu0 %v4366
        %v4590 = vpop.f32.mrf.mxu0
        %v4591 = vadd.f32 0.0, %v4590
        %v4592 = vpop.f32.mrf.mxu0
        %4593 = vmatprep.mubr.f32.mxu0 0.0
        %4594 = vmatmul.mubr.f32.gmra.mxu0 %v4369
        %v4595 = vpop.f32.mrf.mxu0
        %v4596 = vadd.f32 0.0, %v4595
        %v4597 = vpop.f32.mrf.mxu0
        %4598 = vdwg.mxu0
        %v4600 = vsel %vm1267, %v4252, 0
        %v4603 = vsel %vm1267, %v4253, 0
        %v4606 = vsel %vm1267, %v4254, 0
        %v4609 = vsel %vm1267, %v4255, 0
        %v4612 = vsel %vm1267, %v4256, 0
        %v4615 = vsel %vm1267, %v4257, 0
        %v4618 = vsel %vm1267, %v4258, 0
        %v4621 = vsel %vm1267, %v4259, 0
        %v4624 = vsel %vm1559, %v4272, 0
        %4626 = vmatprep.subr.mxu0 0.0
        %4627 = vmatpush1.msra.mxu0 0.0
        %4628 = vmatprep.subr.mxu0 0.0
        %4629 = vmatpush1.msra.mxu0 0.0
        %4630 = vmatprep.subr.mxu0 0.0
        %4631 = vmatpush1.msra.mxu0 0.0
        %4632 = vmatprep.subr.mxu0 0.0
        %4633 = vmatpush1.msra.mxu0 0.0
        %4634 = vmatprep.subr.mxu0 0.0
        %4635 = vmatpush1.msra.mxu0 0.0
        %4636 = vmatprep.subr.mxu0 0.0
        %4637 = vmatpush1.msra.mxu0 0.0
        %4638 = vmatprep.subr.mxu0 0.0
        %4639 = vmatpush1.msra.mxu0 0.0
        %4640 = vmatprep.subr.mxu0 0.0
        %4641 = vmatpush1.msra.mxu0 0.0
        %4642 = vmatprep.subr.mxu0 0.0
        %4643 = vmatpush1.msra.mxu0 0.0
        %4644 = vmatprep.subr.mxu0 0.0
        %4645 = vmatpush1.msra.mxu0 0.0
        %4646 = vmatprep.subr.mxu0 0.0
        %4647 = vmatpush1.msra.mxu0 0.0
        %4648 = vmatprep.subr.mxu0 0.0
        %4649 = vmatpush1.msra.mxu0 0.0
        %4650 = vmatprep.subr.mxu0 0.0
        %4651 = vmatpush1.msra.mxu0 0.0
        %4652 = vmatprep.subr.mxu0 0.0
        %4653 = vmatpush1.msra.mxu0 0.0
        %4654 = vmatprep.subr.mxu0 0.0
        %4655 = vmatpush1.msra.mxu0 0.0
        %4656 = vmatprep.subr.mxu0 0.0
        %4657 = vmatpush1.msra.mxu0 %v4624
        %4658 = vmatprep.subr.mxu0 0.0
        %4659 = vmatpush2.msra.mxu0 0.0
        %4660 = vmatprep.subr.mxu0 0.0
        %4661 = vmatpush2.msra.mxu0 0.0
        %4662 = vmatprep.subr.mxu0 0.0
        %4663 = vmatpush2.msra.mxu0 0.0
        %4664 = vmatprep.subr.mxu0 0.0
        %4665 = vmatpush2.msra.mxu0 0.0
        %4666 = vmatprep.subr.mxu0 0.0
        %4667 = vmatpush2.msra.mxu0 0.0
        %4668 = vmatprep.subr.mxu0 0.0
        %4669 = vmatpush2.msra.mxu0 0.0
        %4670 = vmatprep.subr.mxu0 0.0
        %4671 = vmatpush2.msra.mxu0 0.0
        %4672 = vmatprep.subr.mxu0 0.0
        %4673 = vmatpush2.msra.mxu0 0.0
        %4674 = vmatprep.subr.mxu0 0.0
        %4675 = vmatpush2.msra.mxu0 0.0
        %4676 = vmatprep.subr.mxu0 0.0
        %4677 = vmatpush2.msra.mxu0 0.0
        %4678 = vmatprep.subr.mxu0 0.0
        %4679 = vmatpush2.msra.mxu0 0.0
        %4680 = vmatprep.subr.mxu0 0.0
        %4681 = vmatpush2.msra.mxu0 0.0
        %4682 = vmatprep.subr.mxu0 0.0
        %4683 = vmatpush2.msra.mxu0 0.0
        %4684 = vmatprep.subr.mxu0 0.0
        %4685 = vmatpush2.msra.mxu0 0.0
        %4686 = vmatprep.subr.mxu0 0.0
        %4687 = vmatpush2.msra.mxu0 0.0
        %4688 = vmatprep.subr.mxu0 0.0
        %4689 = vmatpush2.msra.mxu0 0.0
        %4690 = vmatprep.mubr.f32.mxu0 0.0
        %4691 = vmatmul.mubr.f32.gmra.mxu0 %v4600
        %v4692 = vpop.f32.mrf.mxu0
        %v4693 = vadd.f32 %v4441, %v4692
        %v4694 = vpop.f32.mrf.mxu0
        %4695 = vmatprep.mubr.f32.mxu0 0.0
        %4696 = vmatmul.mubr.f32.gmra.mxu0 %v4603
        %v4697 = vpop.f32.mrf.mxu0
        %v4698 = vadd.f32 %v4446, %v4697
        %v4699 = vpop.f32.mrf.mxu0
        %4700 = vmatprep.mubr.f32.mxu0 0.0
        %4701 = vmatmul.mubr.f32.gmra.mxu0 %v4606
        %v4702 = vpop.f32.mrf.mxu0
        %v4703 = vadd.f32 %v4451, %v4702
        %v4704 = vpop.f32.mrf.mxu0
        %4705 = vmatprep.mubr.f32.mxu0 0.0
        %4706 = vmatmul.mubr.f32.gmra.mxu0 %v4609
        %v4707 = vpop.f32.mrf.mxu0
        %v4708 = vadd.f32 %v4456, %v4707
        %v4709 = vpop.f32.mrf.mxu0
        %4710 = vmatprep.mubr.f32.mxu0 0.0
        %4711 = vmatmul.mubr.f32.gmra.mxu0 %v4612
        %v4712 = vpop.f32.mrf.mxu0
        %v4713 = vadd.f32 %v4461, %v4712
        %v4714 = vpop.f32.mrf.mxu0
        %4715 = vmatprep.mubr.f32.mxu0 0.0
        %4716 = vmatmul.mubr.f32.gmra.mxu0 %v4615
        %v4717 = vpop.f32.mrf.mxu0
        %v4718 = vadd.f32 %v4466, %v4717
        %v4719 = vpop.f32.mrf.mxu0
        %4720 = vmatprep.mubr.f32.mxu0 0.0
        %4721 = vmatmul.mubr.f32.gmra.mxu0 %v4618
        %v4722 = vpop.f32.mrf.mxu0
        %v4723 = vadd.f32 %v4471, %v4722
        %v4724 = vpop.f32.mrf.mxu0
        %4725 = vmatprep.mubr.f32.mxu0 0.0
        %4726 = vmatmul.mubr.f32.gmra.mxu0 %v4621
        %v4727 = vpop.f32.mrf.mxu0
        %v4728 = vadd.f32 %v4476, %v4727
        %v4729 = vpop.f32.mrf.mxu0
        %4730 = vmatprep.mubr.f32.mxu0 0.0
        %4731 = vmatmul.mubr.f32.gmra.mxu0 %v4276
        %v4732 = vpop.f32.mrf.mxu0
        %v4733 = vadd.f32 %v4481, %v4732
        %v4734 = vpop.f32.mrf.mxu0
        %4735 = vmatprep.mubr.f32.mxu0 0.0
        %4736 = vmatmul.mubr.f32.gmra.mxu0 %v4279
        %v4737 = vpop.f32.mrf.mxu0
        %v4738 = vadd.f32 %v4486, %v4737
        %v4739 = vpop.f32.mrf.mxu0
        %4740 = vmatprep.mubr.f32.mxu0 0.0
        %4741 = vmatmul.mubr.f32.gmra.mxu0 %v4282
        %v4742 = vpop.f32.mrf.mxu0
        %v4743 = vadd.f32 %v4491, %v4742
        %v4744 = vpop.f32.mrf.mxu0
        %4745 = vmatprep.mubr.f32.mxu0 0.0
        %4746 = vmatmul.mubr.f32.gmra.mxu0 %v4285
        %v4747 = vpop.f32.mrf.mxu0
        %v4748 = vadd.f32 %v4496, %v4747
        %v4749 = vpop.f32.mrf.mxu0
        %4750 = vmatprep.mubr.f32.mxu0 0.0
        %4751 = vmatmul.mubr.f32.gmra.mxu0 %v4288
        %v4752 = vpop.f32.mrf.mxu0
        %v4753 = vadd.f32 %v4501, %v4752
        %v4754 = vpop.f32.mrf.mxu0
        %4755 = vmatprep.mubr.f32.mxu0 0.0
        %4756 = vmatmul.mubr.f32.gmra.mxu0 %v4291
        %v4757 = vpop.f32.mrf.mxu0
        %v4758 = vadd.f32 %v4506, %v4757
        %v4759 = vpop.f32.mrf.mxu0
        %4760 = vmatprep.mubr.f32.mxu0 0.0
        %4761 = vmatmul.mubr.f32.gmra.mxu0 %v4294
        %v4762 = vpop.f32.mrf.mxu0
        %v4763 = vadd.f32 %v4511, %v4762
        %v4764 = vpop.f32.mrf.mxu0
        %4765 = vmatprep.mubr.f32.mxu0 0.0
        %4766 = vmatmul.mubr.f32.gmra.mxu0 %v4297
        %v4767 = vpop.f32.mrf.mxu0
        %v4768 = vadd.f32 %v4516, %v4767
        %v4769 = vpop.f32.mrf.mxu0
        %4770 = vmatprep.mubr.f32.mxu0 0.0
        %4771 = vmatmul.mubr.f32.gmra.mxu0 %v4300
        %v4772 = vpop.f32.mrf.mxu0
        %v4773 = vadd.f32 %v4521, %v4772
        %v4774 = vpop.f32.mrf.mxu0
        %4775 = vmatprep.mubr.f32.mxu0 0.0
        %4776 = vmatmul.mubr.f32.gmra.mxu0 %v4303
        %v4777 = vpop.f32.mrf.mxu0
        %v4778 = vadd.f32 %v4526, %v4777
        %v4779 = vpop.f32.mrf.mxu0
        %4780 = vmatprep.mubr.f32.mxu0 0.0
        %4781 = vmatmul.mubr.f32.gmra.mxu0 %v4306
        %v4782 = vpop.f32.mrf.mxu0
        %v4783 = vadd.f32 %v4531, %v4782
        %v4784 = vpop.f32.mrf.mxu0
        %4785 = vmatprep.mubr.f32.mxu0 0.0
        %4786 = vmatmul.mubr.f32.gmra.mxu0 %v4309
        %v4787 = vpop.f32.mrf.mxu0
        %v4788 = vadd.f32 %v4536, %v4787
        %v4789 = vpop.f32.mrf.mxu0
        %4790 = vmatprep.mubr.f32.mxu0 0.0
        %4791 = vmatmul.mubr.f32.gmra.mxu0 %v4312
        %v4792 = vpop.f32.mrf.mxu0
        %v4793 = vadd.f32 %v4541, %v4792
        %v4794 = vpop.f32.mrf.mxu0
        %4795 = vmatprep.mubr.f32.mxu0 0.0
        %4796 = vmatmul.mubr.f32.gmra.mxu0 %v4315
        %v4797 = vpop.f32.mrf.mxu0
        %v4798 = vadd.f32 %v4546, %v4797
        %v4799 = vpop.f32.mrf.mxu0
        %4800 = vmatprep.mubr.f32.mxu0 0.0
        %4801 = vmatmul.mubr.f32.gmra.mxu0 %v4318
        %v4802 = vpop.f32.mrf.mxu0
        %v4803 = vadd.f32 %v4551, %v4802
        %v4804 = vpop.f32.mrf.mxu0
        %4805 = vmatprep.mubr.f32.mxu0 0.0
        %4806 = vmatmul.mubr.f32.gmra.mxu0 %v4321
        %v4807 = vpop.f32.mrf.mxu0
        %v4808 = vadd.f32 %v4556, %v4807
        %v4809 = vpop.f32.mrf.mxu0
        %4810 = vmatprep.mubr.f32.mxu0 0.0
        %4811 = vmatmul.mubr.f32.gmra.mxu0 %v4324
        %v4812 = vpop.f32.mrf.mxu0
        %v4813 = vadd.f32 %v4561, %v4812
        %v4814 = vpop.f32.mrf.mxu0
        %4815 = vmatprep.mubr.f32.mxu0 0.0
        %4816 = vmatmul.mubr.f32.gmra.mxu0 %v4327
        %v4817 = vpop.f32.mrf.mxu0
        %v4818 = vadd.f32 %v4566, %v4817
        %v4819 = vpop.f32.mrf.mxu0
        %4820 = vmatprep.mubr.f32.mxu0 0.0
        %4821 = vmatmul.mubr.f32.gmra.mxu0 %v4330
        %v4822 = vpop.f32.mrf.mxu0
        %v4823 = vadd.f32 %v4571, %v4822
        %v4824 = vpop.f32.mrf.mxu0
        %4825 = vmatprep.mubr.f32.mxu0 0.0
        %4826 = vmatmul.mubr.f32.gmra.mxu0 %v4333
        %v4827 = vpop.f32.mrf.mxu0
        %v4828 = vadd.f32 %v4576, %v4827
        %v4829 = vpop.f32.mrf.mxu0
        %4830 = vmatprep.mubr.f32.mxu0 0.0
        %4831 = vmatmul.mubr.f32.gmra.mxu0 %v4336
        %v4832 = vpop.f32.mrf.mxu0
        %v4833 = vadd.f32 %v4581, %v4832
        %v4834 = vpop.f32.mrf.mxu0
        %4835 = vmatprep.mubr.f32.mxu0 0.0
        %4836 = vmatmul.mubr.f32.gmra.mxu0 %v4339
        %v4837 = vpop.f32.mrf.mxu0
        %v4838 = vadd.f32 %v4586, %v4837
        %v4839 = vpop.f32.mrf.mxu0
        %4840 = vmatprep.mubr.f32.mxu0 0.0
        %4841 = vmatmul.mubr.f32.gmra.mxu0 %v4342
        %v4842 = vpop.f32.mrf.mxu0
        %v4843 = vadd.f32 %v4591, %v4842
        %v4844 = vpop.f32.mrf.mxu0
        %4845 = vmatprep.mubr.f32.mxu0 0.0
        %4846 = vmatmul.mubr.f32.gmra.mxu0 %v4345
        %v4847 = vpop.f32.mrf.mxu0
        %v4848 = vadd.f32 %v4596, %v4847
        %v4849 = vpop.f32.mrf.mxu0
        %4850 = vdwg.mxu0
        %s4851 = scalar_lea.vmem %s9, 8
        %v4852 = vld [vmem:[%s4851] sm:$0xf]
        %v4854 = vsel %vm1267, %v4264, 0
        %v4857 = vsel %vm1267, %v4265, 0
        %v4860 = vsel %vm1267, %v4266, 0
        %v4863 = vsel %vm1267, %v4267, 0
        %v4866 = vsel %vm1267, %v4268, 0
        %v4869 = vsel %vm1267, %v4269, 0
        %v4872 = vsel %vm1267, %v4270, 0
        %v4875 = vsel %vm1267, %v4271, 0
        %v4878 = vsel %vm1559, %v4852, 0
        %4880 = vmatprep.subr.mxu0 0.0
        %4881 = vmatpush1.msra.mxu0 0.0
        %4882 = vmatprep.subr.mxu0 0.0
        %4883 = vmatpush1.msra.mxu0 0.0
        %4884 = vmatprep.subr.mxu0 0.0
        %4885 = vmatpush1.msra.mxu0 0.0
        %4886 = vmatprep.subr.mxu0 0.0
        %4887 = vmatpush1.msra.mxu0 0.0
        %4888 = vmatprep.subr.mxu0 0.0
        %4889 = vmatpush1.msra.mxu0 0.0
        %4890 = vmatprep.subr.mxu0 0.0
        %4891 = vmatpush1.msra.mxu0 0.0
        %4892 = vmatprep.subr.mxu0 0.0
        %4893 = vmatpush1.msra.mxu0 0.0
        %4894 = vmatprep.subr.mxu0 0.0
        %4895 = vmatpush1.msra.mxu0 0.0
        %4896 = vmatprep.subr.mxu0 0.0
        %4897 = vmatpush1.msra.mxu0 0.0
        %4898 = vmatprep.subr.mxu0 0.0
        %4899 = vmatpush1.msra.mxu0 0.0
        %4900 = vmatprep.subr.mxu0 0.0
        %4901 = vmatpush1.msra.mxu0 0.0
        %4902 = vmatprep.subr.mxu0 0.0
        %4903 = vmatpush1.msra.mxu0 0.0
        %4904 = vmatprep.subr.mxu0 0.0
        %4905 = vmatpush1.msra.mxu0 0.0
        %4906 = vmatprep.subr.mxu0 0.0
        %4907 = vmatpush1.msra.mxu0 0.0
        %4908 = vmatprep.subr.mxu0 0.0
        %4909 = vmatpush1.msra.mxu0 0.0
        %4910 = vmatprep.subr.mxu0 0.0
        %4911 = vmatpush1.msra.mxu0 %v4878
        %4912 = vmatprep.subr.mxu0 0.0
        %4913 = vmatpush2.msra.mxu0 0.0
        %4914 = vmatprep.subr.mxu0 0.0
        %4915 = vmatpush2.msra.mxu0 0.0
        %4916 = vmatprep.subr.mxu0 0.0
        %4917 = vmatpush2.msra.mxu0 0.0
        %4918 = vmatprep.subr.mxu0 0.0
        %4919 = vmatpush2.msra.mxu0 0.0
        %4920 = vmatprep.subr.mxu0 0.0
        %4921 = vmatpush2.msra.mxu0 0.0
        %4922 = vmatprep.subr.mxu0 0.0
        %4923 = vmatpush2.msra.mxu0 0.0
        %4924 = vmatprep.subr.mxu0 0.0
        %4925 = vmatpush2.msra.mxu0 0.0
        %4926 = vmatprep.subr.mxu0 0.0
        %4927 = vmatpush2.msra.mxu0 0.0
        %4928 = vmatprep.subr.mxu0 0.0
        %4929 = vmatpush2.msra.mxu0 0.0
        %4930 = vmatprep.subr.mxu0 0.0
        %4931 = vmatpush2.msra.mxu0 0.0
        %4932 = vmatprep.subr.mxu0 0.0
        %4933 = vmatpush2.msra.mxu0 0.0
        %4934 = vmatprep.subr.mxu0 0.0
        %4935 = vmatpush2.msra.mxu0 0.0
        %4936 = vmatprep.subr.mxu0 0.0
        %4937 = vmatpush2.msra.mxu0 0.0
        %4938 = vmatprep.subr.mxu0 0.0
        %4939 = vmatpush2.msra.mxu0 0.0
        %4940 = vmatprep.subr.mxu0 0.0
        %4941 = vmatpush2.msra.mxu0 0.0
        %4942 = vmatprep.subr.mxu0 0.0
        %4943 = vmatpush2.msra.mxu0 0.0
        %4944 = vmatprep.mubr.f32.mxu0 0.0
        %4945 = vmatmul.mubr.f32.gmra.mxu0 %v4300
        %v4946 = vpop.f32.mrf.mxu0
        %v4947 = vadd.f32 0.0, %v4946
        %v4948 = vpop.f32.mrf.mxu0
        %4949 = vmatprep.mubr.f32.mxu0 0.0
        %4950 = vmatmul.mubr.f32.gmra.mxu0 %v4303
        %v4951 = vpop.f32.mrf.mxu0
        %v4952 = vadd.f32 0.0, %v4951
        %v4953 = vpop.f32.mrf.mxu0
        %4954 = vmatprep.mubr.f32.mxu0 0.0
        %4955 = vmatmul.mubr.f32.gmra.mxu0 %v4306
        %v4956 = vpop.f32.mrf.mxu0
        %v4957 = vadd.f32 0.0, %v4956
        %v4958 = vpop.f32.mrf.mxu0
        %4959 = vmatprep.mubr.f32.mxu0 0.0
        %4960 = vmatmul.mubr.f32.gmra.mxu0 %v4309
        %v4961 = vpop.f32.mrf.mxu0
        %v4962 = vadd.f32 0.0, %v4961
        %v4963 = vpop.f32.mrf.mxu0
        %4964 = vmatprep.mubr.f32.mxu0 0.0
        %4965 = vmatmul.mubr.f32.gmra.mxu0 %v4312
        %v4966 = vpop.f32.mrf.mxu0
        %v4967 = vadd.f32 0.0, %v4966
        %v4968 = vpop.f32.mrf.mxu0
        %4969 = vmatprep.mubr.f32.mxu0 0.0
        %4970 = vmatmul.mubr.f32.gmra.mxu0 %v4315
        %v4971 = vpop.f32.mrf.mxu0
        %v4972 = vadd.f32 0.0, %v4971
        %v4973 = vpop.f32.mrf.mxu0
        %4974 = vmatprep.mubr.f32.mxu0 0.0
        %4975 = vmatmul.mubr.f32.gmra.mxu0 %v4318
        %v4976 = vpop.f32.mrf.mxu0
        %v4977 = vadd.f32 0.0, %v4976
        %v4978 = vpop.f32.mrf.mxu0
        %4979 = vmatprep.mubr.f32.mxu0 0.0
        %4980 = vmatmul.mubr.f32.gmra.mxu0 %v4321
        %v4981 = vpop.f32.mrf.mxu0
        %v4982 = vadd.f32 0.0, %v4981
        %v4983 = vpop.f32.mrf.mxu0
        %4984 = vmatprep.mubr.f32.mxu0 0.0
        %4985 = vmatmul.mubr.f32.gmra.mxu0 %v4324
        %v4986 = vpop.f32.mrf.mxu0
        %v4987 = vadd.f32 0.0, %v4986
        %v4988 = vpop.f32.mrf.mxu0
        %4989 = vmatprep.mubr.f32.mxu0 0.0
        %4990 = vmatmul.mubr.f32.gmra.mxu0 %v4327
        %v4991 = vpop.f32.mrf.mxu0
        %v4992 = vadd.f32 0.0, %v4991
        %v4993 = vpop.f32.mrf.mxu0
        %4994 = vmatprep.mubr.f32.mxu0 0.0
        %4995 = vmatmul.mubr.f32.gmra.mxu0 %v4330
        %v4996 = vpop.f32.mrf.mxu0
        %v4997 = vadd.f32 0.0, %v4996
        %v4998 = vpop.f32.mrf.mxu0
        %4999 = vmatprep.mubr.f32.mxu0 0.0
        %5000 = vmatmul.mubr.f32.gmra.mxu0 %v4333
        %v5001 = vpop.f32.mrf.mxu0
        %v5002 = vadd.f32 0.0, %v5001
        %v5003 = vpop.f32.mrf.mxu0
        %5004 = vmatprep.mubr.f32.mxu0 0.0
        %5005 = vmatmul.mubr.f32.gmra.mxu0 %v4336
        %v5006 = vpop.f32.mrf.mxu0
        %v5007 = vadd.f32 0.0, %v5006
        %v5008 = vpop.f32.mrf.mxu0
        %5009 = vmatprep.mubr.f32.mxu0 0.0
        %5010 = vmatmul.mubr.f32.gmra.mxu0 %v4339
        %v5011 = vpop.f32.mrf.mxu0
        %v5012 = vadd.f32 0.0, %v5011
        %v5013 = vpop.f32.mrf.mxu0
        %5014 = vmatprep.mubr.f32.mxu0 0.0
        %5015 = vmatmul.mubr.f32.gmra.mxu0 %v4342
        %v5016 = vpop.f32.mrf.mxu0
        %v5017 = vadd.f32 0.0, %v5016
        %v5018 = vpop.f32.mrf.mxu0
        %5019 = vmatprep.mubr.f32.mxu0 0.0
        %5020 = vmatmul.mubr.f32.gmra.mxu0 %v4345
        %v5021 = vpop.f32.mrf.mxu0
        %v5022 = vadd.f32 0.0, %v5021
        %v5023 = vpop.f32.mrf.mxu0
        %5024 = vmatprep.mubr.f32.mxu0 0.0
        %5025 = vmatmul.mubr.f32.gmra.mxu0 %v4348
        %v5026 = vpop.f32.mrf.mxu0
        %v5027 = vadd.f32 0.0, %v5026
        %v5028 = vpop.f32.mrf.mxu0
        %5029 = vmatprep.mubr.f32.mxu0 0.0
        %5030 = vmatmul.mubr.f32.gmra.mxu0 %v4351
        %v5031 = vpop.f32.mrf.mxu0
        %v5032 = vadd.f32 0.0, %v5031
        %v5033 = vpop.f32.mrf.mxu0
        %5034 = vmatprep.mubr.f32.mxu0 0.0
        %5035 = vmatmul.mubr.f32.gmra.mxu0 %v4354
        %v5036 = vpop.f32.mrf.mxu0
        %v5037 = vadd.f32 0.0, %v5036
        %v5038 = vpop.f32.mrf.mxu0
        %5039 = vmatprep.mubr.f32.mxu0 0.0
        %5040 = vmatmul.mubr.f32.gmra.mxu0 %v4357
        %v5041 = vpop.f32.mrf.mxu0
        %v5042 = vadd.f32 0.0, %v5041
        %v5043 = vpop.f32.mrf.mxu0
        %5044 = vmatprep.mubr.f32.mxu0 0.0
        %5045 = vmatmul.mubr.f32.gmra.mxu0 %v4360
        %v5046 = vpop.f32.mrf.mxu0
        %v5047 = vadd.f32 0.0, %v5046
        %v5048 = vpop.f32.mrf.mxu0
        %5049 = vmatprep.mubr.f32.mxu0 0.0
        %5050 = vmatmul.mubr.f32.gmra.mxu0 %v4363
        %v5051 = vpop.f32.mrf.mxu0
        %v5052 = vadd.f32 0.0, %v5051
        %v5053 = vpop.f32.mrf.mxu0
        %5054 = vmatprep.mubr.f32.mxu0 0.0
        %5055 = vmatmul.mubr.f32.gmra.mxu0 %v4366
        %v5056 = vpop.f32.mrf.mxu0
        %v5057 = vadd.f32 0.0, %v5056
        %v5058 = vpop.f32.mrf.mxu0
        %5059 = vmatprep.mubr.f32.mxu0 0.0
        %5060 = vmatmul.mubr.f32.gmra.mxu0 %v4369
        %v5061 = vpop.f32.mrf.mxu0
        %v5062 = vadd.f32 0.0, %v5061
        %v5063 = vpop.f32.mrf.mxu0
        %5064 = vmatprep.mubr.f32.mxu0 0.0
        %5065 = vmatmul.mubr.f32.gmra.mxu0 %v4854
        %v5066 = vpop.f32.mrf.mxu0
        %v5067 = vadd.f32 0.0, %v5066
        %v5068 = vpop.f32.mrf.mxu0
        %5069 = vmatprep.mubr.f32.mxu0 0.0
        %5070 = vmatmul.mubr.f32.gmra.mxu0 %v4857
        %v5071 = vpop.f32.mrf.mxu0
        %v5072 = vadd.f32 0.0, %v5071
        %v5073 = vpop.f32.mrf.mxu0
        %5074 = vmatprep.mubr.f32.mxu0 0.0
        %5075 = vmatmul.mubr.f32.gmra.mxu0 %v4860
        %v5076 = vpop.f32.mrf.mxu0
        %v5077 = vadd.f32 0.0, %v5076
        %v5078 = vpop.f32.mrf.mxu0
        %5079 = vmatprep.mubr.f32.mxu0 0.0
        %5080 = vmatmul.mubr.f32.gmra.mxu0 %v4863
        %v5081 = vpop.f32.mrf.mxu0
        %v5082 = vadd.f32 0.0, %v5081
        %v5083 = vpop.f32.mrf.mxu0
        %5084 = vmatprep.mubr.f32.mxu0 0.0
        %5085 = vmatmul.mubr.f32.gmra.mxu0 %v4866
        %v5086 = vpop.f32.mrf.mxu0
        %v5087 = vadd.f32 0.0, %v5086
        %v5088 = vpop.f32.mrf.mxu0
        %5089 = vmatprep.mubr.f32.mxu0 0.0
        %5090 = vmatmul.mubr.f32.gmra.mxu0 %v4869
        %v5091 = vpop.f32.mrf.mxu0
        %v5092 = vadd.f32 0.0, %v5091
        %v5093 = vpop.f32.mrf.mxu0
        %5094 = vmatprep.mubr.f32.mxu0 0.0
        %5095 = vmatmul.mubr.f32.gmra.mxu0 %v4872
        %v5096 = vpop.f32.mrf.mxu0
        %v5097 = vadd.f32 0.0, %v5096
        %v5098 = vpop.f32.mrf.mxu0
        %5099 = vmatprep.mubr.f32.mxu0 0.0
        %5100 = vmatmul.mubr.f32.gmra.mxu0 %v4875
        %v5101 = vpop.f32.mrf.mxu0
        %v5102 = vadd.f32 0.0, %v5101
        %v5103 = vpop.f32.mrf.mxu0
        %5104 = vdwg.mxu0
        %v5105 = vadd.f32 %v4693, %v4947
        %v5106 = vadd.f32 %v4698, %v4952
        %v5107 = vadd.f32 %v4703, %v4957
        %v5108 = vadd.f32 %v4708, %v4962
        %v5109 = vadd.f32 %v4713, %v4967
        %v5110 = vadd.f32 %v4718, %v4972
        %v5111 = vadd.f32 %v4723, %v4977
        %v5112 = vadd.f32 %v4728, %v4982
        %v5113 = vadd.f32 %v4733, %v4987
        %v5114 = vadd.f32 %v4738, %v4992
        %v5115 = vadd.f32 %v4743, %v4997
        %v5116 = vadd.f32 %v4748, %v5002
        %v5117 = vadd.f32 %v4753, %v5007
        %v5118 = vadd.f32 %v4758, %v5012
        %v5119 = vadd.f32 %v4763, %v5017
        %v5120 = vadd.f32 %v4768, %v5022
        %v5121 = vadd.f32 %v4773, %v5027
        %v5122 = vadd.f32 %v4778, %v5032
        %v5123 = vadd.f32 %v4783, %v5037
        %v5124 = vadd.f32 %v4788, %v5042
        %v5125 = vadd.f32 %v4793, %v5047
        %v5126 = vadd.f32 %v4798, %v5052
        %v5127 = vadd.f32 %v4803, %v5057
        %v5128 = vadd.f32 %v4808, %v5062
        %v5129 = vadd.f32 %v4813, %v5067
        %v5130 = vadd.f32 %v4818, %v5072
        %v5131 = vadd.f32 %v4823, %v5077
        %v5132 = vadd.f32 %v4828, %v5082
        %v5133 = vadd.f32 %v4833, %v5087
        %v5134 = vadd.f32 %v4838, %v5092
        %v5135 = vadd.f32 %v4843, %v5097
        %v5136 = vadd.f32 %v4848, %v5102
        %v5137 = vld [vmem:[#allocation14] sm:$0x1]
        %v5139 = vlaneseq
        %v5140 = vshrl.u32 %v5139, 7
        %v5141 = vsub.s32 0, %v5140
        %v5142 = vrot.slane %v5137, %v5141
        %v5144 = vadd.f32 %v5105, %v5142
        %v5145 = vadd.f32 %v5106, %v5142
        %v5146 = vadd.f32 %v5107, %v5142
        %v5147 = vadd.f32 %v5108, %v5142
        %v5148 = vadd.f32 %v5109, %v5142
        %v5149 = vadd.f32 %v5110, %v5142
        %v5150 = vadd.f32 %v5111, %v5142
        %v5151 = vadd.f32 %v5112, %v5142
        %v5152 = vadd.f32 %v5113, %v5142
        %v5153 = vadd.f32 %v5114, %v5142
        %v5154 = vadd.f32 %v5115, %v5142
        %v5155 = vadd.f32 %v5116, %v5142
        %v5156 = vadd.f32 %v5117, %v5142
        %v5157 = vadd.f32 %v5118, %v5142
        %v5158 = vadd.f32 %v5119, %v5142
        %v5159 = vadd.f32 %v5120, %v5142
        %v5160 = vadd.f32 %v5121, %v5142
        %v5161 = vadd.f32 %v5122, %v5142
        %v5162 = vadd.f32 %v5123, %v5142
        %v5163 = vadd.f32 %v5124, %v5142
        %v5164 = vadd.f32 %v5125, %v5142
        %v5165 = vadd.f32 %v5126, %v5142
        %v5166 = vadd.f32 %v5127, %v5142
        %v5167 = vadd.f32 %v5128, %v5142
        %v5168 = vadd.f32 %v5129, %v5142
        %v5169 = vadd.f32 %v5130, %v5142
        %v5170 = vadd.f32 %v5131, %v5142
        %v5171 = vadd.f32 %v5132, %v5142
        %v5172 = vadd.f32 %v5133, %v5142
        %v5173 = vadd.f32 %v5134, %v5142
        %v5174 = vadd.f32 %v5135, %v5142
        %v5175 = vadd.f32 %v5136, %v5142
        %v5176 = vadd.f32 %v5144, %v2885
        %v5177 = vadd.f32 %v5145, %v2886
        %v5178 = vadd.f32 %v5146, %v2887
        %v5179 = vadd.f32 %v5147, %v2888
        %v5180 = vadd.f32 %v5148, %v2889
        %v5181 = vadd.f32 %v5149, %v2890
        %v5182 = vadd.f32 %v5150, %v2891
        %v5183 = vadd.f32 %v5151, %v2892
        %v5184 = vadd.f32 %v5152, %v2893
        %v5185 = vadd.f32 %v5153, %v2894
        %v5186 = vadd.f32 %v5154, %v2895
        %v5187 = vadd.f32 %v5155, %v2896
        %v5188 = vadd.f32 %v5156, %v2897
        %v5189 = vadd.f32 %v5157, %v2898
        %v5190 = vadd.f32 %v5158, %v2899
        %v5191 = vadd.f32 %v5159, %v2900
        %v5192 = vadd.f32 %v5160, %v2901
        %v5193 = vadd.f32 %v5161, %v2902
        %v5194 = vadd.f32 %v5162, %v2903
        %v5195 = vadd.f32 %v5163, %v2904
        %v5196 = vadd.f32 %v5164, %v2905
        %v5197 = vadd.f32 %v5165, %v2906
        %v5198 = vadd.f32 %v5166, %v2907
        %v5199 = vadd.f32 %v5167, %v2908
        %v5200 = vadd.f32 %v5168, %v2909
        %v5201 = vadd.f32 %v5169, %v2910
        %v5202 = vadd.f32 %v5170, %v2911
        %v5203 = vadd.f32 %v5171, %v2912
        %v5204 = vadd.f32 %v5172, %v2913
        %v5205 = vadd.f32 %v5173, %v2914
        %v5206 = vadd.f32 %v5174, %v2915
        %v5207 = vadd.f32 %v5175, %v2916
        %v5208 = vadd.f32 %v5176, %v4160
        %v5209 = vadd.f32 %v5177, %v4161
        %v5210 = vadd.f32 %v5178, %v4162
        %v5211 = vadd.f32 %v5179, %v4163
        %v5212 = vadd.f32 %v5180, %v4164
        %v5213 = vadd.f32 %v5181, %v4165
        %v5214 = vadd.f32 %v5182, %v4166
        %v5215 = vadd.f32 %v5183, %v4167
        %v5216 = vadd.f32 %v5184, %v4168
        %v5217 = vadd.f32 %v5185, %v4169
        %v5218 = vadd.f32 %v5186, %v4170
        %v5219 = vadd.f32 %v5187, %v4171
        %v5220 = vadd.f32 %v5188, %v4172
        %v5221 = vadd.f32 %v5189, %v4173
        %v5222 = vadd.f32 %v5190, %v4174
        %v5223 = vadd.f32 %v5191, %v4175
        %v5224 = vadd.f32 %v5192, %v4176
        %v5225 = vadd.f32 %v5193, %v4177
        %v5226 = vadd.f32 %v5194, %v4178
        %v5227 = vadd.f32 %v5195, %v4179
        %v5228 = vadd.f32 %v5196, %v4180
        %v5229 = vadd.f32 %v5197, %v4181
        %v5230 = vadd.f32 %v5198, %v4182
        %v5231 = vadd.f32 %v5199, %v4183
        %v5232 = vadd.f32 %v5200, %v4184
        %v5233 = vadd.f32 %v5201, %v4185
        %v5234 = vadd.f32 %v5202, %v4186
        %v5235 = vadd.f32 %v5203, %v4187
        %v5236 = vadd.f32 %v5204, %v4188
        %v5237 = vadd.f32 %v5205, %v4189
        %v5238 = vadd.f32 %v5206, %v4190
        %v5239 = vadd.f32 %v5207, %v4191
        %v5240 = vmax.f32 %v5208, 0.0
        %v5241 = vmax.f32 %v5209, 0.0
        %v5242 = vmax.f32 %v5210, 0.0
        %v5243 = vmax.f32 %v5211, 0.0
        %v5244 = vmax.f32 %v5212, 0.0
        %v5245 = vmax.f32 %v5213, 0.0
        %v5246 = vmax.f32 %v5214, 0.0
        %v5247 = vmax.f32 %v5215, 0.0
        %v5248 = vmax.f32 %v5216, 0.0
        %v5249 = vmax.f32 %v5217, 0.0
        %v5250 = vmax.f32 %v5218, 0.0
        %v5251 = vmax.f32 %v5219, 0.0
        %v5252 = vmax.f32 %v5220, 0.0
        %v5253 = vmax.f32 %v5221, 0.0
        %v5254 = vmax.f32 %v5222, 0.0
        %v5255 = vmax.f32 %v5223, 0.0
        %v5256 = vmax.f32 %v5224, 0.0
        %v5257 = vmax.f32 %v5225, 0.0
        %v5258 = vmax.f32 %v5226, 0.0
        %v5259 = vmax.f32 %v5227, 0.0
        %v5260 = vmax.f32 %v5228, 0.0
        %v5261 = vmax.f32 %v5229, 0.0
        %v5262 = vmax.f32 %v5230, 0.0
        %v5263 = vmax.f32 %v5231, 0.0
        %v5264 = vmax.f32 %v5232, 0.0
        %v5265 = vmax.f32 %v5233, 0.0
        %v5266 = vmax.f32 %v5234, 0.0
        %v5267 = vmax.f32 %v5235, 0.0
        %v5268 = vmax.f32 %v5236, 0.0
        %v5269 = vmax.f32 %v5237, 0.0
        %v5270 = vmax.f32 %v5238, 0.0
        %v5271 = vmax.f32 %v5239, 0.0
        %v5272 = vld [vmem:[%s11] sm:$0xf]
        %v5273 = vld [vmem:[%s12] sm:$0x1]
        %v5275 = vlaneseq
        %v5276 = vshrl.u32 %v5275, 7
        %v5277 = vsub.s32 0, %v5276
        %v5278 = vrot.slane %v5273, %v5277
        %v5281 = vsel %vm1267, %v5240, 0
        %v5284 = vsel %vm1267, %v5241, 0
        %v5287 = vsel %vm1267, %v5242, 0
        %v5290 = vsel %vm1267, %v5243, 0
        %v5293 = vsel %vm1267, %v5244, 0
        %v5296 = vsel %vm1267, %v5245, 0
        %v5299 = vsel %vm1267, %v5246, 0
        %v5302 = vsel %vm1267, %v5247, 0
        %v5305 = vsel %vm1267, %v5248, 0
        %v5308 = vsel %vm1267, %v5249, 0
        %v5311 = vsel %vm1267, %v5250, 0
        %v5314 = vsel %vm1267, %v5251, 0
        %v5317 = vsel %vm1267, %v5252, 0
        %v5320 = vsel %vm1267, %v5253, 0
        %v5323 = vsel %vm1267, %v5254, 0
        %v5326 = vsel %vm1267, %v5255, 0
        %v5329 = vsel %vm1267, %v5256, 0
        %v5332 = vsel %vm1267, %v5257, 0
        %v5335 = vsel %vm1267, %v5258, 0
        %v5338 = vsel %vm1267, %v5259, 0
        %v5341 = vsel %vm1267, %v5260, 0
        %v5344 = vsel %vm1267, %v5261, 0
        %v5347 = vsel %vm1267, %v5262, 0
        %v5350 = vsel %vm1267, %v5263, 0
        %v5353 = vsel %vm1267, %v5264, 0
        %v5356 = vsel %vm1267, %v5265, 0
        %v5359 = vsel %vm1267, %v5266, 0
        %v5362 = vsel %vm1267, %v5267, 0
        %v5365 = vsel %vm1267, %v5268, 0
        %v5368 = vsel %vm1267, %v5269, 0
        %v5371 = vsel %vm1267, %v5270, 0
        %v5374 = vsel %vm1267, %v5271, 0
        %v5377 = vsel %vm1559, %v5272, 0
        %5379 = vmatprep.subr.mxu0 0.0
        %5380 = vmatpush1.msra.mxu0 0.0
        %5381 = vmatprep.subr.mxu0 0.0
        %5382 = vmatpush1.msra.mxu0 0.0
        %5383 = vmatprep.subr.mxu0 0.0
        %5384 = vmatpush1.msra.mxu0 0.0
        %5385 = vmatprep.subr.mxu0 0.0
        %5386 = vmatpush1.msra.mxu0 0.0
        %5387 = vmatprep.subr.mxu0 0.0
        %5388 = vmatpush1.msra.mxu0 0.0
        %5389 = vmatprep.subr.mxu0 0.0
        %5390 = vmatpush1.msra.mxu0 0.0
        %5391 = vmatprep.subr.mxu0 0.0
        %5392 = vmatpush1.msra.mxu0 0.0
        %5393 = vmatprep.subr.mxu0 0.0
        %5394 = vmatpush1.msra.mxu0 0.0
        %5395 = vmatprep.subr.mxu0 0.0
        %5396 = vmatpush1.msra.mxu0 0.0
        %5397 = vmatprep.subr.mxu0 0.0
        %5398 = vmatpush1.msra.mxu0 0.0
        %5399 = vmatprep.subr.mxu0 0.0
        %5400 = vmatpush1.msra.mxu0 0.0
        %5401 = vmatprep.subr.mxu0 0.0
        %5402 = vmatpush1.msra.mxu0 0.0
        %5403 = vmatprep.subr.mxu0 0.0
        %5404 = vmatpush1.msra.mxu0 0.0
        %5405 = vmatprep.subr.mxu0 0.0
        %5406 = vmatpush1.msra.mxu0 0.0
        %5407 = vmatprep.subr.mxu0 0.0
        %5408 = vmatpush1.msra.mxu0 0.0
        %5409 = vmatprep.subr.mxu0 0.0
        %5410 = vmatpush1.msra.mxu0 %v5377
        %5411 = vmatprep.subr.mxu0 0.0
        %5412 = vmatpush2.msra.mxu0 0.0
        %5413 = vmatprep.subr.mxu0 0.0
        %5414 = vmatpush2.msra.mxu0 0.0
        %5415 = vmatprep.subr.mxu0 0.0
        %5416 = vmatpush2.msra.mxu0 0.0
        %5417 = vmatprep.subr.mxu0 0.0
        %5418 = vmatpush2.msra.mxu0 0.0
        %5419 = vmatprep.subr.mxu0 0.0
        %5420 = vmatpush2.msra.mxu0 0.0
        %5421 = vmatprep.subr.mxu0 0.0
        %5422 = vmatpush2.msra.mxu0 0.0
        %5423 = vmatprep.subr.mxu0 0.0
        %5424 = vmatpush2.msra.mxu0 0.0
        %5425 = vmatprep.subr.mxu0 0.0
        %5426 = vmatpush2.msra.mxu0 0.0
        %5427 = vmatprep.subr.mxu0 0.0
        %5428 = vmatpush2.msra.mxu0 0.0
        %5429 = vmatprep.subr.mxu0 0.0
        %5430 = vmatpush2.msra.mxu0 0.0
        %5431 = vmatprep.subr.mxu0 0.0
        %5432 = vmatpush2.msra.mxu0 0.0
        %5433 = vmatprep.subr.mxu0 0.0
        %5434 = vmatpush2.msra.mxu0 0.0
        %5435 = vmatprep.subr.mxu0 0.0
        %5436 = vmatpush2.msra.mxu0 0.0
        %5437 = vmatprep.subr.mxu0 0.0
        %5438 = vmatpush2.msra.mxu0 0.0
        %5439 = vmatprep.subr.mxu0 0.0
        %5440 = vmatpush2.msra.mxu0 0.0
        %5441 = vmatprep.subr.mxu0 0.0
        %5442 = vmatpush2.msra.mxu0 0.0
        %5443 = vmatprep.mubr.f32.mxu0 0.0
        %5444 = vmatmul.mubr.f32.gmra.mxu0 %v5281
        %v5445 = vpop.f32.mrf.mxu0
        %v5446 = vadd.f32 %v5278, %v5445
        %v5447 = vpop.f32.mrf.mxu0
        %5448 = vmatprep.mubr.f32.mxu0 0.0
        %5449 = vmatmul.mubr.f32.gmra.mxu0 %v5284
        %v5450 = vpop.f32.mrf.mxu0
        %v5451 = vadd.f32 %v5278, %v5450
        %v5452 = vpop.f32.mrf.mxu0
        %5453 = vmatprep.mubr.f32.mxu0 0.0
        %5454 = vmatmul.mubr.f32.gmra.mxu0 %v5287
        %v5455 = vpop.f32.mrf.mxu0
        %v5456 = vadd.f32 %v5278, %v5455
        %v5457 = vpop.f32.mrf.mxu0
        %5458 = vmatprep.mubr.f32.mxu0 0.0
        %5459 = vmatmul.mubr.f32.gmra.mxu0 %v5290
        %v5460 = vpop.f32.mrf.mxu0
        %v5461 = vadd.f32 %v5278, %v5460
        %v5462 = vpop.f32.mrf.mxu0
        %5463 = vmatprep.mubr.f32.mxu0 0.0
        %5464 = vmatmul.mubr.f32.gmra.mxu0 %v5293
        %v5465 = vpop.f32.mrf.mxu0
        %v5466 = vadd.f32 %v5278, %v5465
        %v5467 = vpop.f32.mrf.mxu0
        %5468 = vmatprep.mubr.f32.mxu0 0.0
        %5469 = vmatmul.mubr.f32.gmra.mxu0 %v5296
        %v5470 = vpop.f32.mrf.mxu0
        %v5471 = vadd.f32 %v5278, %v5470
        %v5472 = vpop.f32.mrf.mxu0
        %5473 = vmatprep.mubr.f32.mxu0 0.0
        %5474 = vmatmul.mubr.f32.gmra.mxu0 %v5299
        %v5475 = vpop.f32.mrf.mxu0
        %v5476 = vadd.f32 %v5278, %v5475
        %v5477 = vpop.f32.mrf.mxu0
        %5478 = vmatprep.mubr.f32.mxu0 0.0
        %5479 = vmatmul.mubr.f32.gmra.mxu0 %v5302
        %v5480 = vpop.f32.mrf.mxu0
        %v5481 = vadd.f32 %v5278, %v5480
        %v5482 = vpop.f32.mrf.mxu0
        %5483 = vmatprep.mubr.f32.mxu0 0.0
        %5484 = vmatmul.mubr.f32.gmra.mxu0 %v5305
        %v5485 = vpop.f32.mrf.mxu0
        %v5486 = vadd.f32 %v5278, %v5485
        %v5487 = vpop.f32.mrf.mxu0
        %5488 = vmatprep.mubr.f32.mxu0 0.0
        %5489 = vmatmul.mubr.f32.gmra.mxu0 %v5308
        %v5490 = vpop.f32.mrf.mxu0
        %v5491 = vadd.f32 %v5278, %v5490
        %v5492 = vpop.f32.mrf.mxu0
        %5493 = vmatprep.mubr.f32.mxu0 0.0
        %5494 = vmatmul.mubr.f32.gmra.mxu0 %v5311
        %v5495 = vpop.f32.mrf.mxu0
        %v5496 = vadd.f32 %v5278, %v5495
        %v5497 = vpop.f32.mrf.mxu0
        %5498 = vmatprep.mubr.f32.mxu0 0.0
        %5499 = vmatmul.mubr.f32.gmra.mxu0 %v5314
        %v5500 = vpop.f32.mrf.mxu0
        %v5501 = vadd.f32 %v5278, %v5500
        %v5502 = vpop.f32.mrf.mxu0
        %5503 = vmatprep.mubr.f32.mxu0 0.0
        %5504 = vmatmul.mubr.f32.gmra.mxu0 %v5317
        %v5505 = vpop.f32.mrf.mxu0
        %v5506 = vadd.f32 %v5278, %v5505
        %v5507 = vpop.f32.mrf.mxu0
        %5508 = vmatprep.mubr.f32.mxu0 0.0
        %5509 = vmatmul.mubr.f32.gmra.mxu0 %v5320
        %v5510 = vpop.f32.mrf.mxu0
        %v5511 = vadd.f32 %v5278, %v5510
        %v5512 = vpop.f32.mrf.mxu0
        %5513 = vmatprep.mubr.f32.mxu0 0.0
        %5514 = vmatmul.mubr.f32.gmra.mxu0 %v5323
        %v5515 = vpop.f32.mrf.mxu0
        %v5516 = vadd.f32 %v5278, %v5515
        %v5517 = vpop.f32.mrf.mxu0
        %5518 = vmatprep.mubr.f32.mxu0 0.0
        %5519 = vmatmul.mubr.f32.gmra.mxu0 %v5326
        %v5520 = vpop.f32.mrf.mxu0
        %v5521 = vadd.f32 %v5278, %v5520
        %v5522 = vpop.f32.mrf.mxu0
        %5523 = vmatprep.mubr.f32.mxu0 0.0
        %5524 = vmatmul.mubr.f32.gmra.mxu0 %v5329
        %v5525 = vpop.f32.mrf.mxu0
        %v5526 = vadd.f32 %v5278, %v5525
        %v5527 = vpop.f32.mrf.mxu0
        %5528 = vmatprep.mubr.f32.mxu0 0.0
        %5529 = vmatmul.mubr.f32.gmra.mxu0 %v5332
        %v5530 = vpop.f32.mrf.mxu0
        %v5531 = vadd.f32 %v5278, %v5530
        %v5532 = vpop.f32.mrf.mxu0
        %5533 = vmatprep.mubr.f32.mxu0 0.0
        %5534 = vmatmul.mubr.f32.gmra.mxu0 %v5335
        %v5535 = vpop.f32.mrf.mxu0
        %v5536 = vadd.f32 %v5278, %v5535
        %v5537 = vpop.f32.mrf.mxu0
        %5538 = vmatprep.mubr.f32.mxu0 0.0
        %5539 = vmatmul.mubr.f32.gmra.mxu0 %v5338
        %v5540 = vpop.f32.mrf.mxu0
        %v5541 = vadd.f32 %v5278, %v5540
        %v5542 = vpop.f32.mrf.mxu0
        %5543 = vmatprep.mubr.f32.mxu0 0.0
        %5544 = vmatmul.mubr.f32.gmra.mxu0 %v5341
        %v5545 = vpop.f32.mrf.mxu0
        %v5546 = vadd.f32 %v5278, %v5545
        %v5547 = vpop.f32.mrf.mxu0
        %5548 = vmatprep.mubr.f32.mxu0 0.0
        %5549 = vmatmul.mubr.f32.gmra.mxu0 %v5344
        %v5550 = vpop.f32.mrf.mxu0
        %v5551 = vadd.f32 %v5278, %v5550
        %v5552 = vpop.f32.mrf.mxu0
        %5553 = vmatprep.mubr.f32.mxu0 0.0
        %5554 = vmatmul.mubr.f32.gmra.mxu0 %v5347
        %v5555 = vpop.f32.mrf.mxu0
        %v5556 = vadd.f32 %v5278, %v5555
        %v5557 = vpop.f32.mrf.mxu0
        %5558 = vmatprep.mubr.f32.mxu0 0.0
        %5559 = vmatmul.mubr.f32.gmra.mxu0 %v5350
        %v5560 = vpop.f32.mrf.mxu0
        %v5561 = vadd.f32 %v5278, %v5560
        %v5562 = vpop.f32.mrf.mxu0
        %5563 = vmatprep.mubr.f32.mxu0 0.0
        %5564 = vmatmul.mubr.f32.gmra.mxu0 %v5353
        %v5565 = vpop.f32.mrf.mxu0
        %v5566 = vadd.f32 %v5278, %v5565
        %v5567 = vpop.f32.mrf.mxu0
        %5568 = vmatprep.mubr.f32.mxu0 0.0
        %5569 = vmatmul.mubr.f32.gmra.mxu0 %v5356
        %v5570 = vpop.f32.mrf.mxu0
        %v5571 = vadd.f32 %v5278, %v5570
        %v5572 = vpop.f32.mrf.mxu0
        %5573 = vmatprep.mubr.f32.mxu0 0.0
        %5574 = vmatmul.mubr.f32.gmra.mxu0 %v5359
        %v5575 = vpop.f32.mrf.mxu0
        %v5576 = vadd.f32 %v5278, %v5575
        %v5577 = vpop.f32.mrf.mxu0
        %5578 = vmatprep.mubr.f32.mxu0 0.0
        %5579 = vmatmul.mubr.f32.gmra.mxu0 %v5362
        %v5580 = vpop.f32.mrf.mxu0
        %v5581 = vadd.f32 %v5278, %v5580
        %v5582 = vpop.f32.mrf.mxu0
        %5583 = vmatprep.mubr.f32.mxu0 0.0
        %5584 = vmatmul.mubr.f32.gmra.mxu0 %v5365
        %v5585 = vpop.f32.mrf.mxu0
        %v5586 = vadd.f32 %v5278, %v5585
        %v5587 = vpop.f32.mrf.mxu0
        %5588 = vmatprep.mubr.f32.mxu0 0.0
        %5589 = vmatmul.mubr.f32.gmra.mxu0 %v5368
        %v5590 = vpop.f32.mrf.mxu0
        %v5591 = vadd.f32 %v5278, %v5590
        %v5592 = vpop.f32.mrf.mxu0
        %5593 = vmatprep.mubr.f32.mxu0 0.0
        %5594 = vmatmul.mubr.f32.gmra.mxu0 %v5371
        %v5595 = vpop.f32.mrf.mxu0
        %v5596 = vadd.f32 %v5278, %v5595
        %v5597 = vpop.f32.mrf.mxu0
        %5598 = vmatprep.mubr.f32.mxu0 0.0
        %5599 = vmatmul.mubr.f32.gmra.mxu0 %v5374
        %v5600 = vpop.f32.mrf.mxu0
        %v5601 = vadd.f32 %v5278, %v5600
        %v5602 = vpop.f32.mrf.mxu0
        %5603 = vdwg.mxu0
        %v5604 = vld [vmem:[%s526] sm:$0xff]
        %v5605 = vld [vmem:[%s526 + $0x8] sm:$0xff]
        %v5606 = vld [vmem:[%s526 + $0x10] sm:$0xff]
        %v5607 = vld [vmem:[%s526 + $0x18] sm:$0xff]
        %v5608 = vld [vmem:[%s526 + $0x20] sm:$0xff]
        %v5609 = vld [vmem:[%s526 + $0x28] sm:$0xff]
        %v5610 = vld [vmem:[%s526 + $0x30] sm:$0xff]
        %v5611 = vld [vmem:[%s526 + $0x38] sm:$0xff]
        %v5612 = vld [vmem:[%s526 + $0x40] sm:$0xff]
        %v5613 = vld [vmem:[%s526 + $0x48] sm:$0xff]
        %v5614 = vld [vmem:[%s526 + $0x50] sm:$0xff]
        %v5615 = vld [vmem:[%s526 + $0x58] sm:$0xff]
        %v5616 = vld [vmem:[%s526 + $0x60] sm:$0xff]
        %v5617 = vld [vmem:[%s526 + $0x68] sm:$0xff]
        %v5618 = vld [vmem:[%s526 + $0x70] sm:$0xff]
        %v5619 = vld [vmem:[%s526 + $0x78] sm:$0xff]
        %v5620 = vld [vmem:[%s526 + $0x80] sm:$0xff]
        %v5621 = vld [vmem:[%s526 + $0x88] sm:$0xff]
        %v5622 = vld [vmem:[%s526 + $0x90] sm:$0xff]
        %v5623 = vld [vmem:[%s526 + $0x98] sm:$0xff]
        %v5624 = vld [vmem:[%s526 + $0xa0] sm:$0xff]
        %v5625 = vld [vmem:[%s526 + $0xa8] sm:$0xff]
        %v5626 = vld [vmem:[%s526 + $0xb0] sm:$0xff]
        %v5627 = vld [vmem:[%s526 + $0xb8] sm:$0xff]
        %v5628 = vld [vmem:[%s526 + $0xc0] sm:$0xff]
        %v5629 = vld [vmem:[%s526 + $0xc8] sm:$0xff]
        %v5630 = vld [vmem:[%s526 + $0xd0] sm:$0xff]
        %v5631 = vld [vmem:[%s526 + $0xd8] sm:$0xff]
        %v5632 = vld [vmem:[%s526 + $0xe0] sm:$0xff]
        %v5633 = vld [vmem:[%s526 + $0xe8] sm:$0xff]
        %v5634 = vld [vmem:[%s526 + $0xf0] sm:$0xff]
        %v5635 = vld [vmem:[%s526 + $0xf8] sm:$0xff]
        %v5636 = vadd.f32 %v5446, %v5604
        %v5637 = vadd.f32 %v5451, %v5605
        %v5638 = vadd.f32 %v5456, %v5606
        %v5639 = vadd.f32 %v5461, %v5607
        %v5640 = vadd.f32 %v5466, %v5608
        %v5641 = vadd.f32 %v5471, %v5609
        %v5642 = vadd.f32 %v5476, %v5610
        %v5643 = vadd.f32 %v5481, %v5611
        %v5644 = vadd.f32 %v5486, %v5612
        %v5645 = vadd.f32 %v5491, %v5613
        %v5646 = vadd.f32 %v5496, %v5614
        %v5647 = vadd.f32 %v5501, %v5615
        %v5648 = vadd.f32 %v5506, %v5616
        %v5649 = vadd.f32 %v5511, %v5617
        %v5650 = vadd.f32 %v5516, %v5618
        %v5651 = vadd.f32 %v5521, %v5619
        %v5652 = vadd.f32 %v5526, %v5620
        %v5653 = vadd.f32 %v5531, %v5621
        %v5654 = vadd.f32 %v5536, %v5622
        %v5655 = vadd.f32 %v5541, %v5623
        %v5656 = vadd.f32 %v5546, %v5624
        %v5657 = vadd.f32 %v5551, %v5625
        %v5658 = vadd.f32 %v5556, %v5626
        %v5659 = vadd.f32 %v5561, %v5627
        %v5660 = vadd.f32 %v5566, %v5628
        %v5661 = vadd.f32 %v5571, %v5629
        %v5662 = vadd.f32 %v5576, %v5630
        %v5663 = vadd.f32 %v5581, %v5631
        %v5664 = vadd.f32 %v5586, %v5632
        %v5665 = vadd.f32 %v5591, %v5633
        %v5666 = vadd.f32 %v5596, %v5634
        %v5667 = vadd.f32 %v5601, %v5635
        %v5668 = vmax.f32 %v5636, 0.0
        %v5669 = vmax.f32 %v5637, 0.0
        %v5670 = vmax.f32 %v5638, 0.0
        %v5671 = vmax.f32 %v5639, 0.0
        %v5672 = vmax.f32 %v5640, 0.0
        %v5673 = vmax.f32 %v5641, 0.0
        %v5674 = vmax.f32 %v5642, 0.0
        %v5675 = vmax.f32 %v5643, 0.0
        %v5676 = vmax.f32 %v5644, 0.0
        %v5677 = vmax.f32 %v5645, 0.0
        %v5678 = vmax.f32 %v5646, 0.0
        %v5679 = vmax.f32 %v5647, 0.0
        %v5680 = vmax.f32 %v5648, 0.0
        %v5681 = vmax.f32 %v5649, 0.0
        %v5682 = vmax.f32 %v5650, 0.0
        %v5683 = vmax.f32 %v5651, 0.0
        %v5684 = vmax.f32 %v5652, 0.0
        %v5685 = vmax.f32 %v5653, 0.0
        %v5686 = vmax.f32 %v5654, 0.0
        %v5687 = vmax.f32 %v5655, 0.0
        %v5688 = vmax.f32 %v5656, 0.0
        %v5689 = vmax.f32 %v5657, 0.0
        %v5690 = vmax.f32 %v5658, 0.0
        %v5691 = vmax.f32 %v5659, 0.0
        %v5692 = vmax.f32 %v5660, 0.0
        %v5693 = vmax.f32 %v5661, 0.0
        %v5694 = vmax.f32 %v5662, 0.0
        %v5695 = vmax.f32 %v5663, 0.0
        %v5696 = vmax.f32 %v5664, 0.0
        %v5697 = vmax.f32 %v5665, 0.0
        %v5698 = vmax.f32 %v5666, 0.0
        %v5699 = vmax.f32 %v5667, 0.0
        %5700 = vst.msk [vmem:[%s612] sm:$0xff] %vm672, %v5668
        %5701 = vst.msk [vmem:[%s612 + $0x8] sm:$0xff] %vm672, %v5669
        %5702 = vst.msk [vmem:[%s612 + $0x10] sm:$0xff] %vm672, %v5670
        %5703 = vst.msk [vmem:[%s612 + $0x18] sm:$0xff] %vm672, %v5671
        %5704 = vst.msk [vmem:[%s612 + $0x20] sm:$0xff] %vm672, %v5672
        %5705 = vst.msk [vmem:[%s612 + $0x28] sm:$0xff] %vm672, %v5673
        %5706 = vst.msk [vmem:[%s612 + $0x30] sm:$0xff] %vm672, %v5674
        %5707 = vst.msk [vmem:[%s612 + $0x38] sm:$0xff] %vm672, %v5675
        %5708 = vst.msk [vmem:[%s612 + $0x40] sm:$0xff] %vm672, %v5676
        %5709 = vst.msk [vmem:[%s612 + $0x48] sm:$0xff] %vm672, %v5677
        %5710 = vst.msk [vmem:[%s612 + $0x50] sm:$0xff] %vm672, %v5678
        %5711 = vst.msk [vmem:[%s612 + $0x58] sm:$0xff] %vm672, %v5679
        %5712 = vst.msk [vmem:[%s612 + $0x60] sm:$0xff] %vm672, %v5680
        %5713 = vst.msk [vmem:[%s612 + $0x68] sm:$0xff] %vm672, %v5681
        %5714 = vst.msk [vmem:[%s612 + $0x70] sm:$0xff] %vm672, %v5682
        %5715 = vst.msk [vmem:[%s612 + $0x78] sm:$0xff] %vm672, %v5683
        %5716 = vst.msk [vmem:[%s612 + $0x80] sm:$0xff] %vm672, %v5684
        %5717 = vst.msk [vmem:[%s612 + $0x88] sm:$0xff] %vm672, %v5685
        %5718 = vst.msk [vmem:[%s612 + $0x90] sm:$0xff] %vm672, %v5686
        %5719 = vst.msk [vmem:[%s612 + $0x98] sm:$0xff] %vm672, %v5687
        %5720 = vst.msk [vmem:[%s612 + $0xa0] sm:$0xff] %vm672, %v5688
        %5721 = vst.msk [vmem:[%s612 + $0xa8] sm:$0xff] %vm672, %v5689
        %5722 = vst.msk [vmem:[%s612 + $0xb0] sm:$0xff] %vm672, %v5690
        %5723 = vst.msk [vmem:[%s612 + $0xb8] sm:$0xff] %vm672, %v5691
        %5724 = vst.msk [vmem:[%s612 + $0xc0] sm:$0xff] %vm672, %v5692
        %5725 = vst.msk [vmem:[%s612 + $0xc8] sm:$0xff] %vm672, %v5693
        %5726 = vst.msk [vmem:[%s612 + $0xd0] sm:$0xff] %vm672, %v5694
        %5727 = vst.msk [vmem:[%s612 + $0xd8] sm:$0xff] %vm672, %v5695
        %5728 = vst.msk [vmem:[%s612 + $0xe0] sm:$0xff] %vm672, %v5696
        %5729 = vst.msk [vmem:[%s612 + $0xe8] sm:$0xff] %vm672, %v5697
        %5730 = vst.msk [vmem:[%s612 + $0xf0] sm:$0xff] %vm672, %v5698
        %5731 = vst.msk [vmem:[%s612 + $0xf8] sm:$0xff] %vm672, %v5699
        %s5732 = sand.u32 %s351, 1
        %s5733 = scalar_lea.sflag [#allocation5], %s5732
        %s5734 = sand.u32 %s351, 1
        %s5735 = smul.addr %s5734, 256
        %s5736 = scalar_lea.vmem [#allocation15], %s5735
        // Predicated region
        $region101: #{tpu_custom_call.1} parent=71 // pred_check
          %p5737 = pneg %p361
        $region102: #{tpu_custom_call.1} parent=71 // pred_check_branch
          %5739 = sbr.rel (%p5737) target = $region104
        $region103: #{tpu_custom_call.1} parent=71 // pred_region
          %s5740 = smul.u32 4, %s40
          %s5742 = ssub.s32 4096, 4096
          %5743 = vsyncadd %s5733, %s5742
          %s5744 = smul.addr %s5740, 8
          %s5745 = smul.addr %s39, 64
          %s5746 = sadd.s32 %s5744, %s5745
          %s5747 = smul.addr %s5746, 128
          %s5748 = scalar_lea.hbm %s13, %s5747
          %s5749 = sshll.u32 %s5736, 4
          %s5750 = int_to_ptr.vmem [resolvable:$true] %s5749
          %5755 = dma.vmem_to_hbm [thread:$0]  %s5750, 4096, %s5748, %s5733, 128, 128, 8
        $region104: #{tpu_custom_call.1} parent=71 // pred_fallthru
          _
      $region72: #{tpu_custom_call.1} parent=5 // pred_fallthru
        _
      %p5756 = scmp.le.s32.totalorder 2, %s30
      // Predicated region
      $region105: #{tpu_custom_call.1} parent=5 // pred_check
        %p5757 = pneg %p5756
      $region106: #{tpu_custom_call.1} parent=5 // pred_check_branch
        %5759 = sbr.rel (%p5757) target = $region108
      $region107: #{tpu_custom_call.1} parent=5 // pred_region
        %s5760 = ssub.s32 %s30, 2
        // Predicated region
        $region109: #{tpu_custom_call.1} parent=107 // pred_check
          %p5761 = pneg %p367
        $region110: #{tpu_custom_call.1} parent=107 // pred_check_branch
          %5763 = sbr.rel (%p5761) target = $region112
        $region111: #{tpu_custom_call.1} parent=107 // pred_region
          %s5764 = sand.u32 %s352, 1
          %s5765 = scalar_lea.sflag [#allocation5], %s5764
          %s5766 = sand.u32 %s352, 1
          %s5767 = smul.addr %s5766, 256
          %s5768 = scalar_lea.vmem [#allocation15], %s5767
          %5769 = dma.done %s5765, 4096
        $region112: #{tpu_custom_call.1} parent=107 // pred_fallthru
          _
      $region108: #{tpu_custom_call.1} parent=5 // pred_fallthru
        _
    $region6: #{tpu_custom_call.1} parent=1 // loop_footer
      %s34 = sadd.s32 1, %s30
    $region7: #{tpu_custom_call.1} parent=1 // loop_footer_branch
      %29 = sbr.rel target = $region3
    $region8: #{tpu_custom_call.1} parent=1 // loop_exit
      _
    %5770 = vsyncpa [#allocation4], 1
    %s5771 = scalar_lea.sflag [#allocation4], 1
    %5772 = vsyncpa %s5771, 1
    %5773 = vsyncpa [#allocation7], 1
    %s5774 = scalar_lea.sflag [#allocation7], 1
    %5775 = vsyncpa %s5774, 1
    %5776 = vsyncpa [#allocation10], 1
    %5777 = vsyncpa [#allocation13], 1
    %5778 = vsyncpa [#allocation5], 1
    %s5779 = scalar_lea.sflag [#allocation5], 1
    %5780 = vsyncpa %s5779, 1

</llo_original>
